<compile_context>
chip_gen: v7x
topology: tpu7x:2x2x1
jax: 0.10.0
libtpu: 0.0.40
codegen_flags: <defaults>
</compile_context>

<pallas_src>
import functools

import numpy as np
import jax
import jax.numpy as jnp
from jax.experimental import pallas as pl
from jax.experimental.pallas import tpu as pltpu


TILE_B = 8  # images per grid step (multiple of 8 so all row blocks are 8-aligned)


# ------------------------------ Pallas kernel -------------------------------


def _net_kernel(x_ref, a1_ref, b1_ref, a2_ref, b2_ref,
                wf1_ref, bf1_ref, wf2_ref, bf2_ref, wf3_ref, bf3_ref,
                o_ref, s1_ref, s2_ref, s3_ref, *, tb):
    f32 = jnp.float32
    x = x_ref[...]                                          # (tb, 36, 28)

    # ---- conv1 + bias + ReLU: banded GEMM over the 5 kh taps ---------------
    # rows = (b, oh), oh in 0..31 (rows 24..31 come from padding, discarded)
    # cols = p*72 + oc*12 + ow2  with ow = 2*ow2 + p        (144 columns)
    acc1 = jnp.dot(x[:, 0:32, :].reshape(tb * 32, 28), a1_ref[0],
                   preferred_element_type=f32)
    for kh in range(1, 5):
        lhs = x[:, kh:kh + 32, :].reshape(tb * 32, 28)
        acc1 = acc1 + jnp.dot(lhs, a1_ref[kh], preferred_element_type=f32)
    y1 = jnp.maximum(acc1 + b1_ref[...], 0.0)               # (tb*32, 144)

    # ---- 2x2 max-pool #1 (entirely in VMEM) --------------------------------
    # W direction: the two ow-parities are the two 72-lane halves.
    s1_ref[...] = jnp.maximum(y1[:, 0:72], y1[:, 72:144])   # (tb*32, 72)
    # H direction: stride-2 sublane reads from scratch.
    p1 = jnp.maximum(s1_ref[pl.ds(0, tb * 16, stride=2), :],
                     s1_ref[pl.ds(1, tb * 16, stride=2), :])  # (tb*16, 72)
    p1 = p1.reshape(tb, 16, 72)        # rows 0..11 valid; cols = ic*12 + w

    # ---- conv2 + bias + ReLU: banded GEMM over the 5 kh taps ---------------
    # rows = (b, oh), oh in 0..7 ; cols = p*64 + oc*4 + ow2  (128 columns)
    acc2 = jnp.dot(p1[:, 0:8, :].reshape(tb * 8, 72), a2_ref[0],
                   preferred_element_type=f32)
    for kh in range(1, 5):
        lhs = p1[:, kh:kh + 8, :].reshape(tb * 8, 72)
        acc2 = acc2 + jnp.dot(lhs, a2_ref[kh], preferred_element_type=f32)
    y2 = jnp.maximum(acc2 + b2_ref[...], 0.0)               # (tb*8, 128)

    # ---- 2x2 max-pool #2 ----------------------------------------------------
    s2_ref[...] = jnp.maximum(y2[:, 0:64], y2[:, 64:128])   # (tb*8, 64)
    p2 = jnp.maximum(s2_ref[pl.ds(0, tb * 4, stride=2), :],
                     s2_ref[pl.ds(1, tb * 4, stride=2), :])  # (tb*4, 64)
    # p2[b*4 + h2, oc*4 + w2] == pooled2[b, oc, h2, w2]

    # ---- fc1 (+ReLU): 4 stride-4 row gathers, one per pooled row h2 --------
    s3_ref[...] = p2
    h = jnp.dot(s3_ref[pl.ds(0, tb, stride=4), :], wf1_ref[0],
                preferred_element_type=f32)
    for r in range(1, 4):
        h = h + jnp.dot(s3_ref[pl.ds(r, tb, stride=4), :], wf1_ref[r],
                        preferred_element_type=f32)
    h = jnp.maximum(h + bf1_ref[...], 0.0)                  # (tb, 128)

    # ---- fc2 (+ReLU), fc3 ----------------------------------------------------
    h = jnp.maximum(jnp.dot(h, wf2_ref[...], preferred_element_type=f32)
                    + bf2_ref[...], 0.0)
    o_ref[...] = (jnp.dot(h, wf3_ref[...], preferred_element_type=f32)
                  + bf3_ref[...])            # (tb, 128); columns 0..9 = logits


# ------------------- host-side one-time weight re-layout --------------------


def pack_params(p):
    """Re-layout PyTorch-convention weights into GEMM-friendly constants.

    Runs once on the host; preserves the exact forward semantics of `Net`.
    """
    w1 = np.asarray(p["w1"], np.float32)    # (6, 1, 5, 5)
    b1 = np.asarray(p["b1"], np.float32)    # (6,)
    w2 = np.asarray(p["w2"], np.float32)    # (16, 6, 5, 5)
    b2 = np.asarray(p["b2"], np.float32)    # (16,)
    wf1 = np.asarray(p["wf1"], np.float32)  # (120, 256)
    bf1 = np.asarray(p["bf1"], np.float32)  # (120,)
    wf2 = np.asarray(p["wf2"], np.float32)  # (84, 120)
    bf2 = np.asarray(p["bf2"], np.float32)  # (84,)
    wf3 = np.asarray(p["wf3"], np.float32)  # (10, 84)
    bf3 = np.asarray(p["bf3"], np.float32)  # (10,)

    # conv1 banded matrices: (kh, input col w in 0..27, output col) with
    # output col = (ow % 2)*72 + oc*12 + ow//2
    a1 = np.zeros((5, 28, 144), np.float32)
    b1c = np.zeros((1, 144), np.float32)
    for kh in range(5):
        for oc in range(6):
            for ow in range(24):
                col = (ow % 2) * 72 + oc * 12 + ow // 2
                a1[kh, ow:ow + 5, col] = w1[oc, 0, kh, :]
                b1c[0, col] = b1[oc]

    # conv2 banded matrices: (kh, ic*12 + w, output col) with
    # output col = (ow % 2)*64 + oc*4 + ow//2
    a2 = np.zeros((5, 72, 128), np.float32)
    b2c = np.zeros((1, 128), np.float32)
    for kh in range(5):
        for oc in range(16):
            for ic in range(6):
                for ow in range(8):
                    col = (ow % 2) * 64 + oc * 4 + ow // 2
                    a2[kh, ic * 12 + ow:ic * 12 + ow + 5, col] = w2[oc, ic, kh, :]
                    b2c[0, col] = b2[oc]

    # fc1: split the 256 NCHW-flattened features by pooled row h2 (4 x 64),
    # pad N 120 -> 128 with zero columns.
    wf1p = np.zeros((4, 64, 128), np.float32)
    for h2 in range(4):
        for oc in range(16):
            for w2i in range(4):
                wf1p[h2, oc * 4 + w2i, :120] = wf1[:, oc * 16 + h2 * 4 + w2i]
    bf1p = np.zeros((1, 128), np.float32)
    bf1p[0, :120] = bf1

    wf2p = np.zeros((128, 128), np.float32)
    wf2p[:120, :84] = wf2.T
    bf2p = np.zeros((1, 128), np.float32)
    bf2p[0, :84] = bf2

    wf3p = np.zeros((128, 128), np.float32)
    wf3p[:84, :10] = wf3.T
    bf3p = np.zeros((1, 128), np.float32)
    bf3p[0, :10] = bf3

    names = ["a1", "b1c", "a2", "b2c", "wf1", "bf1", "wf2", "bf2", "wf3", "bf3"]
    vals = [a1, b1c, a2, b2c, wf1p, bf1p, wf2p, bf2p, wf3p, bf3p]
    return {k: jnp.asarray(v) for k, v in zip(names, vals)}


# ------------------------------ forward wrapper ------------------------------


def net_forward(x, w, *, tile_b=TILE_B):
    """x: (B, 1, 28, 28) float32 -> logits (B, 10)."""
    B = x.shape[0]
    x = x.reshape(B, 28, 28).astype(jnp.float32)
    bp = ((B + tile_b - 1) // tile_b) * tile_b
    if bp != B:
        x = jnp.pad(x, ((0, bp - B), (0, 0), (0, 0)))
    x = jnp.pad(x, ((0, 0), (0, 8), (0, 0)))  # H 28 -> 36 (zero rows)

    kernel = functools.partial(_net_kernel, tb=tile_b)

    def wspec3(shape):
        return pl.BlockSpec(shape, lambda i: (0, 0, 0))

    def wspec2(shape):
        return pl.BlockSpec(shape, lambda i: (0, 0))

    out = pl.pallas_call(
        kernel,
        out_shape=jax.ShapeDtypeStruct((bp, 128), jnp.float32),
        grid=(bp // tile_b,),
        in_specs=[
            pl.BlockSpec((tile_b, 36, 28), lambda i: (i, 0, 0)),  # images
            wspec3((5, 28, 144)),   # a1 (conv1 banded)
            wspec2((1, 144)),       # b1c
            wspec3((5, 72, 128)),   # a2 (conv2 banded)
            wspec2((1, 128)),       # b2c
            wspec3((4, 64, 128)),   # wf1 (per-h2 split, N padded to 128)
            wspec2((1, 128)),       # bf1
            wspec2((128, 128)),     # wf2 (padded)
            wspec2((1, 128)),       # bf2
            wspec2((128, 128)),     # wf3 (padded)
            wspec2((1, 128)),       # bf3
        ],
        out_specs=pl.BlockSpec((tile_b, 128), lambda i: (i, 0)),
        scratch_shapes=[
            pltpu.VMEM((tile_b * 32, 72), jnp.float32),  # conv1 W-pooled
            pltpu.VMEM((tile_b * 8, 64), jnp.float32),   # conv2 W-pooled
            pltpu.VMEM((tile_b * 4, 64), jnp.float32),   # pooled conv2 feats
        ],
        compiler_params=pltpu.CompilerParams(
            dimension_semantics=("parallel",),
            vmem_limit_bytes=48 * 1024 * 1024),
    )(x, w["a1"], w["b1c"], w["a2"], w["b2c"],
      w["wf1"], w["bf1"], w["wf2"], w["bf2"], w["wf3"], w["bf3"])
    return out[:B, :10]


# --------------------------- deterministic params ---------------------------


def init_params(key):
    ks = jax.random.split(key, 10)

    def u(k, shape, fan_in):
        bound = 1.0 / (fan_in ** 0.5)
        return jax.random.uniform(k, shape, jnp.float32, -bound, bound)

    return {
        "w1": u(ks[0], (6, 1, 5, 5), 1 * 5 * 5),
        "b1": u(ks[1], (6,), 1 * 5 * 5),
        "w2": u(ks[2], (16, 6, 5, 5), 6 * 5 * 5),
        "b2": u(ks[3], (16,), 6 * 5 * 5),
        "wf1": u(ks[4], (120, 256), 256),
        "bf1": u(ks[5], (120,), 256),
        "wf2": u(ks[6], (84, 120), 120),
        "bf2": u(ks[7], (84,), 120),
        "wf3": u(ks[8], (10, 84), 84),
        "bf3": u(ks[9], (10,), 84),
    }


if __name__ == "__main__":
    key = jax.random.PRNGKey(0)
    k_x, k_p = jax.random.split(key)
    # The module's fc1 (16*4*4) implies a 28x28 single-channel input.
    # B=16 with TILE_B=8 exercises a 2-step pipelined, "parallel" grid.
    x = jax.random.normal(k_x, (16, 1, 28, 28), jnp.float32)
    params = init_params(k_p)
    packed = pack_params(params)

    fwd = jax.jit(functools.partial(net_forward, tile_b=TILE_B))
    logits = fwd(x, packed)
    jax.block_until_ready(logits)
    assert logits.shape == (16, 10)
    print("KERNEL_OK")
</pallas_src>

<mosaic_0001>
module attributes {stable_mosaic.version = 11 : i64} {
  func.func @_net_kernel(%arg0: i32, %arg1: memref<8x36x28xf32, #tpu.memory_space<vmem>>, %arg2: memref<5x28x144xf32, #tpu.memory_space<vmem>>, %arg3: memref<1x144xf32, #tpu.memory_space<vmem>>, %arg4: memref<5x72x128xf32, #tpu.memory_space<vmem>>, %arg5: memref<1x128xf32, #tpu.memory_space<vmem>>, %arg6: memref<4x64x128xf32, #tpu.memory_space<vmem>>, %arg7: memref<1x128xf32, #tpu.memory_space<vmem>>, %arg8: memref<128x128xf32, #tpu.memory_space<vmem>>, %arg9: memref<1x128xf32, #tpu.memory_space<vmem>>, %arg10: memref<128x128xf32, #tpu.memory_space<vmem>>, %arg11: memref<1x128xf32, #tpu.memory_space<vmem>>, %arg12: memref<8x128xf32, #tpu.memory_space<vmem>>, %arg13: memref<256x72xf32, #tpu.memory_space<vmem>>, %arg14: memref<64x64xf32, #tpu.memory_space<vmem>>, %arg15: memref<32x64xf32, #tpu.memory_space<vmem>>) attributes {dimension_semantics = [#tpu.dimension_semantics<parallel>], iteration_bounds = array<i64: 2>, scalar_prefetch = 0 : i64, scratch_operands = 3 : i64, tpu.core_type = #tpu.core_type<tc>, window_params = [{transform_indices = @transform_0, window_bounds = array<i64: 8, 36, 28>}, {pipeline_mode = #tpu.pipeline_mode<synchronous>, transform_indices = @transform_1, window_bounds = array<i64: 5, 28, 144>}, {pipeline_mode = #tpu.pipeline_mode<synchronous>, transform_indices = @transform_2, window_bounds = array<i64: 1, 144>}, {pipeline_mode = #tpu.pipeline_mode<synchronous>, transform_indices = @transform_3, window_bounds = array<i64: 5, 72, 128>}, {pipeline_mode = #tpu.pipeline_mode<synchronous>, transform_indices = @transform_4, window_bounds = array<i64: 1, 128>}, {pipeline_mode = #tpu.pipeline_mode<synchronous>, transform_indices = @transform_5, window_bounds = array<i64: 4, 64, 128>}, {pipeline_mode = #tpu.pipeline_mode<synchronous>, transform_indices = @transform_6, window_bounds = array<i64: 1, 128>}, {pipeline_mode = #tpu.pipeline_mode<synchronous>, transform_indices = @transform_7, window_bounds = array<i64: 128, 128>}, {pipeline_mode = #tpu.pipeline_mode<synchronous>, transform_indices = @transform_8, window_bounds = array<i64: 1, 128>}, {pipeline_mode = #tpu.pipeline_mode<synchronous>, transform_indices = @transform_9, window_bounds = array<i64: 128, 128>}, {pipeline_mode = #tpu.pipeline_mode<synchronous>, transform_indices = @transform_10, window_bounds = array<i64: 1, 128>}, {transform_indices = @transform_11, window_bounds = array<i64: 8, 128>}]} {
    %c0 = arith.constant 0 : index
    %c0_0 = arith.constant 0 : index
    %c0_1 = arith.constant 0 : index
    %0 = vector.load %arg1[%c0, %c0_0, %c0_1] : memref<8x36x28xf32, #tpu.memory_space<vmem>>, vector<8x36x28xf32>
    %1 = vector.extract_strided_slice %0 {offsets = [0, 0, 0], sizes = [8, 32, 28], strides = [1, 1, 1]} : vector<8x36x28xf32> to vector<8x32x28xf32>
    %2 = vector.shape_cast %1 : vector<8x32x28xf32> to vector<256x28xf32>
    %c0_2 = arith.constant 0 : index
    %c0_3 = arith.constant 0 : index
    %c0_4 = arith.constant 0 : index
    %3 = vector.load %arg2[%c0_2, %c0_3, %c0_4] : memref<5x28x144xf32, #tpu.memory_space<vmem>>, vector<1x28x144xf32>
    %4 = vector.shape_cast %3 : vector<1x28x144xf32> to vector<28x144xf32>
    %cst = arith.constant dense<0.000000e+00> : vector<256x144xf32>
    %5 = tpu.matmul %2, %4, %cst {dimension_numbers = #tpu.dot_dimension_numbers<[1], [0], [0], [1], [0, 0, 1, 1], [], []>} : vector<256x28xf32>, vector<28x144xf32>, vector<256x144xf32> -> vector<256x144xf32>
    %6 = vector.extract_strided_slice %0 {offsets = [0, 1, 0], sizes = [8, 32, 28], strides = [1, 1, 1]} : vector<8x36x28xf32> to vector<8x32x28xf32>
    %7 = vector.shape_cast %6 : vector<8x32x28xf32> to vector<256x28xf32>
    %c1 = arith.constant 1 : index
    %c0_5 = arith.constant 0 : index
    %c0_6 = arith.constant 0 : index
    %8 = vector.load %arg2[%c1, %c0_5, %c0_6] : memref<5x28x144xf32, #tpu.memory_space<vmem>>, vector<1x28x144xf32>
    %9 = vector.shape_cast %8 : vector<1x28x144xf32> to vector<28x144xf32>
    %cst_7 = arith.constant dense<0.000000e+00> : vector<256x144xf32>
    %10 = tpu.matmul %7, %9, %cst_7 {dimension_numbers = #tpu.dot_dimension_numbers<[1], [0], [0], [1], [0, 0, 1, 1], [], []>} : vector<256x28xf32>, vector<28x144xf32>, vector<256x144xf32> -> vector<256x144xf32>
    %11 = arith.addf %5, %10 : vector<256x144xf32>
    %12 = vector.extract_strided_slice %0 {offsets = [0, 2, 0], sizes = [8, 32, 28], strides = [1, 1, 1]} : vector<8x36x28xf32> to vector<8x32x28xf32>
    %13 = vector.shape_cast %12 : vector<8x32x28xf32> to vector<256x28xf32>
    %c2 = arith.constant 2 : index
    %c0_8 = arith.constant 0 : index
    %c0_9 = arith.constant 0 : index
    %14 = vector.load %arg2[%c2, %c0_8, %c0_9] : memref<5x28x144xf32, #tpu.memory_space<vmem>>, vector<1x28x144xf32>
    %15 = vector.shape_cast %14 : vector<1x28x144xf32> to vector<28x144xf32>
    %cst_10 = arith.constant dense<0.000000e+00> : vector<256x144xf32>
    %16 = tpu.matmul %13, %15, %cst_10 {dimension_numbers = #tpu.dot_dimension_numbers<[1], [0], [0], [1], [0, 0, 1, 1], [], []>} : vector<256x28xf32>, vector<28x144xf32>, vector<256x144xf32> -> vector<256x144xf32>
    %17 = arith.addf %11, %16 : vector<256x144xf32>
    %18 = vector.extract_strided_slice %0 {offsets = [0, 3, 0], sizes = [8, 32, 28], strides = [1, 1, 1]} : vector<8x36x28xf32> to vector<8x32x28xf32>
    %19 = vector.shape_cast %18 : vector<8x32x28xf32> to vector<256x28xf32>
    %c3 = arith.constant 3 : index
    %c0_11 = arith.constant 0 : index
    %c0_12 = arith.constant 0 : index
    %20 = vector.load %arg2[%c3, %c0_11, %c0_12] : memref<5x28x144xf32, #tpu.memory_space<vmem>>, vector<1x28x144xf32>
    %21 = vector.shape_cast %20 : vector<1x28x144xf32> to vector<28x144xf32>
    %cst_13 = arith.constant dense<0.000000e+00> : vector<256x144xf32>
    %22 = tpu.matmul %19, %21, %cst_13 {dimension_numbers = #tpu.dot_dimension_numbers<[1], [0], [0], [1], [0, 0, 1, 1], [], []>} : vector<256x28xf32>, vector<28x144xf32>, vector<256x144xf32> -> vector<256x144xf32>
    %23 = arith.addf %17, %22 : vector<256x144xf32>
    %24 = vector.extract_strided_slice %0 {offsets = [0, 4, 0], sizes = [8, 32, 28], strides = [1, 1, 1]} : vector<8x36x28xf32> to vector<8x32x28xf32>
    %25 = vector.shape_cast %24 : vector<8x32x28xf32> to vector<256x28xf32>
    %c4 = arith.constant 4 : index
    %c0_14 = arith.constant 0 : index
    %c0_15 = arith.constant 0 : index
    %26 = vector.load %arg2[%c4, %c0_14, %c0_15] : memref<5x28x144xf32, #tpu.memory_space<vmem>>, vector<1x28x144xf32>
    %27 = vector.shape_cast %26 : vector<1x28x144xf32> to vector<28x144xf32>
    %cst_16 = arith.constant dense<0.000000e+00> : vector<256x144xf32>
    %28 = tpu.matmul %25, %27, %cst_16 {dimension_numbers = #tpu.dot_dimension_numbers<[1], [0], [0], [1], [0, 0, 1, 1], [], []>} : vector<256x28xf32>, vector<28x144xf32>, vector<256x144xf32> -> vector<256x144xf32>
    %29 = arith.addf %23, %28 : vector<256x144xf32>
    %c0_17 = arith.constant 0 : index
    %c0_18 = arith.constant 0 : index
    %30 = vector.load %arg3[%c0_17, %c0_18] : memref<1x144xf32, #tpu.memory_space<vmem>>, vector<1x144xf32>
    %31 = vector.broadcast %30 : vector<1x144xf32> to vector<256x144xf32>
    %32 = arith.addf %29, %31 : vector<256x144xf32>
    %cst_19 = arith.constant 0.000000e+00 : f32
    %33 = vector.broadcast %cst_19 : f32 to vector<256x144xf32>
    %34 = arith.maximumf %32, %33 : vector<256x144xf32>
    %35 = vector.extract_strided_slice %34 {offsets = [0, 0], sizes = [256, 72], strides = [1, 1]} : vector<256x144xf32> to vector<256x72xf32>
    %36 = vector.extract_strided_slice %34 {offsets = [0, 72], sizes = [256, 72], strides = [1, 1]} : vector<256x144xf32> to vector<256x72xf32>
    %37 = arith.maximumf %35, %36 : vector<256x72xf32>
    %c0_20 = arith.constant 0 : index
    %c0_21 = arith.constant 0 : index
    %38 = vector.load %arg13[%c0_20, %c0_21] : memref<256x72xf32, #tpu.memory_space<vmem>>, vector<256x72xf32>
    tpu.vector_store %arg13[%c0_20, %c0_21], %37 {strides = array<i32>} : memref<256x72xf32, #tpu.memory_space<vmem>>, vector<256x72xf32>,
    %c0_22 = arith.constant 0 : index
    %c0_23 = arith.constant 0 : index
    %39 = tpu.strided_load %arg13[%c0_22, %c0_23] {strides = array<i32: 2, 1>} : memref<256x72xf32, #tpu.memory_space<vmem>>, vector<128x72xf32>
    %c1_24 = arith.constant 1 : index
    %c0_25 = arith.constant 0 : index
    %40 = tpu.strided_load %arg13[%c1_24, %c0_25] {strides = array<i32: 2, 1>} : memref<256x72xf32, #tpu.memory_space<vmem>>, vector<128x72xf32>
    %41 = arith.maximumf %39, %40 : vector<128x72xf32>
    %42 = vector.shape_cast %41 : vector<128x72xf32> to vector<8x16x72xf32>
    %43 = vector.extract_strided_slice %42 {offsets = [0, 0, 0], sizes = [8, 8, 72], strides = [1, 1, 1]} : vector<8x16x72xf32> to vector<8x8x72xf32>
    %44 = vector.shape_cast %43 : vector<8x8x72xf32> to vector<64x72xf32>
    %c0_26 = arith.constant 0 : index
    %c0_27 = arith.constant 0 : index
    %c0_28 = arith.constant 0 : index
    %45 = vector.load %arg4[%c0_26, %c0_27, %c0_28] : memref<5x72x128xf32, #tpu.memory_space<vmem>>, vector<1x72x128xf32>
    %46 = vector.shape_cast %45 : vector<1x72x128xf32> to vector<72x128xf32>
    %cst_29 = arith.constant dense<0.000000e+00> : vector<64x128xf32>
    %47 = tpu.matmul %44, %46, %cst_29 {dimension_numbers = #tpu.dot_dimension_numbers<[1], [0], [0], [1], [0, 0, 1, 1], [], []>} : vector<64x72xf32>, vector<72x128xf32>, vector<64x128xf32> -> vector<64x128xf32>
    %48 = vector.extract_strided_slice %42 {offsets = [0, 1, 0], sizes = [8, 8, 72], strides = [1, 1, 1]} : vector<8x16x72xf32> to vector<8x8x72xf32>
    %49 = vector.shape_cast %48 : vector<8x8x72xf32> to vector<64x72xf32>
    %c1_30 = arith.constant 1 : index
    %c0_31 = arith.constant 0 : index
    %c0_32 = arith.constant 0 : index
    %50 = vector.load %arg4[%c1_30, %c0_31, %c0_32] : memref<5x72x128xf32, #tpu.memory_space<vmem>>, vector<1x72x128xf32>
    %51 = vector.shape_cast %50 : vector<1x72x128xf32> to vector<72x128xf32>
    %cst_33 = arith.constant dense<0.000000e+00> : vector<64x128xf32>
    %52 = tpu.matmul %49, %51, %cst_33 {dimension_numbers = #tpu.dot_dimension_numbers<[1], [0], [0], [1], [0, 0, 1, 1], [], []>} : vector<64x72xf32>, vector<72x128xf32>, vector<64x128xf32> -> vector<64x128xf32>
    %53 = arith.addf %47, %52 : vector<64x128xf32>
    %54 = vector.extract_strided_slice %42 {offsets = [0, 2, 0], sizes = [8, 8, 72], strides = [1, 1, 1]} : vector<8x16x72xf32> to vector<8x8x72xf32>
    %55 = vector.shape_cast %54 : vector<8x8x72xf32> to vector<64x72xf32>
    %c2_34 = arith.constant 2 : index
    %c0_35 = arith.constant 0 : index
    %c0_36 = arith.constant 0 : index
    %56 = vector.load %arg4[%c2_34, %c0_35, %c0_36] : memref<5x72x128xf32, #tpu.memory_space<vmem>>, vector<1x72x128xf32>
    %57 = vector.shape_cast %56 : vector<1x72x128xf32> to vector<72x128xf32>
    %cst_37 = arith.constant dense<0.000000e+00> : vector<64x128xf32>
    %58 = tpu.matmul %55, %57, %cst_37 {dimension_numbers = #tpu.dot_dimension_numbers<[1], [0], [0], [1], [0, 0, 1, 1], [], []>} : vector<64x72xf32>, vector<72x128xf32>, vector<64x128xf32> -> vector<64x128xf32>
    %59 = arith.addf %53, %58 : vector<64x128xf32>
    %60 = vector.extract_strided_slice %42 {offsets = [0, 3, 0], sizes = [8, 8, 72], strides = [1, 1, 1]} : vector<8x16x72xf32> to vector<8x8x72xf32>
    %61 = vector.shape_cast %60 : vector<8x8x72xf32> to vector<64x72xf32>
    %c3_38 = arith.constant 3 : index
    %c0_39 = arith.constant 0 : index
    %c0_40 = arith.constant 0 : index
    %62 = vector.load %arg4[%c3_38, %c0_39, %c0_40] : memref<5x72x128xf32, #tpu.memory_space<vmem>>, vector<1x72x128xf32>
    %63 = vector.shape_cast %62 : vector<1x72x128xf32> to vector<72x128xf32>
    %cst_41 = arith.constant dense<0.000000e+00> : vector<64x128xf32>
    %64 = tpu.matmul %61, %63, %cst_41 {dimension_numbers = #tpu.dot_dimension_numbers<[1], [0], [0], [1], [0, 0, 1, 1], [], []>} : vector<64x72xf32>, vector<72x128xf32>, vector<64x128xf32> -> vector<64x128xf32>
    %65 = arith.addf %59, %64 : vector<64x128xf32>
    %66 = vector.extract_strided_slice %42 {offsets = [0, 4, 0], sizes = [8, 8, 72], strides = [1, 1, 1]} : vector<8x16x72xf32> to vector<8x8x72xf32>
    %67 = vector.shape_cast %66 : vector<8x8x72xf32> to vector<64x72xf32>
    %c4_42 = arith.constant 4 : index
    %c0_43 = arith.constant 0 : index
    %c0_44 = arith.constant 0 : index
    %68 = vector.load %arg4[%c4_42, %c0_43, %c0_44] : memref<5x72x128xf32, #tpu.memory_space<vmem>>, vector<1x72x128xf32>
    %69 = vector.shape_cast %68 : vector<1x72x128xf32> to vector<72x128xf32>
    %cst_45 = arith.constant dense<0.000000e+00> : vector<64x128xf32>
    %70 = tpu.matmul %67, %69, %cst_45 {dimension_numbers = #tpu.dot_dimension_numbers<[1], [0], [0], [1], [0, 0, 1, 1], [], []>} : vector<64x72xf32>, vector<72x128xf32>, vector<64x128xf32> -> vector<64x128xf32>
    %71 = arith.addf %65, %70 : vector<64x128xf32>
    %c0_46 = arith.constant 0 : index
    %c0_47 = arith.constant 0 : index
    %72 = vector.load %arg5[%c0_46, %c0_47] : memref<1x128xf32, #tpu.memory_space<vmem>>, vector<1x128xf32>
    %73 = vector.broadcast %72 : vector<1x128xf32> to vector<64x128xf32>
    %74 = arith.addf %71, %73 : vector<64x128xf32>
    %cst_48 = arith.constant 0.000000e+00 : f32
    %75 = vector.broadcast %cst_48 : f32 to vector<64x128xf32>
    %76 = arith.maximumf %74, %75 : vector<64x128xf32>
    %77 = vector.extract_strided_slice %76 {offsets = [0, 0], sizes = [64, 64], strides = [1, 1]} : vector<64x128xf32> to vector<64x64xf32>
    %78 = vector.extract_strided_slice %76 {offsets = [0, 64], sizes = [64, 64], strides = [1, 1]} : vector<64x128xf32> to vector<64x64xf32>
    %79 = arith.maximumf %77, %78 : vector<64x64xf32>
    %c0_49 = arith.constant 0 : index
    %c0_50 = arith.constant 0 : index
    %80 = vector.load %arg14[%c0_49, %c0_50] : memref<64x64xf32, #tpu.memory_space<vmem>>, vector<64x64xf32>
    tpu.vector_store %arg14[%c0_49, %c0_50], %79 {strides = array<i32>} : memref<64x64xf32, #tpu.memory_space<vmem>>, vector<64x64xf32>,
    %c0_51 = arith.constant 0 : index
    %c0_52 = arith.constant 0 : index
    %81 = tpu.strided_load %arg14[%c0_51, %c0_52] {strides = array<i32: 2, 1>} : memref<64x64xf32, #tpu.memory_space<vmem>>, vector<32x64xf32>
    %c1_53 = arith.constant 1 : index
    %c0_54 = arith.constant 0 : index
    %82 = tpu.strided_load %arg14[%c1_53, %c0_54] {strides = array<i32: 2, 1>} : memref<64x64xf32, #tpu.memory_space<vmem>>, vector<32x64xf32>
    %83 = arith.maximumf %81, %82 : vector<32x64xf32>
    %c0_55 = arith.constant 0 : index
    %c0_56 = arith.constant 0 : index
    %84 = vector.load %arg15[%c0_55, %c0_56] : memref<32x64xf32, #tpu.memory_space<vmem>>, vector<32x64xf32>
    tpu.vector_store %arg15[%c0_55, %c0_56], %83 {strides = array<i32>} : memref<32x64xf32, #tpu.memory_space<vmem>>, vector<32x64xf32>,
    %c0_57 = arith.constant 0 : index
    %c0_58 = arith.constant 0 : index
    %85 = tpu.strided_load %arg15[%c0_57, %c0_58] {strides = array<i32: 4, 1>} : memref<32x64xf32, #tpu.memory_space<vmem>>, vector<8x64xf32>
    %c0_59 = arith.constant 0 : index
    %c0_60 = arith.constant 0 : index
    %c0_61 = arith.constant 0 : index
    %86 = vector.load %arg6[%c0_59, %c0_60, %c0_61] : memref<4x64x128xf32, #tpu.memory_space<vmem>>, vector<1x64x128xf32>
    %87 = vector.shape_cast %86 : vector<1x64x128xf32> to vector<64x128xf32>
    %cst_62 = arith.constant dense<0.000000e+00> : vector<8x128xf32>
    %88 = tpu.matmul %85, %87, %cst_62 {dimension_numbers = #tpu.dot_dimension_numbers<[1], [0], [0], [1], [0, 0, 1, 1], [], []>} : vector<8x64xf32>, vector<64x128xf32>, vector<8x128xf32> -> vector<8x128xf32>
    %c1_63 = arith.constant 1 : index
    %c0_64 = arith.constant 0 : index
    %89 = tpu.strided_load %arg15[%c1_63, %c0_64] {strides = array<i32: 4, 1>} : memref<32x64xf32, #tpu.memory_space<vmem>>, vector<8x64xf32>
    %c1_65 = arith.constant 1 : index
    %c0_66 = arith.constant 0 : index
    %c0_67 = arith.constant 0 : index
    %90 = vector.load %arg6[%c1_65, %c0_66, %c0_67] : memref<4x64x128xf32, #tpu.memory_space<vmem>>, vector<1x64x128xf32>
    %91 = vector.shape_cast %90 : vector<1x64x128xf32> to vector<64x128xf32>
    %cst_68 = arith.constant dense<0.000000e+00> : vector<8x128xf32>
    %92 = tpu.matmul %89, %91, %cst_68 {dimension_numbers = #tpu.dot_dimension_numbers<[1], [0], [0], [1], [0, 0, 1, 1], [], []>} : vector<8x64xf32>, vector<64x128xf32>, vector<8x128xf32> -> vector<8x128xf32>
    %93 = arith.addf %88, %92 : vector<8x128xf32>
    %c2_69 = arith.constant 2 : index
    %c0_70 = arith.constant 0 : index
    %94 = tpu.strided_load %arg15[%c2_69, %c0_70] {strides = array<i32: 4, 1>} : memref<32x64xf32, #tpu.memory_space<vmem>>, vector<8x64xf32>
    %c2_71 = arith.constant 2 : index
    %c0_72 = arith.constant 0 : index
    %c0_73 = arith.constant 0 : index
    %95 = vector.load %arg6[%c2_71, %c0_72, %c0_73] : memref<4x64x128xf32, #tpu.memory_space<vmem>>, vector<1x64x128xf32>
    %96 = vector.shape_cast %95 : vector<1x64x128xf32> to vector<64x128xf32>
    %cst_74 = arith.constant dense<0.000000e+00> : vector<8x128xf32>
    %97 = tpu.matmul %94, %96, %cst_74 {dimension_numbers = #tpu.dot_dimension_numbers<[1], [0], [0], [1], [0, 0, 1, 1], [], []>} : vector<8x64xf32>, vector<64x128xf32>, vector<8x128xf32> -> vector<8x128xf32>
    %98 = arith.addf %93, %97 : vector<8x128xf32>
    %c3_75 = arith.constant 3 : index
    %c0_76 = arith.constant 0 : index
    %99 = tpu.strided_load %arg15[%c3_75, %c0_76] {strides = array<i32: 4, 1>} : memref<32x64xf32, #tpu.memory_space<vmem>>, vector<8x64xf32>
    %c3_77 = arith.constant 3 : index
    %c0_78 = arith.constant 0 : index
    %c0_79 = arith.constant 0 : index
    %100 = vector.load %arg6[%c3_77, %c0_78, %c0_79] : memref<4x64x128xf32, #tpu.memory_space<vmem>>, vector<1x64x128xf32>
    %101 = vector.shape_cast %100 : vector<1x64x128xf32> to vector<64x128xf32>
    %cst_80 = arith.constant dense<0.000000e+00> : vector<8x128xf32>
    %102 = tpu.matmul %99, %101, %cst_80 {dimension_numbers = #tpu.dot_dimension_numbers<[1], [0], [0], [1], [0, 0, 1, 1], [], []>} : vector<8x64xf32>, vector<64x128xf32>, vector<8x128xf32> -> vector<8x128xf32>
    %103 = arith.addf %98, %102 : vector<8x128xf32>
    %c0_81 = arith.constant 0 : index
    %c0_82 = arith.constant 0 : index
    %104 = vector.load %arg7[%c0_81, %c0_82] : memref<1x128xf32, #tpu.memory_space<vmem>>, vector<1x128xf32>
    %105 = vector.broadcast %104 : vector<1x128xf32> to vector<8x128xf32>
    %106 = arith.addf %103, %105 : vector<8x128xf32>
    %cst_83 = arith.constant 0.000000e+00 : f32
    %107 = vector.broadcast %cst_83 : f32 to vector<8x128xf32>
    %108 = arith.maximumf %106, %107 : vector<8x128xf32>
    %c0_84 = arith.constant 0 : index
    %c0_85 = arith.constant 0 : index
    %109 = vector.load %arg8[%c0_84, %c0_85] : memref<128x128xf32, #tpu.memory_space<vmem>>, vector<128x128xf32>
    %cst_86 = arith.constant dense<0.000000e+00> : vector<8x128xf32>
    %110 = tpu.matmul %108, %109, %cst_86 {dimension_numbers = #tpu.dot_dimension_numbers<[1], [0], [0], [1], [0, 0, 1, 1], [], []>} : vector<8x128xf32>, vector<128x128xf32>, vector<8x128xf32> -> vector<8x128xf32>
    %c0_87 = arith.constant 0 : index
    %c0_88 = arith.constant 0 : index
    %111 = vector.load %arg9[%c0_87, %c0_88] : memref<1x128xf32, #tpu.memory_space<vmem>>, vector<1x128xf32>
    %112 = vector.broadcast %111 : vector<1x128xf32> to vector<8x128xf32>
    %113 = arith.addf %110, %112 : vector<8x128xf32>
    %cst_89 = arith.constant 0.000000e+00 : f32
    %114 = vector.broadcast %cst_89 : f32 to vector<8x128xf32>
    %115 = arith.maximumf %113, %114 : vector<8x128xf32>
    %c0_90 = arith.constant 0 : index
    %c0_91 = arith.constant 0 : index
    %116 = vector.load %arg10[%c0_90, %c0_91] : memref<128x128xf32, #tpu.memory_space<vmem>>, vector<128x128xf32>
    %cst_92 = arith.constant dense<0.000000e+00> : vector<8x128xf32>
    %117 = tpu.matmul %115, %116, %cst_92 {dimension_numbers = #tpu.dot_dimension_numbers<[1], [0], [0], [1], [0, 0, 1, 1], [], []>} : vector<8x128xf32>, vector<128x128xf32>, vector<8x128xf32> -> vector<8x128xf32>
    %c0_93 = arith.constant 0 : index
    %c0_94 = arith.constant 0 : index
    %118 = vector.load %arg11[%c0_93, %c0_94] : memref<1x128xf32, #tpu.memory_space<vmem>>, vector<1x128xf32>
    %119 = vector.broadcast %118 : vector<1x128xf32> to vector<8x128xf32>
    %120 = arith.addf %117, %119 : vector<8x128xf32>
    %c0_95 = arith.constant 0 : index
    %c0_96 = arith.constant 0 : index
    %121 = vector.load %arg12[%c0_95, %c0_96] : memref<8x128xf32, #tpu.memory_space<vmem>>, vector<8x128xf32>
    tpu.vector_store %arg12[%c0_95, %c0_96], %120 {strides = array<i32>} : memref<8x128xf32, #tpu.memory_space<vmem>>, vector<8x128xf32>,
    return
  }
  func.func @transform_0(%arg0: i32) -> (i32, i32, i32) {
    %c0_i32 = arith.constant 0 : i32
    %c0_i32_0 = arith.constant 0 : i32
    %c0_i32_1 = arith.constant 0 : i32
    return %arg0, %c0_i32, %c0_i32_0 : i32, i32, i32
  }
  func.func @transform_1(%arg0: i32) -> (i32, i32, i32) {
    %c0_i32 = arith.constant 0 : i32
    %c0_i32_0 = arith.constant 0 : i32
    %c0_i32_1 = arith.constant 0 : i32
    %c0_i32_2 = arith.constant 0 : i32
    return %c0_i32, %c0_i32_0, %c0_i32_1 : i32, i32, i32
  }
  func.func @transform_2(%arg0: i32) -> (i32, i32) {
    %c0_i32 = arith.constant 0 : i32
    %c0_i32_0 = arith.constant 0 : i32
    %c0_i32_1 = arith.constant 0 : i32
    return %c0_i32, %c0_i32_0 : i32, i32
  }
  func.func @transform_3(%arg0: i32) -> (i32, i32, i32) {
    %c0_i32 = arith.constant 0 : i32
    %c0_i32_0 = arith.constant 0 : i32
    %c0_i32_1 = arith.constant 0 : i32
    %c0_i32_2 = arith.constant 0 : i32
    return %c0_i32, %c0_i32_0, %c0_i32_1 : i32, i32, i32
  }
  func.func @transform_4(%arg0: i32) -> (i32, i32) {
    %c0_i32 = arith.constant 0 : i32
    %c0_i32_0 = arith.constant 0 : i32
    %c0_i32_1 = arith.constant 0 : i32
    return %c0_i32, %c0_i32_0 : i32, i32
  }
  func.func @transform_5(%arg0: i32) -> (i32, i32, i32) {
    %c0_i32 = arith.constant 0 : i32
    %c0_i32_0 = arith.constant 0 : i32
    %c0_i32_1 = arith.constant 0 : i32
    %c0_i32_2 = arith.constant 0 : i32
    return %c0_i32, %c0_i32_0, %c0_i32_1 : i32, i32, i32
  }
  func.func @transform_6(%arg0: i32) -> (i32, i32) {
    %c0_i32 = arith.constant 0 : i32
    %c0_i32_0 = arith.constant 0 : i32
    %c0_i32_1 = arith.constant 0 : i32
    return %c0_i32, %c0_i32_0 : i32, i32
  }
  func.func @transform_7(%arg0: i32) -> (i32, i32) {
    %c0_i32 = arith.constant 0 : i32
    %c0_i32_0 = arith.constant 0 : i32
    %c0_i32_1 = arith.constant 0 : i32
    return %c0_i32, %c0_i32_0 : i32, i32
  }
  func.func @transform_8(%arg0: i32) -> (i32, i32) {
    %c0_i32 = arith.constant 0 : i32
    %c0_i32_0 = arith.constant 0 : i32
    %c0_i32_1 = arith.constant 0 : i32
    return %c0_i32, %c0_i32_0 : i32, i32
  }
  func.func @transform_9(%arg0: i32) -> (i32, i32) {
    %c0_i32 = arith.constant 0 : i32
    %c0_i32_0 = arith.constant 0 : i32
    %c0_i32_1 = arith.constant 0 : i32
    return %c0_i32, %c0_i32_0 : i32, i32
  }
  func.func @transform_10(%arg0: i32) -> (i32, i32) {
    %c0_i32 = arith.constant 0 : i32
    %c0_i32_0 = arith.constant 0 : i32
    %c0_i32_1 = arith.constant 0 : i32
    return %c0_i32, %c0_i32_0 : i32, i32
  }
  func.func @transform_11(%arg0: i32) -> (i32, i32) {
    %c0_i32 = arith.constant 0 : i32
    %c0_i32_0 = arith.constant 0 : i32
    return %arg0, %c0_i32 : i32, i32
  }
}

</mosaic_0001>

<llo_original>
// kernel: net_forward.1
$region0: #{net_forward.1}
  #allocation0 [shape = 'u32[]', space=smem, size = 0x4, offset = 0x4, fixed_abs, tag = 'smem constant byte address 0x4 - core index']
  #allocation1 [shape = 'u32[144,128]{1,0:T(1,128)}', space=vmem, size = 0x12000, scoped, tag = 'internal scratch']
  #allocation2 [shape = 'f32[256,72]{1,0:T(8,128)}', space=vmem, size = 0x20000, scoped, tag = 'scratch operand']
  #allocation3 [shape = 'f32[64,64]{1,0:T(8,128)}', space=vmem, size = 0x8000, scoped, tag = 'scratch operand']
  #allocation4 [shape = 'f32[32,64]{1,0:T(8,128)}', space=vmem, size = 0x4000, scoped, tag = 'scratch operand']
  %s0 = inlined_call_operand.vmem [shape: f32[16,36,28], index: 0, kind: input, shape index: {}]
  %s1 = inlined_call_operand.vmem [shape: f32[5,28,144], index: 1, kind: input, shape index: {}]
  %s2 = inlined_call_operand.vmem [shape: f32[1,144], index: 2, kind: input, shape index: {}]
  %s3 = inlined_call_operand.vmem [shape: f32[5,72,128], index: 3, kind: input, shape index: {}]
  %s4 = inlined_call_operand.vmem [shape: f32[1,128], index: 4, kind: input, shape index: {}]
  %s5 = inlined_call_operand.vmem [shape: f32[4,64,128], index: 5, kind: input, shape index: {}]
  %s6 = inlined_call_operand.vmem [shape: f32[1,128], index: 6, kind: input, shape index: {}]
  %s7 = inlined_call_operand.vmem [shape: f32[128,128], index: 7, kind: input, shape index: {}]
  %s8 = inlined_call_operand.vmem [shape: f32[1,128], index: 8, kind: input, shape index: {}]
  %s9 = inlined_call_operand.vmem [shape: f32[128,128], index: 9, kind: input, shape index: {}]
  %s10 = inlined_call_operand.vmem [shape: f32[1,128], index: 10, kind: input, shape index: {}]
  %s11 = inlined_call_operand.hbm [shape: f32[16,128], index: 11, kind: output, shape index: {}]
  %s12 = sld [smem:[#allocation0]]
  $region77: #{net_forward.1} parent=0
    _
  %s14 = ssub.s32 1, %s12
  %s15 = scalar_select 0, %s14, %s12
  $region1: #{net_forward.1} parent=0
    #allocation5 [shape = 'u8[8192]{0}', space=vmem, size = 0x2000, scoped, tag = 'output window, operand 0']
    #allocation6 [shape = 's32[2]{0}', space=sflag, size = 0x8, scoped, tag = 'scoped memory for net_forward.1']
    %16 = vsyncpa [#allocation6], 0
    %s17 = scalar_lea.sflag [#allocation6], 1
    %18 = vsyncpa %s17, 0
    loop: start=0, step=1, limit=4
    $region2: #{net_forward.1} parent=1 // loop_pre_header
      _
    $region3: #{net_forward.1} parent=1 // loop_header
      %s20 = sphi 0, %s24
      %p21 = scmp.ge.s32.totalorder %s20, 4
      %s30 = sphi 0, %s32
      %s33 = sphi 0, %s30
      %s34 = sphi 0, %s33
      %s50 = sphi 0, %s34
      %s54 = sphi 0, %s54
      %s56 = sphi 0, %s54
      %s57 = sphi 0, %s56
      %s71 = sphi 0, %s57
      %s75 = sphi 0, %s75
      %s77 = sphi 0, %s75
      %s78 = sphi 0, %s77
      %s92 = sphi 0, %s78
      %s96 = sphi 0, %s96
      %s98 = sphi 0, %s96
      %s99 = sphi 0, %s98
      %s113 = sphi 0, %s99
      %s117 = sphi 0, %s117
      %s119 = sphi 0, %s117
      %s120 = sphi 0, %s119
      %s134 = sphi 0, %s120
      %s138 = sphi 0, %s138
      %s140 = sphi 0, %s138
      %s141 = sphi 0, %s140
      %s155 = sphi 0, %s141
      %s159 = sphi 0, %s159
      %s161 = sphi 0, %s159
      %s162 = sphi 0, %s161
      %s176 = sphi 0, %s162
      %s180 = sphi 0, %s180
      %s182 = sphi 0, %s180
      %s183 = sphi 0, %s182
      %s197 = sphi 0, %s183
      %s201 = sphi 0, %s201
      %s203 = sphi 0, %s201
      %s204 = sphi 0, %s203
      %s218 = sphi 0, %s204
      %s222 = sphi 0, %s222
      %s224 = sphi 0, %s222
      %s225 = sphi 0, %s224
      %s239 = sphi 0, %s225
      %s243 = sphi 0, %s243
      %s245 = sphi 0, %s243
      %s246 = sphi 0, %s245
      %s260 = sphi 0, %s246
      %s266 = sphi 0, %s268
      %s269 = sphi 0, %s266
      %s270 = sphi 0, %s269
      %s286 = sphi 0, %s270
    $region4: #{net_forward.1} parent=1 // loop_header_branch
      %23 = sbr.rel (%p21) target = $region8
    $region5: #{net_forward.1} parent=1 // loop_body
      %s25 = ssub.s32 %s20, 1
      %s26 = ssub.s32 %s20, 2
      %s27 = sadd.s32 %s20, 1
      %s28 = ssub.s32 %s20, %s27
      %p29 = scmp.eq.s32.totalorder %s28, 0
      %s31 = sadd.s32 %s30, 1
      %s32 = scalar_select %p29, %s30, %s31
      %p35 = pneg %p29
      %p36 = scmp.eq.s32.totalorder %s20, 1
      %p37 = por %p35, %p36
      %p38 = scmp.ne.s32.totalorder %s30, %s33
      %p39 = scmp.eq.s32.totalorder %s20, 0
      %p40 = por %p38, %p39
      %p41 = scmp.ne.s32.totalorder %s30, %s33
      %p42 = scmp.eq.s32.totalorder %s25, 1
      %p43 = por %p41, %p42
      %p44 = scmp.ne.s32.totalorder %s33, %s34
      %p45 = scmp.eq.s32.totalorder %s25, 0
      %p46 = por %p44, %p45
      %p47 = scmp.ne.s32.totalorder %s33, %s34
      %p48 = scmp.eq.s32.totalorder %s26, 1
      %p49 = por %p47, %p48
      %p51 = scmp.ne.s32.totalorder %s34, %s50
      %p52 = scmp.eq.s32.totalorder %s26, 0
      %p53 = por %p51, %p52
      %s55 = sadd.s32 %s54, 1
      %p58 = scmp.eq.s32.totalorder %s20, 1
      %p59 = scmp.ne.s32.totalorder %s54, %s56
      %p60 = scmp.eq.s32.totalorder %s20, 0
      %p61 = por %p59, %p60
      %p62 = scmp.ne.s32.totalorder %s54, %s56
      %p63 = scmp.eq.s32.totalorder %s25, 1
      %p64 = por %p62, %p63
      %p65 = scmp.ne.s32.totalorder %s56, %s57
      %p66 = scmp.eq.s32.totalorder %s25, 0
      %p67 = por %p65, %p66
      %p68 = scmp.ne.s32.totalorder %s56, %s57
      %p69 = scmp.eq.s32.totalorder %s26, 1
      %p70 = por %p68, %p69
      %p72 = scmp.ne.s32.totalorder %s57, %s71
      %p73 = scmp.eq.s32.totalorder %s26, 0
      %p74 = por %p72, %p73
      %s76 = sadd.s32 %s75, 1
      %p79 = scmp.eq.s32.totalorder %s20, 1
      %p80 = scmp.ne.s32.totalorder %s75, %s77
      %p81 = scmp.eq.s32.totalorder %s20, 0
      %p82 = por %p80, %p81
      %p83 = scmp.ne.s32.totalorder %s75, %s77
      %p84 = scmp.eq.s32.totalorder %s25, 1
      %p85 = por %p83, %p84
      %p86 = scmp.ne.s32.totalorder %s77, %s78
      %p87 = scmp.eq.s32.totalorder %s25, 0
      %p88 = por %p86, %p87
      %p89 = scmp.ne.s32.totalorder %s77, %s78
      %p90 = scmp.eq.s32.totalorder %s26, 1
      %p91 = por %p89, %p90
      %p93 = scmp.ne.s32.totalorder %s78, %s92
      %p94 = scmp.eq.s32.totalorder %s26, 0
      %p95 = por %p93, %p94
      %s97 = sadd.s32 %s96, 1
      %p100 = scmp.eq.s32.totalorder %s20, 1
      %p101 = scmp.ne.s32.totalorder %s96, %s98
      %p102 = scmp.eq.s32.totalorder %s20, 0
      %p103 = por %p101, %p102
      %p104 = scmp.ne.s32.totalorder %s96, %s98
      %p105 = scmp.eq.s32.totalorder %s25, 1
      %p106 = por %p104, %p105
      %p107 = scmp.ne.s32.totalorder %s98, %s99
      %p108 = scmp.eq.s32.totalorder %s25, 0
      %p109 = por %p107, %p108
      %p110 = scmp.ne.s32.totalorder %s98, %s99
      %p111 = scmp.eq.s32.totalorder %s26, 1
      %p112 = por %p110, %p111
      %p114 = scmp.ne.s32.totalorder %s99, %s113
      %p115 = scmp.eq.s32.totalorder %s26, 0
      %p116 = por %p114, %p115
      %s118 = sadd.s32 %s117, 1
      %p121 = scmp.eq.s32.totalorder %s20, 1
      %p122 = scmp.ne.s32.totalorder %s117, %s119
      %p123 = scmp.eq.s32.totalorder %s20, 0
      %p124 = por %p122, %p123
      %p125 = scmp.ne.s32.totalorder %s117, %s119
      %p126 = scmp.eq.s32.totalorder %s25, 1
      %p127 = por %p125, %p126
      %p128 = scmp.ne.s32.totalorder %s119, %s120
      %p129 = scmp.eq.s32.totalorder %s25, 0
      %p130 = por %p128, %p129
      %p131 = scmp.ne.s32.totalorder %s119, %s120
      %p132 = scmp.eq.s32.totalorder %s26, 1
      %p133 = por %p131, %p132
      %p135 = scmp.ne.s32.totalorder %s120, %s134
      %p136 = scmp.eq.s32.totalorder %s26, 0
      %p137 = por %p135, %p136
      %s139 = sadd.s32 %s138, 1
      %p142 = scmp.eq.s32.totalorder %s20, 1
      %p143 = scmp.ne.s32.totalorder %s138, %s140
      %p144 = scmp.eq.s32.totalorder %s20, 0
      %p145 = por %p143, %p144
      %p146 = scmp.ne.s32.totalorder %s138, %s140
      %p147 = scmp.eq.s32.totalorder %s25, 1
      %p148 = por %p146, %p147
      %p149 = scmp.ne.s32.totalorder %s140, %s141
      %p150 = scmp.eq.s32.totalorder %s25, 0
      %p151 = por %p149, %p150
      %p152 = scmp.ne.s32.totalorder %s140, %s141
      %p153 = scmp.eq.s32.totalorder %s26, 1
      %p154 = por %p152, %p153
      %p156 = scmp.ne.s32.totalorder %s141, %s155
      %p157 = scmp.eq.s32.totalorder %s26, 0
      %p158 = por %p156, %p157
      %s160 = sadd.s32 %s159, 1
      %p163 = scmp.eq.s32.totalorder %s20, 1
      %p164 = scmp.ne.s32.totalorder %s159, %s161
      %p165 = scmp.eq.s32.totalorder %s20, 0
      %p166 = por %p164, %p165
      %p167 = scmp.ne.s32.totalorder %s159, %s161
      %p168 = scmp.eq.s32.totalorder %s25, 1
      %p169 = por %p167, %p168
      %p170 = scmp.ne.s32.totalorder %s161, %s162
      %p171 = scmp.eq.s32.totalorder %s25, 0
      %p172 = por %p170, %p171
      %p173 = scmp.ne.s32.totalorder %s161, %s162
      %p174 = scmp.eq.s32.totalorder %s26, 1
      %p175 = por %p173, %p174
      %p177 = scmp.ne.s32.totalorder %s162, %s176
      %p178 = scmp.eq.s32.totalorder %s26, 0
      %p179 = por %p177, %p178
      %s181 = sadd.s32 %s180, 1
      %p184 = scmp.eq.s32.totalorder %s20, 1
      %p185 = scmp.ne.s32.totalorder %s180, %s182
      %p186 = scmp.eq.s32.totalorder %s20, 0
      %p187 = por %p185, %p186
      %p188 = scmp.ne.s32.totalorder %s180, %s182
      %p189 = scmp.eq.s32.totalorder %s25, 1
      %p190 = por %p188, %p189
      %p191 = scmp.ne.s32.totalorder %s182, %s183
      %p192 = scmp.eq.s32.totalorder %s25, 0
      %p193 = por %p191, %p192
      %p194 = scmp.ne.s32.totalorder %s182, %s183
      %p195 = scmp.eq.s32.totalorder %s26, 1
      %p196 = por %p194, %p195
      %p198 = scmp.ne.s32.totalorder %s183, %s197
      %p199 = scmp.eq.s32.totalorder %s26, 0
      %p200 = por %p198, %p199
      %s202 = sadd.s32 %s201, 1
      %p205 = scmp.eq.s32.totalorder %s20, 1
      %p206 = scmp.ne.s32.totalorder %s201, %s203
      %p207 = scmp.eq.s32.totalorder %s20, 0
      %p208 = por %p206, %p207
      %p209 = scmp.ne.s32.totalorder %s201, %s203
      %p210 = scmp.eq.s32.totalorder %s25, 1
      %p211 = por %p209, %p210
      %p212 = scmp.ne.s32.totalorder %s203, %s204
      %p213 = scmp.eq.s32.totalorder %s25, 0
      %p214 = por %p212, %p213
      %p215 = scmp.ne.s32.totalorder %s203, %s204
      %p216 = scmp.eq.s32.totalorder %s26, 1
      %p217 = por %p215, %p216
      %p219 = scmp.ne.s32.totalorder %s204, %s218
      %p220 = scmp.eq.s32.totalorder %s26, 0
      %p221 = por %p219, %p220
      %s223 = sadd.s32 %s222, 1
      %p226 = scmp.eq.s32.totalorder %s20, 1
      %p227 = scmp.ne.s32.totalorder %s222, %s224
      %p228 = scmp.eq.s32.totalorder %s20, 0
      %p229 = por %p227, %p228
      %p230 = scmp.ne.s32.totalorder %s222, %s224
      %p231 = scmp.eq.s32.totalorder %s25, 1
      %p232 = por %p230, %p231
      %p233 = scmp.ne.s32.totalorder %s224, %s225
      %p234 = scmp.eq.s32.totalorder %s25, 0
      %p235 = por %p233, %p234
      %p236 = scmp.ne.s32.totalorder %s224, %s225
      %p237 = scmp.eq.s32.totalorder %s26, 1
      %p238 = por %p236, %p237
      %p240 = scmp.ne.s32.totalorder %s225, %s239
      %p241 = scmp.eq.s32.totalorder %s26, 0
      %p242 = por %p240, %p241
      %s244 = sadd.s32 %s243, 1
      %p247 = scmp.eq.s32.totalorder %s20, 1
      %p248 = scmp.ne.s32.totalorder %s243, %s245
      %p249 = scmp.eq.s32.totalorder %s20, 0
      %p250 = por %p248, %p249
      %p251 = scmp.ne.s32.totalorder %s243, %s245
      %p252 = scmp.eq.s32.totalorder %s25, 1
      %p253 = por %p251, %p252
      %p254 = scmp.ne.s32.totalorder %s245, %s246
      %p255 = scmp.eq.s32.totalorder %s25, 0
      %p256 = por %p254, %p255
      %p257 = scmp.ne.s32.totalorder %s245, %s246
      %p258 = scmp.eq.s32.totalorder %s26, 1
      %p259 = por %p257, %p258
      %p261 = scmp.ne.s32.totalorder %s246, %s260
      %p262 = scmp.eq.s32.totalorder %s26, 0
      %p263 = por %p261, %p262
      %s264 = ssub.s32 %s20, %s27
      %p265 = scmp.eq.s32.totalorder %s264, 0
      %s267 = sadd.s32 %s266, 1
      %s268 = scalar_select %p265, %s266, %s267
      %p271 = pneg %p265
      %p272 = scmp.eq.s32.totalorder %s20, 1
      %p273 = por %p271, %p272
      %p274 = scmp.ne.s32.totalorder %s266, %s269
      %p275 = scmp.eq.s32.totalorder %s20, 0
      %p276 = por %p274, %p275
      %p277 = scmp.ne.s32.totalorder %s266, %s269
      %p278 = scmp.eq.s32.totalorder %s25, 1
      %p279 = por %p277, %p278
      %p280 = scmp.ne.s32.totalorder %s269, %s270
      %p281 = scmp.eq.s32.totalorder %s25, 0
      %p282 = por %p280, %p281
      %p283 = scmp.ne.s32.totalorder %s269, %s270
      %p284 = scmp.eq.s32.totalorder %s26, 1
      %p285 = por %p283, %p284
      %p287 = scmp.ne.s32.totalorder %s270, %s286
      %p288 = scmp.eq.s32.totalorder %s26, 0
      %p289 = por %p287, %p288
      %p290 = scmp.le.s32.totalorder 1, %s20
      %p291 = scmp.lt.s32.totalorder %s20, 3
      %p292 = pnand %p290, %p291
      %p293 = pneg %p292
      // Predicated region
      $region9: #{net_forward.1} parent=5 // pred_check
        _
      $region10: #{net_forward.1} parent=5 // pred_check_branch
        %295 = sbr.rel (%p292) target = $region12
      $region11: #{net_forward.1} parent=5 // pred_region
        %s296 = ssub.s32 %s20, 1
        // Predicated region
        $region13: #{net_forward.1} parent=11 // pred_check
          %p297 = pneg %p67
        $region14: #{net_forward.1} parent=11 // pred_check_branch
          %299 = sbr.rel (%p297) target = $region16
        $region15: #{net_forward.1} parent=11 // pred_region
          _
        $region16: #{net_forward.1} parent=11 // pred_fallthru
          _
        // Predicated region
        $region17: #{net_forward.1} parent=11 // pred_check
          %p300 = pneg %p88
        $region18: #{net_forward.1} parent=11 // pred_check_branch
          %302 = sbr.rel (%p300) target = $region20
        $region19: #{net_forward.1} parent=11 // pred_region
          _
        $region20: #{net_forward.1} parent=11 // pred_fallthru
          _
        // Predicated region
        $region21: #{net_forward.1} parent=11 // pred_check
          %p303 = pneg %p109
        $region22: #{net_forward.1} parent=11 // pred_check_branch
          %305 = sbr.rel (%p303) target = $region24
        $region23: #{net_forward.1} parent=11 // pred_region
          _
        $region24: #{net_forward.1} parent=11 // pred_fallthru
          _
        // Predicated region
        $region25: #{net_forward.1} parent=11 // pred_check
          %p306 = pneg %p130
        $region26: #{net_forward.1} parent=11 // pred_check_branch
          %308 = sbr.rel (%p306) target = $region28
        $region27: #{net_forward.1} parent=11 // pred_region
          _
        $region28: #{net_forward.1} parent=11 // pred_fallthru
          _
        // Predicated region
        $region29: #{net_forward.1} parent=11 // pred_check
          %p309 = pneg %p151
        $region30: #{net_forward.1} parent=11 // pred_check_branch
          %311 = sbr.rel (%p309) target = $region32
        $region31: #{net_forward.1} parent=11 // pred_region
          _
        $region32: #{net_forward.1} parent=11 // pred_fallthru
          _
        // Predicated region
        $region33: #{net_forward.1} parent=11 // pred_check
          %p312 = pneg %p172
        $region34: #{net_forward.1} parent=11 // pred_check_branch
          %314 = sbr.rel (%p312) target = $region36
        $region35: #{net_forward.1} parent=11 // pred_region
          _
        $region36: #{net_forward.1} parent=11 // pred_fallthru
          _
        // Predicated region
        $region37: #{net_forward.1} parent=11 // pred_check
          %p315 = pneg %p193
        $region38: #{net_forward.1} parent=11 // pred_check_branch
          %317 = sbr.rel (%p315) target = $region40
        $region39: #{net_forward.1} parent=11 // pred_region
          _
        $region40: #{net_forward.1} parent=11 // pred_fallthru
          _
        // Predicated region
        $region41: #{net_forward.1} parent=11 // pred_check
          %p318 = pneg %p214
        $region42: #{net_forward.1} parent=11 // pred_check_branch
          %320 = sbr.rel (%p318) target = $region44
        $region43: #{net_forward.1} parent=11 // pred_region
          _
        $region44: #{net_forward.1} parent=11 // pred_fallthru
          _
        // Predicated region
        $region45: #{net_forward.1} parent=11 // pred_check
          %p321 = pneg %p235
        $region46: #{net_forward.1} parent=11 // pred_check_branch
          %323 = sbr.rel (%p321) target = $region48
        $region47: #{net_forward.1} parent=11 // pred_region
          _
        $region48: #{net_forward.1} parent=11 // pred_fallthru
          _
        // Predicated region
        $region49: #{net_forward.1} parent=11 // pred_check
          %p324 = pneg %p256
        $region50: #{net_forward.1} parent=11 // pred_check_branch
          %326 = sbr.rel (%p324) target = $region52
        $region51: #{net_forward.1} parent=11 // pred_region
          _
        $region52: #{net_forward.1} parent=11 // pred_fallthru
          _
      $region12: #{net_forward.1} parent=5 // pred_fallthru
        _
      %p327 = scmp.lt.s32.totalorder %s20, 2
      // Predicated region
      $region53: #{net_forward.1} parent=5 // pred_check
        %p328 = pneg %p327
      $region54: #{net_forward.1} parent=5 // pred_check_branch
        %330 = sbr.rel (%p328) target = $region56
      $region55: #{net_forward.1} parent=5 // pred_region
        // Predicated region
        $region57: #{net_forward.1} parent=55 // pred_check
          %p331 = pneg %p40
        $region58: #{net_forward.1} parent=55 // pred_check_branch
          %333 = sbr.rel (%p331) target = $region60
        $region59: #{net_forward.1} parent=55 // pred_region
          %s334 = smul.u32 8, %s20
          %p335 = scmp.lt.s32.totalorder %s334, 15
          %s336 = scalar_select %p335, %s334, 15
          %s337 = smul.addr %s336, 5
          %s338 = smul.addr %s337, 8
          %s339 = scalar_lea.vmem %s0, %s338
          %s340 = smul.u32 8, %s20
        $region60: #{net_forward.1} parent=55 // pred_fallthru
          _
      $region56: #{net_forward.1} parent=5 // pred_fallthru
        _
      %p341 = scmp.le.s32.totalorder 1, %s20
      %p342 = scmp.lt.s32.totalorder %s20, 3
      %p343 = pnand %p341, %p342
      %p344 = pneg %p343
      // Predicated region
      $region61: #{net_forward.1} parent=5 // pred_check
        _
      $region62: #{net_forward.1} parent=5 // pred_check_branch
        %346 = sbr.rel (%p343) target = $region64
      $region63: #{net_forward.1} parent=5 // pred_region
        %s347 = ssub.s32 %s20, 1
        %s348 = smul.u32 8, %s25
        %p349 = scmp.lt.s32.totalorder %s348, 15
        %s350 = scalar_select %p349, %s348, 15
        %s351 = smul.addr %s350, 5
        %s352 = smul.addr %s351, 8
        %s353 = scalar_lea.vmem %s0, %s352
        %p354 = pneg %p46
        %p355 = pneg %p43
        %p356 = pneg %p67
        %p357 = pneg %p64
        %p358 = pneg %p88
        %p359 = pneg %p85
        %p360 = pneg %p109
        %p361 = pneg %p106
        %p362 = pneg %p130
        %p363 = pneg %p127
        %p364 = pneg %p151
        %p365 = pneg %p148
        %p366 = pneg %p172
        %p367 = pneg %p169
        %p368 = pneg %p193
        %p369 = pneg %p190
        %p370 = pneg %p214
        %p371 = pneg %p211
        %p372 = pneg %p235
        %p373 = pneg %p232
        %p374 = pneg %p256
        %p375 = pneg %p253
        %p376 = pneg %p282
        %p377 = pneg %p279
        %s378 = sand.u32 %s269, 1
        %s379 = scalar_lea.sflag [#allocation6], %s378
        %s380 = sand.u32 %s269, 1
        %s381 = smul.addr %s380, 8
        %s382 = scalar_lea.vmem [#allocation5], %s381
        %s383 = smul.u32 8, %s25
        %p384 = scmp.lt.s32.totalorder %s383, 15
        %s385 = scalar_select %p384, %s383, 15
        %s386 = smul.addr %s385, 5
        %s387 = smul.addr %s386, 8
        %s388 = scalar_lea.vmem %s0, %s387
        %s389 = smul.u32 8, %s25
        %v390 = vld [vmem:[%s388] sm:$0xff]
        %v391 = vld [vmem:[%s388 + $0x8] sm:$0xff]
        %v392 = vld [vmem:[%s388 + $0x10] sm:$0xff]
        %v393 = vld [vmem:[%s388 + $0x18] sm:$0xff]
        %v394 = vld [vmem:[%s388 + $0x20] sm:$0xf]
        %v395 = vld [vmem:[%s388 + $0x28] sm:$0xff]
        %v396 = vld [vmem:[%s388 + $0x30] sm:$0xff]
        %v397 = vld [vmem:[%s388 + $0x38] sm:$0xff]
        %v398 = vld [vmem:[%s388 + $0x40] sm:$0xff]
        %v399 = vld [vmem:[%s388 + $0x48] sm:$0xf]
        %v400 = vld [vmem:[%s388 + $0x50] sm:$0xff]
        %v401 = vld [vmem:[%s388 + $0x58] sm:$0xff]
        %v402 = vld [vmem:[%s388 + $0x60] sm:$0xff]
        %v403 = vld [vmem:[%s388 + $0x68] sm:$0xff]
        %v404 = vld [vmem:[%s388 + $0x70] sm:$0xf]
        %v405 = vld [vmem:[%s388 + $0x78] sm:$0xff]
        %v406 = vld [vmem:[%s388 + $0x80] sm:$0xff]
        %v407 = vld [vmem:[%s388 + $0x88] sm:$0xff]
        %v408 = vld [vmem:[%s388 + $0x90] sm:$0xff]
        %v409 = vld [vmem:[%s388 + $0x98] sm:$0xf]
        %v410 = vld [vmem:[%s388 + $0xa0] sm:$0xff]
        %v411 = vld [vmem:[%s388 + $0xa8] sm:$0xff]
        %v412 = vld [vmem:[%s388 + $0xb0] sm:$0xff]
        %v413 = vld [vmem:[%s388 + $0xb8] sm:$0xff]
        %v414 = vld [vmem:[%s388 + $0xc0] sm:$0xf]
        %v415 = vld [vmem:[%s388 + $0xc8] sm:$0xff]
        %v416 = vld [vmem:[%s388 + $0xd0] sm:$0xff]
        %v417 = vld [vmem:[%s388 + $0xd8] sm:$0xff]
        %v418 = vld [vmem:[%s388 + $0xe0] sm:$0xff]
        %v419 = vld [vmem:[%s388 + $0xe8] sm:$0xf]
        %v420 = vld [vmem:[%s388 + $0xf0] sm:$0xff]
        %v421 = vld [vmem:[%s388 + $0xf8] sm:$0xff]
        %v422 = vld [vmem:[%s388 + $0x100] sm:$0xff]
        %v423 = vld [vmem:[%s388 + $0x108] sm:$0xff]
        %v424 = vld [vmem:[%s388 + $0x110] sm:$0xf]
        %v425 = vld [vmem:[%s388 + $0x118] sm:$0xff]
        %v426 = vld [vmem:[%s388 + $0x120] sm:$0xff]
        %v427 = vld [vmem:[%s388 + $0x128] sm:$0xff]
        %v428 = vld [vmem:[%s388 + $0x130] sm:$0xff]
        %v429 = vld [vmem:[%s388 + $0x138] sm:$0xf]
        %v430 = vld [vmem:[%s1] sm:$0xff]
        %v431 = vld [vmem:[%s1 + $0x8] sm:$0xff]
        %v432 = vld [vmem:[%s1 + $0x10] sm:$0xff]
        %v433 = vld [vmem:[%s1 + $0x18] sm:$0xff]
        %v434 = vld [vmem:[%s1 + $0x20] sm:$0xff]
        %v435 = vld [vmem:[%s1 + $0x28] sm:$0xff]
        %v436 = vld [vmem:[%s1 + $0x30] sm:$0xf]
        %v437 = vld [vmem:[%s1 + $0x38] sm:$0xf]
        %vm478 = vcmask 1046528
        %v479 = vrot.slane %v390, 1
        %v480 = vrot.slane %v391, 1
        %v481 = vsel %vm478, %v479, %v480
        %v482 = vrot.slane %v392, 1
        %v483 = vsel %vm478, %v480, %v482
        %v484 = vrot.slane %v393, 1
        %v485 = vsel %vm478, %v482, %v484
        %v486 = vrot.slane %v394, 1
        %v487 = vsel %vm478, %v484, %v486
        %v488 = vrot.slane %v395, 1
        %v489 = vrot.slane %v396, 1
        %v490 = vsel %vm478, %v488, %v489
        %v491 = vrot.slane %v397, 1
        %v492 = vsel %vm478, %v489, %v491
        %v493 = vrot.slane %v398, 1
        %v494 = vsel %vm478, %v491, %v493
        %v495 = vrot.slane %v399, 1
        %v496 = vsel %vm478, %v493, %v495
        %v497 = vrot.slane %v400, 1
        %v498 = vrot.slane %v401, 1
        %v499 = vsel %vm478, %v497, %v498
        %v500 = vrot.slane %v402, 1
        %v501 = vsel %vm478, %v498, %v500
        %v502 = vrot.slane %v403, 1
        %v503 = vsel %vm478, %v500, %v502
        %v504 = vrot.slane %v404, 1
        %v505 = vsel %vm478, %v502, %v504
        %v506 = vrot.slane %v405, 1
        %v507 = vrot.slane %v406, 1
        %v508 = vsel %vm478, %v506, %v507
        %v509 = vrot.slane %v407, 1
        %v510 = vsel %vm478, %v507, %v509
        %v511 = vrot.slane %v408, 1
        %v512 = vsel %vm478, %v509, %v511
        %v513 = vrot.slane %v409, 1
        %v514 = vsel %vm478, %v511, %v513
        %v515 = vrot.slane %v410, 1
        %v516 = vrot.slane %v411, 1
        %v517 = vsel %vm478, %v515, %v516
        %v518 = vrot.slane %v412, 1
        %v519 = vsel %vm478, %v516, %v518
        %v520 = vrot.slane %v413, 1
        %v521 = vsel %vm478, %v518, %v520
        %v522 = vrot.slane %v414, 1
        %v523 = vsel %vm478, %v520, %v522
        %v524 = vrot.slane %v415, 1
        %v525 = vrot.slane %v416, 1
        %v526 = vsel %vm478, %v524, %v525
        %v527 = vrot.slane %v417, 1
        %v528 = vsel %vm478, %v525, %v527
        %v529 = vrot.slane %v418, 1
        %v530 = vsel %vm478, %v527, %v529
        %v531 = vrot.slane %v419, 1
        %v532 = vsel %vm478, %v529, %v531
        %v533 = vrot.slane %v420, 1
        %v534 = vrot.slane %v421, 1
        %v535 = vsel %vm478, %v533, %v534
        %v536 = vrot.slane %v422, 1
        %v537 = vsel %vm478, %v534, %v536
        %v538 = vrot.slane %v423, 1
        %v539 = vsel %vm478, %v536, %v538
        %v540 = vrot.slane %v424, 1
        %v541 = vsel %vm478, %v538, %v540
        %v542 = vrot.slane %v425, 1
        %v543 = vrot.slane %v426, 1
        %v544 = vsel %vm478, %v542, %v543
        %v545 = vrot.slane %v427, 1
        %v546 = vsel %vm478, %v543, %v545
        %v547 = vrot.slane %v428, 1
        %v548 = vsel %vm478, %v545, %v547
        %v549 = vrot.slane %v429, 1
        %v550 = vsel %vm478, %v547, %v549
        %s551 = scalar_lea.vmem %s1, 64
        %v552 = vld [vmem:[%s551] sm:$0xff]
        %v553 = vld [vmem:[%s551 + $0x8] sm:$0xff]
        %v554 = vld [vmem:[%s551 + $0x10] sm:$0xff]
        %v555 = vld [vmem:[%s551 + $0x18] sm:$0xff]
        %v556 = vld [vmem:[%s551 + $0x20] sm:$0xff]
        %v557 = vld [vmem:[%s551 + $0x28] sm:$0xff]
        %v558 = vld [vmem:[%s551 + $0x30] sm:$0xf]
        %v559 = vld [vmem:[%s551 + $0x38] sm:$0xf]
        %vm560 = vcmask 228352
        %v561 = vsel %vm560, %v481, 0
        %v563 = vsel %vm560, %v483, 0
        %v565 = vsel %vm560, %v485, 0
        %v567 = vsel %vm560, %v487, 0
        %v569 = vsel %vm560, %v490, 0
        %v571 = vsel %vm560, %v492, 0
        %v573 = vsel %vm560, %v494, 0
        %v575 = vsel %vm560, %v496, 0
        %v577 = vsel %vm560, %v499, 0
        %v579 = vsel %vm560, %v501, 0
        %v581 = vsel %vm560, %v503, 0
        %v583 = vsel %vm560, %v505, 0
        %v585 = vsel %vm560, %v508, 0
        %v587 = vsel %vm560, %v510, 0
        %v589 = vsel %vm560, %v512, 0
        %v591 = vsel %vm560, %v514, 0
        %v593 = vsel %vm560, %v517, 0
        %v595 = vsel %vm560, %v519, 0
        %v597 = vsel %vm560, %v521, 0
        %v599 = vsel %vm560, %v523, 0
        %v601 = vsel %vm560, %v526, 0
        %v603 = vsel %vm560, %v528, 0
        %v605 = vsel %vm560, %v530, 0
        %v607 = vsel %vm560, %v532, 0
        %v609 = vsel %vm560, %v535, 0
        %v611 = vsel %vm560, %v537, 0
        %v613 = vsel %vm560, %v539, 0
        %v615 = vsel %vm560, %v541, 0
        %v617 = vsel %vm560, %v544, 0
        %v619 = vsel %vm560, %v546, 0
        %v621 = vsel %vm560, %v548, 0
        %v623 = vsel %vm560, %v550, 0
        %vm625 = vcmask 1043456
        %v627 = vsel %vm625, %v558, 0
        %v630 = vsel %vm625, %v559, 0
        %632 = vmatprep.subr.mxu0 %v553
        %633 = vmatpush1.msra.mxu0 %v552
        %634 = vmatprep.subr.mxu0 %v555
        %635 = vmatpush1.msra.mxu0 %v554
        %636 = vmatprep.subr.mxu0 %v557
        %637 = vmatpush1.msra.mxu0 %v556
        %638 = vmatprep.subr.mxu0 %v630
        %639 = vmatpush1.msra.mxu0 %v627
        %640 = vmatprep.subr.mxu0 0.0
        %641 = vmatpush1.msra.mxu0 0.0
        %642 = vmatprep.subr.mxu0 0.0
        %643 = vmatpush1.msra.mxu0 0.0
        %644 = vmatprep.subr.mxu0 0.0
        %645 = vmatpush1.msra.mxu0 0.0
        %646 = vmatprep.subr.mxu0 0.0
        %647 = vmatpush1.msra.mxu0 0.0
        %648 = vmatprep.subr.mxu0 0.0
        %649 = vmatpush1.msra.mxu0 0.0
        %650 = vmatprep.subr.mxu0 0.0
        %651 = vmatpush1.msra.mxu0 0.0
        %652 = vmatprep.subr.mxu0 0.0
        %653 = vmatpush1.msra.mxu0 0.0
        %654 = vmatprep.subr.mxu0 0.0
        %655 = vmatpush1.msra.mxu0 0.0
        %656 = vmatprep.subr.mxu0 0.0
        %657 = vmatpush1.msra.mxu0 0.0
        %658 = vmatprep.subr.mxu0 0.0
        %659 = vmatpush1.msra.mxu0 0.0
        %660 = vmatprep.subr.mxu0 0.0
        %661 = vmatpush1.msra.mxu0 0.0
        %662 = vmatprep.subr.mxu0 0.0
        %663 = vmatpush1.msra.mxu0 0.0
        %664 = vmatprep.subr.mxu0 0.0
        %665 = vmatpush1.msra.mxu0 0.0
        %666 = vmatprep.subr.mxu0 0.0
        %667 = vmatpush1.msra.mxu0 0.0
        %668 = vmatprep.subr.mxu0 0.0
        %669 = vmatpush1.msra.mxu0 0.0
        %670 = vmatprep.subr.mxu0 0.0
        %671 = vmatpush1.msra.mxu0 0.0
        %672 = vmatprep.subr.mxu0 0.0
        %673 = vmatpush1.msra.mxu0 0.0
        %674 = vmatprep.subr.mxu0 0.0
        %675 = vmatpush1.msra.mxu0 0.0
        %676 = vmatprep.subr.mxu0 0.0
        %677 = vmatpush1.msra.mxu0 0.0
        %678 = vmatprep.subr.mxu0 0.0
        %679 = vmatpush1.msra.mxu0 0.0
        %680 = vmatprep.subr.mxu0 0.0
        %681 = vmatpush1.msra.mxu0 0.0
        %682 = vmatprep.subr.mxu0 0.0
        %683 = vmatpush1.msra.mxu0 0.0
        %684 = vmatprep.subr.mxu0 0.0
        %685 = vmatpush1.msra.mxu0 0.0
        %686 = vmatprep.subr.mxu0 0.0
        %687 = vmatpush1.msra.mxu0 0.0
        %688 = vmatprep.subr.mxu0 0.0
        %689 = vmatpush1.msra.mxu0 0.0
        %690 = vmatprep.subr.mxu0 0.0
        %691 = vmatpush1.msra.mxu0 0.0
        %692 = vmatprep.subr.mxu0 0.0
        %693 = vmatpush1.msra.mxu0 0.0
        %694 = vmatprep.subr.mxu0 0.0
        %695 = vmatpush1.msra.mxu0 0.0
        %696 = vmatprep.mubr.f32.mxu0 0.0
        %697 = vmatmul.mubr.f32.gmra.mrb[0].mxu0 %v561
        %v698 = vpop.f32.mrb[0].mxu0
        %v699 = vadd.f32 0.0, %v698
        %v700 = vpop.f32.mrb[0].mxu0
        %v701 = vadd.f32 0.0, %v700
        %702 = vmatprep.mubr.f32.mxu0 0.0
        %703 = vmatmul.mubr.f32.gmra.mrb[0].mxu0 %v563
        %v704 = vpop.f32.mrb[0].mxu0
        %v705 = vadd.f32 0.0, %v704
        %v706 = vpop.f32.mrb[0].mxu0
        %v707 = vadd.f32 0.0, %v706
        %708 = vmatprep.mubr.f32.mxu0 0.0
        %709 = vmatmul.mubr.f32.gmra.mrb[0].mxu0 %v565
        %v710 = vpop.f32.mrb[0].mxu0
        %v711 = vadd.f32 0.0, %v710
        %v712 = vpop.f32.mrb[0].mxu0
        %v713 = vadd.f32 0.0, %v712
        %714 = vmatprep.mubr.f32.mxu0 0.0
        %715 = vmatmul.mubr.f32.gmra.mrb[0].mxu0 %v567
        %v716 = vpop.f32.mrb[0].mxu0
        %v717 = vadd.f32 0.0, %v716
        %v718 = vpop.f32.mrb[0].mxu0
        %v719 = vadd.f32 0.0, %v718
        %720 = vmatprep.mubr.f32.mxu0 0.0
        %721 = vmatmul.mubr.f32.gmra.mrb[0].mxu0 %v569
        %v722 = vpop.f32.mrb[0].mxu0
        %v723 = vadd.f32 0.0, %v722
        %v724 = vpop.f32.mrb[0].mxu0
        %v725 = vadd.f32 0.0, %v724
        %726 = vmatprep.mubr.f32.mxu0 0.0
        %727 = vmatmul.mubr.f32.gmra.mrb[0].mxu0 %v571
        %v728 = vpop.f32.mrb[0].mxu0
        %v729 = vadd.f32 0.0, %v728
        %v730 = vpop.f32.mrb[0].mxu0
        %v731 = vadd.f32 0.0, %v730
        %732 = vmatprep.mubr.f32.mxu0 0.0
        %733 = vmatmul.mubr.f32.gmra.mrb[0].mxu0 %v573
        %v734 = vpop.f32.mrb[0].mxu0
        %v735 = vadd.f32 0.0, %v734
        %v736 = vpop.f32.mrb[0].mxu0
        %v737 = vadd.f32 0.0, %v736
        %738 = vmatprep.mubr.f32.mxu0 0.0
        %739 = vmatmul.mubr.f32.gmra.mrb[0].mxu0 %v575
        %v740 = vpop.f32.mrb[0].mxu0
        %v741 = vadd.f32 0.0, %v740
        %v742 = vpop.f32.mrb[0].mxu0
        %v743 = vadd.f32 0.0, %v742
        %744 = vmatprep.mubr.f32.mxu0 0.0
        %745 = vmatmul.mubr.f32.gmra.mrb[0].mxu0 %v577
        %v746 = vpop.f32.mrb[0].mxu0
        %v747 = vadd.f32 0.0, %v746
        %v748 = vpop.f32.mrb[0].mxu0
        %v749 = vadd.f32 0.0, %v748
        %750 = vmatprep.mubr.f32.mxu0 0.0
        %751 = vmatmul.mubr.f32.gmra.mrb[0].mxu0 %v579
        %v752 = vpop.f32.mrb[0].mxu0
        %v753 = vadd.f32 0.0, %v752
        %v754 = vpop.f32.mrb[0].mxu0
        %v755 = vadd.f32 0.0, %v754
        %756 = vmatprep.mubr.f32.mxu0 0.0
        %757 = vmatmul.mubr.f32.gmra.mrb[0].mxu0 %v581
        %v758 = vpop.f32.mrb[0].mxu0
        %v759 = vadd.f32 0.0, %v758
        %v760 = vpop.f32.mrb[0].mxu0
        %v761 = vadd.f32 0.0, %v760
        %762 = vmatprep.mubr.f32.mxu0 0.0
        %763 = vmatmul.mubr.f32.gmra.mrb[0].mxu0 %v583
        %v764 = vpop.f32.mrb[0].mxu0
        %v765 = vadd.f32 0.0, %v764
        %v766 = vpop.f32.mrb[0].mxu0
        %v767 = vadd.f32 0.0, %v766
        %768 = vmatprep.mubr.f32.mxu0 0.0
        %769 = vmatmul.mubr.f32.gmra.mrb[0].mxu0 %v585
        %v770 = vpop.f32.mrb[0].mxu0
        %v771 = vadd.f32 0.0, %v770
        %v772 = vpop.f32.mrb[0].mxu0
        %v773 = vadd.f32 0.0, %v772
        %774 = vmatprep.mubr.f32.mxu0 0.0
        %775 = vmatmul.mubr.f32.gmra.mrb[0].mxu0 %v587
        %v776 = vpop.f32.mrb[0].mxu0
        %v777 = vadd.f32 0.0, %v776
        %v778 = vpop.f32.mrb[0].mxu0
        %v779 = vadd.f32 0.0, %v778
        %780 = vmatprep.mubr.f32.mxu0 0.0
        %781 = vmatmul.mubr.f32.gmra.mrb[0].mxu0 %v589
        %v782 = vpop.f32.mrb[0].mxu0
        %v783 = vadd.f32 0.0, %v782
        %v784 = vpop.f32.mrb[0].mxu0
        %v785 = vadd.f32 0.0, %v784
        %786 = vmatprep.mubr.f32.mxu0 0.0
        %787 = vmatmul.mubr.f32.gmra.mrb[0].mxu0 %v591
        %v788 = vpop.f32.mrb[0].mxu0
        %v789 = vadd.f32 0.0, %v788
        %v790 = vpop.f32.mrb[0].mxu0
        %v791 = vadd.f32 0.0, %v790
        %792 = vmatprep.mubr.f32.mxu0 0.0
        %793 = vmatmul.mubr.f32.gmra.mrb[0].mxu0 %v593
        %v794 = vpop.f32.mrb[0].mxu0
        %v795 = vadd.f32 0.0, %v794
        %v796 = vpop.f32.mrb[0].mxu0
        %v797 = vadd.f32 0.0, %v796
        %798 = vmatprep.mubr.f32.mxu0 0.0
        %799 = vmatmul.mubr.f32.gmra.mrb[0].mxu0 %v595
        %v800 = vpop.f32.mrb[0].mxu0
        %v801 = vadd.f32 0.0, %v800
        %v802 = vpop.f32.mrb[0].mxu0
        %v803 = vadd.f32 0.0, %v802
        %804 = vmatprep.mubr.f32.mxu0 0.0
        %805 = vmatmul.mubr.f32.gmra.mrb[0].mxu0 %v597
        %v806 = vpop.f32.mrb[0].mxu0
        %v807 = vadd.f32 0.0, %v806
        %v808 = vpop.f32.mrb[0].mxu0
        %v809 = vadd.f32 0.0, %v808
        %810 = vmatprep.mubr.f32.mxu0 0.0
        %811 = vmatmul.mubr.f32.gmra.mrb[0].mxu0 %v599
        %v812 = vpop.f32.mrb[0].mxu0
        %v813 = vadd.f32 0.0, %v812
        %v814 = vpop.f32.mrb[0].mxu0
        %v815 = vadd.f32 0.0, %v814
        %816 = vmatprep.mubr.f32.mxu0 0.0
        %817 = vmatmul.mubr.f32.gmra.mrb[0].mxu0 %v601
        %v818 = vpop.f32.mrb[0].mxu0
        %v819 = vadd.f32 0.0, %v818
        %v820 = vpop.f32.mrb[0].mxu0
        %v821 = vadd.f32 0.0, %v820
        %822 = vmatprep.mubr.f32.mxu0 0.0
        %823 = vmatmul.mubr.f32.gmra.mrb[0].mxu0 %v603
        %v824 = vpop.f32.mrb[0].mxu0
        %v825 = vadd.f32 0.0, %v824
        %v826 = vpop.f32.mrb[0].mxu0
        %v827 = vadd.f32 0.0, %v826
        %828 = vmatprep.mubr.f32.mxu0 0.0
        %829 = vmatmul.mubr.f32.gmra.mrb[0].mxu0 %v605
        %v830 = vpop.f32.mrb[0].mxu0
        %v831 = vadd.f32 0.0, %v830
        %v832 = vpop.f32.mrb[0].mxu0
        %v833 = vadd.f32 0.0, %v832
        %834 = vmatprep.mubr.f32.mxu0 0.0
        %835 = vmatmul.mubr.f32.gmra.mrb[0].mxu0 %v607
        %v836 = vpop.f32.mrb[0].mxu0
        %v837 = vadd.f32 0.0, %v836
        %v838 = vpop.f32.mrb[0].mxu0
        %v839 = vadd.f32 0.0, %v838
        %840 = vmatprep.mubr.f32.mxu0 0.0
        %841 = vmatmul.mubr.f32.gmra.mrb[0].mxu0 %v609
        %v842 = vpop.f32.mrb[0].mxu0
        %v843 = vadd.f32 0.0, %v842
        %v844 = vpop.f32.mrb[0].mxu0
        %v845 = vadd.f32 0.0, %v844
        %846 = vmatprep.mubr.f32.mxu0 0.0
        %847 = vmatmul.mubr.f32.gmra.mrb[0].mxu0 %v611
        %v848 = vpop.f32.mrb[0].mxu0
        %v849 = vadd.f32 0.0, %v848
        %v850 = vpop.f32.mrb[0].mxu0
        %v851 = vadd.f32 0.0, %v850
        %852 = vmatprep.mubr.f32.mxu0 0.0
        %853 = vmatmul.mubr.f32.gmra.mrb[0].mxu0 %v613
        %v854 = vpop.f32.mrb[0].mxu0
        %v855 = vadd.f32 0.0, %v854
        %v856 = vpop.f32.mrb[0].mxu0
        %v857 = vadd.f32 0.0, %v856
        %858 = vmatprep.mubr.f32.mxu0 0.0
        %859 = vmatmul.mubr.f32.gmra.mrb[0].mxu0 %v615
        %v860 = vpop.f32.mrb[0].mxu0
        %v861 = vadd.f32 0.0, %v860
        %v862 = vpop.f32.mrb[0].mxu0
        %v863 = vadd.f32 0.0, %v862
        %864 = vmatprep.mubr.f32.mxu0 0.0
        %865 = vmatmul.mubr.f32.gmra.mrb[0].mxu0 %v617
        %v866 = vpop.f32.mrb[0].mxu0
        %v867 = vadd.f32 0.0, %v866
        %v868 = vpop.f32.mrb[0].mxu0
        %v869 = vadd.f32 0.0, %v868
        %870 = vmatprep.mubr.f32.mxu0 0.0
        %871 = vmatmul.mubr.f32.gmra.mrb[0].mxu0 %v619
        %v872 = vpop.f32.mrb[0].mxu0
        %v873 = vadd.f32 0.0, %v872
        %v874 = vpop.f32.mrb[0].mxu0
        %v875 = vadd.f32 0.0, %v874
        %876 = vmatprep.mubr.f32.mxu0 0.0
        %877 = vmatmul.mubr.f32.gmra.mrb[0].mxu0 %v621
        %v878 = vpop.f32.mrb[0].mxu0
        %v879 = vadd.f32 0.0, %v878
        %v880 = vpop.f32.mrb[0].mxu0
        %v881 = vadd.f32 0.0, %v880
        %882 = vmatprep.mubr.f32.mxu0 0.0
        %883 = vmatmul.mubr.f32.gmra.mrb[0].mxu0 %v623
        %v884 = vpop.f32.mrb[0].mxu0
        %v885 = vadd.f32 0.0, %v884
        %v886 = vpop.f32.mrb[0].mxu0
        %v887 = vadd.f32 0.0, %v886
        %888 = vdwg.mxu0
        %v889 = vsel %vm560, %v390, 0
        %v891 = vsel %vm560, %v391, 0
        %v893 = vsel %vm560, %v392, 0
        %v895 = vsel %vm560, %v393, 0
        %v897 = vsel %vm560, %v395, 0
        %v899 = vsel %vm560, %v396, 0
        %v901 = vsel %vm560, %v397, 0
        %v903 = vsel %vm560, %v398, 0
        %v905 = vsel %vm560, %v400, 0
        %v907 = vsel %vm560, %v401, 0
        %v909 = vsel %vm560, %v402, 0
        %v911 = vsel %vm560, %v403, 0
        %v913 = vsel %vm560, %v405, 0
        %v915 = vsel %vm560, %v406, 0
        %v917 = vsel %vm560, %v407, 0
        %v919 = vsel %vm560, %v408, 0
        %v921 = vsel %vm560, %v410, 0
        %v923 = vsel %vm560, %v411, 0
        %v925 = vsel %vm560, %v412, 0
        %v927 = vsel %vm560, %v413, 0
        %v929 = vsel %vm560, %v415, 0
        %v931 = vsel %vm560, %v416, 0
        %v933 = vsel %vm560, %v417, 0
        %v935 = vsel %vm560, %v418, 0
        %v937 = vsel %vm560, %v420, 0
        %v939 = vsel %vm560, %v421, 0
        %v941 = vsel %vm560, %v422, 0
        %v943 = vsel %vm560, %v423, 0
        %v945 = vsel %vm560, %v425, 0
        %v947 = vsel %vm560, %v426, 0
        %v949 = vsel %vm560, %v427, 0
        %v951 = vsel %vm560, %v428, 0
        %v954 = vsel %vm625, %v436, 0
        %v957 = vsel %vm625, %v437, 0
        %959 = vmatprep.subr.mxu0 %v431
        %960 = vmatpush1.msra.mxu0 %v430
        %961 = vmatprep.subr.mxu0 %v433
        %962 = vmatpush1.msra.mxu0 %v432
        %963 = vmatprep.subr.mxu0 %v435
        %964 = vmatpush1.msra.mxu0 %v434
        %965 = vmatprep.subr.mxu0 %v957
        %966 = vmatpush1.msra.mxu0 %v954
        %967 = vmatprep.subr.mxu0 0.0
        %968 = vmatpush1.msra.mxu0 0.0
        %969 = vmatprep.subr.mxu0 0.0
        %970 = vmatpush1.msra.mxu0 0.0
        %971 = vmatprep.subr.mxu0 0.0
        %972 = vmatpush1.msra.mxu0 0.0
        %973 = vmatprep.subr.mxu0 0.0
        %974 = vmatpush1.msra.mxu0 0.0
        %975 = vmatprep.subr.mxu0 0.0
        %976 = vmatpush1.msra.mxu0 0.0
        %977 = vmatprep.subr.mxu0 0.0
        %978 = vmatpush1.msra.mxu0 0.0
        %979 = vmatprep.subr.mxu0 0.0
        %980 = vmatpush1.msra.mxu0 0.0
        %981 = vmatprep.subr.mxu0 0.0
        %982 = vmatpush1.msra.mxu0 0.0
        %983 = vmatprep.subr.mxu0 0.0
        %984 = vmatpush1.msra.mxu0 0.0
        %985 = vmatprep.subr.mxu0 0.0
        %986 = vmatpush1.msra.mxu0 0.0
        %987 = vmatprep.subr.mxu0 0.0
        %988 = vmatpush1.msra.mxu0 0.0
        %989 = vmatprep.subr.mxu0 0.0
        %990 = vmatpush1.msra.mxu0 0.0
        %991 = vmatprep.subr.mxu0 0.0
        %992 = vmatpush1.msra.mxu0 0.0
        %993 = vmatprep.subr.mxu0 0.0
        %994 = vmatpush1.msra.mxu0 0.0
        %995 = vmatprep.subr.mxu0 0.0
        %996 = vmatpush1.msra.mxu0 0.0
        %997 = vmatprep.subr.mxu0 0.0
        %998 = vmatpush1.msra.mxu0 0.0
        %999 = vmatprep.subr.mxu0 0.0
        %1000 = vmatpush1.msra.mxu0 0.0
        %1001 = vmatprep.subr.mxu0 0.0
        %1002 = vmatpush1.msra.mxu0 0.0
        %1003 = vmatprep.subr.mxu0 0.0
        %1004 = vmatpush1.msra.mxu0 0.0
        %1005 = vmatprep.subr.mxu0 0.0
        %1006 = vmatpush1.msra.mxu0 0.0
        %1007 = vmatprep.subr.mxu0 0.0
        %1008 = vmatpush1.msra.mxu0 0.0
        %1009 = vmatprep.subr.mxu0 0.0
        %1010 = vmatpush1.msra.mxu0 0.0
        %1011 = vmatprep.subr.mxu0 0.0
        %1012 = vmatpush1.msra.mxu0 0.0
        %1013 = vmatprep.subr.mxu0 0.0
        %1014 = vmatpush1.msra.mxu0 0.0
        %1015 = vmatprep.subr.mxu0 0.0
        %1016 = vmatpush1.msra.mxu0 0.0
        %1017 = vmatprep.subr.mxu0 0.0
        %1018 = vmatpush1.msra.mxu0 0.0
        %1019 = vmatprep.subr.mxu0 0.0
        %1020 = vmatpush1.msra.mxu0 0.0
        %1021 = vmatprep.subr.mxu0 0.0
        %1022 = vmatpush1.msra.mxu0 0.0
        %1023 = vmatprep.mubr.f32.mxu0 0.0
        %1024 = vmatmul.mubr.f32.gmra.mrb[0].mxu0 %v889
        %v1025 = vpop.f32.mrb[0].mxu0
        %v1026 = vadd.f32 %v699, %v1025
        %v1027 = vpop.f32.mrb[0].mxu0
        %v1028 = vadd.f32 %v701, %v1027
        %1029 = vmatprep.mubr.f32.mxu0 0.0
        %1030 = vmatmul.mubr.f32.gmra.mrb[0].mxu0 %v891
        %v1031 = vpop.f32.mrb[0].mxu0
        %v1032 = vadd.f32 %v705, %v1031
        %v1033 = vpop.f32.mrb[0].mxu0
        %v1034 = vadd.f32 %v707, %v1033
        %1035 = vmatprep.mubr.f32.mxu0 0.0
        %1036 = vmatmul.mubr.f32.gmra.mrb[0].mxu0 %v893
        %v1037 = vpop.f32.mrb[0].mxu0
        %v1038 = vadd.f32 %v711, %v1037
        %v1039 = vpop.f32.mrb[0].mxu0
        %v1040 = vadd.f32 %v713, %v1039
        %1041 = vmatprep.mubr.f32.mxu0 0.0
        %1042 = vmatmul.mubr.f32.gmra.mrb[0].mxu0 %v895
        %v1043 = vpop.f32.mrb[0].mxu0
        %v1044 = vadd.f32 %v717, %v1043
        %v1045 = vpop.f32.mrb[0].mxu0
        %v1046 = vadd.f32 %v719, %v1045
        %1047 = vmatprep.mubr.f32.mxu0 0.0
        %1048 = vmatmul.mubr.f32.gmra.mrb[0].mxu0 %v897
        %v1049 = vpop.f32.mrb[0].mxu0
        %v1050 = vadd.f32 %v723, %v1049
        %v1051 = vpop.f32.mrb[0].mxu0
        %v1052 = vadd.f32 %v725, %v1051
        %1053 = vmatprep.mubr.f32.mxu0 0.0
        %1054 = vmatmul.mubr.f32.gmra.mrb[0].mxu0 %v899
        %v1055 = vpop.f32.mrb[0].mxu0
        %v1056 = vadd.f32 %v729, %v1055
        %v1057 = vpop.f32.mrb[0].mxu0
        %v1058 = vadd.f32 %v731, %v1057
        %1059 = vmatprep.mubr.f32.mxu0 0.0
        %1060 = vmatmul.mubr.f32.gmra.mrb[0].mxu0 %v901
        %v1061 = vpop.f32.mrb[0].mxu0
        %v1062 = vadd.f32 %v735, %v1061
        %v1063 = vpop.f32.mrb[0].mxu0
        %v1064 = vadd.f32 %v737, %v1063
        %1065 = vmatprep.mubr.f32.mxu0 0.0
        %1066 = vmatmul.mubr.f32.gmra.mrb[0].mxu0 %v903
        %v1067 = vpop.f32.mrb[0].mxu0
        %v1068 = vadd.f32 %v741, %v1067
        %v1069 = vpop.f32.mrb[0].mxu0
        %v1070 = vadd.f32 %v743, %v1069
        %1071 = vmatprep.mubr.f32.mxu0 0.0
        %1072 = vmatmul.mubr.f32.gmra.mrb[0].mxu0 %v905
        %v1073 = vpop.f32.mrb[0].mxu0
        %v1074 = vadd.f32 %v747, %v1073
        %v1075 = vpop.f32.mrb[0].mxu0
        %v1076 = vadd.f32 %v749, %v1075
        %1077 = vmatprep.mubr.f32.mxu0 0.0
        %1078 = vmatmul.mubr.f32.gmra.mrb[0].mxu0 %v907
        %v1079 = vpop.f32.mrb[0].mxu0
        %v1080 = vadd.f32 %v753, %v1079
        %v1081 = vpop.f32.mrb[0].mxu0
        %v1082 = vadd.f32 %v755, %v1081
        %1083 = vmatprep.mubr.f32.mxu0 0.0
        %1084 = vmatmul.mubr.f32.gmra.mrb[0].mxu0 %v909
        %v1085 = vpop.f32.mrb[0].mxu0
        %v1086 = vadd.f32 %v759, %v1085
        %v1087 = vpop.f32.mrb[0].mxu0
        %v1088 = vadd.f32 %v761, %v1087
        %1089 = vmatprep.mubr.f32.mxu0 0.0
        %1090 = vmatmul.mubr.f32.gmra.mrb[0].mxu0 %v911
        %v1091 = vpop.f32.mrb[0].mxu0
        %v1092 = vadd.f32 %v765, %v1091
        %v1093 = vpop.f32.mrb[0].mxu0
        %v1094 = vadd.f32 %v767, %v1093
        %1095 = vmatprep.mubr.f32.mxu0 0.0
        %1096 = vmatmul.mubr.f32.gmra.mrb[0].mxu0 %v913
        %v1097 = vpop.f32.mrb[0].mxu0
        %v1098 = vadd.f32 %v771, %v1097
        %v1099 = vpop.f32.mrb[0].mxu0
        %v1100 = vadd.f32 %v773, %v1099
        %1101 = vmatprep.mubr.f32.mxu0 0.0
        %1102 = vmatmul.mubr.f32.gmra.mrb[0].mxu0 %v915
        %v1103 = vpop.f32.mrb[0].mxu0
        %v1104 = vadd.f32 %v777, %v1103
        %v1105 = vpop.f32.mrb[0].mxu0
        %v1106 = vadd.f32 %v779, %v1105
        %1107 = vmatprep.mubr.f32.mxu0 0.0
        %1108 = vmatmul.mubr.f32.gmra.mrb[0].mxu0 %v917
        %v1109 = vpop.f32.mrb[0].mxu0
        %v1110 = vadd.f32 %v783, %v1109
        %v1111 = vpop.f32.mrb[0].mxu0
        %v1112 = vadd.f32 %v785, %v1111
        %1113 = vmatprep.mubr.f32.mxu0 0.0
        %1114 = vmatmul.mubr.f32.gmra.mrb[0].mxu0 %v919
        %v1115 = vpop.f32.mrb[0].mxu0
        %v1116 = vadd.f32 %v789, %v1115
        %v1117 = vpop.f32.mrb[0].mxu0
        %v1118 = vadd.f32 %v791, %v1117
        %1119 = vmatprep.mubr.f32.mxu0 0.0
        %1120 = vmatmul.mubr.f32.gmra.mrb[0].mxu0 %v921
        %v1121 = vpop.f32.mrb[0].mxu0
        %v1122 = vadd.f32 %v795, %v1121
        %v1123 = vpop.f32.mrb[0].mxu0
        %v1124 = vadd.f32 %v797, %v1123
        %1125 = vmatprep.mubr.f32.mxu0 0.0
        %1126 = vmatmul.mubr.f32.gmra.mrb[0].mxu0 %v923
        %v1127 = vpop.f32.mrb[0].mxu0
        %v1128 = vadd.f32 %v801, %v1127
        %v1129 = vpop.f32.mrb[0].mxu0
        %v1130 = vadd.f32 %v803, %v1129
        %1131 = vmatprep.mubr.f32.mxu0 0.0
        %1132 = vmatmul.mubr.f32.gmra.mrb[0].mxu0 %v925
        %v1133 = vpop.f32.mrb[0].mxu0
        %v1134 = vadd.f32 %v807, %v1133
        %v1135 = vpop.f32.mrb[0].mxu0
        %v1136 = vadd.f32 %v809, %v1135
        %1137 = vmatprep.mubr.f32.mxu0 0.0
        %1138 = vmatmul.mubr.f32.gmra.mrb[0].mxu0 %v927
        %v1139 = vpop.f32.mrb[0].mxu0
        %v1140 = vadd.f32 %v813, %v1139
        %v1141 = vpop.f32.mrb[0].mxu0
        %v1142 = vadd.f32 %v815, %v1141
        %1143 = vmatprep.mubr.f32.mxu0 0.0
        %1144 = vmatmul.mubr.f32.gmra.mrb[0].mxu0 %v929
        %v1145 = vpop.f32.mrb[0].mxu0
        %v1146 = vadd.f32 %v819, %v1145
        %v1147 = vpop.f32.mrb[0].mxu0
        %v1148 = vadd.f32 %v821, %v1147
        %1149 = vmatprep.mubr.f32.mxu0 0.0
        %1150 = vmatmul.mubr.f32.gmra.mrb[0].mxu0 %v931
        %v1151 = vpop.f32.mrb[0].mxu0
        %v1152 = vadd.f32 %v825, %v1151
        %v1153 = vpop.f32.mrb[0].mxu0
        %v1154 = vadd.f32 %v827, %v1153
        %1155 = vmatprep.mubr.f32.mxu0 0.0
        %1156 = vmatmul.mubr.f32.gmra.mrb[0].mxu0 %v933
        %v1157 = vpop.f32.mrb[0].mxu0
        %v1158 = vadd.f32 %v831, %v1157
        %v1159 = vpop.f32.mrb[0].mxu0
        %v1160 = vadd.f32 %v833, %v1159
        %1161 = vmatprep.mubr.f32.mxu0 0.0
        %1162 = vmatmul.mubr.f32.gmra.mrb[0].mxu0 %v935
        %v1163 = vpop.f32.mrb[0].mxu0
        %v1164 = vadd.f32 %v837, %v1163
        %v1165 = vpop.f32.mrb[0].mxu0
        %v1166 = vadd.f32 %v839, %v1165
        %1167 = vmatprep.mubr.f32.mxu0 0.0
        %1168 = vmatmul.mubr.f32.gmra.mrb[0].mxu0 %v937
        %v1169 = vpop.f32.mrb[0].mxu0
        %v1170 = vadd.f32 %v843, %v1169
        %v1171 = vpop.f32.mrb[0].mxu0
        %v1172 = vadd.f32 %v845, %v1171
        %1173 = vmatprep.mubr.f32.mxu0 0.0
        %1174 = vmatmul.mubr.f32.gmra.mrb[0].mxu0 %v939
        %v1175 = vpop.f32.mrb[0].mxu0
        %v1176 = vadd.f32 %v849, %v1175
        %v1177 = vpop.f32.mrb[0].mxu0
        %v1178 = vadd.f32 %v851, %v1177
        %1179 = vmatprep.mubr.f32.mxu0 0.0
        %1180 = vmatmul.mubr.f32.gmra.mrb[0].mxu0 %v941
        %v1181 = vpop.f32.mrb[0].mxu0
        %v1182 = vadd.f32 %v855, %v1181
        %v1183 = vpop.f32.mrb[0].mxu0
        %v1184 = vadd.f32 %v857, %v1183
        %1185 = vmatprep.mubr.f32.mxu0 0.0
        %1186 = vmatmul.mubr.f32.gmra.mrb[0].mxu0 %v943
        %v1187 = vpop.f32.mrb[0].mxu0
        %v1188 = vadd.f32 %v861, %v1187
        %v1189 = vpop.f32.mrb[0].mxu0
        %v1190 = vadd.f32 %v863, %v1189
        %1191 = vmatprep.mubr.f32.mxu0 0.0
        %1192 = vmatmul.mubr.f32.gmra.mrb[0].mxu0 %v945
        %v1193 = vpop.f32.mrb[0].mxu0
        %v1194 = vadd.f32 %v867, %v1193
        %v1195 = vpop.f32.mrb[0].mxu0
        %v1196 = vadd.f32 %v869, %v1195
        %1197 = vmatprep.mubr.f32.mxu0 0.0
        %1198 = vmatmul.mubr.f32.gmra.mrb[0].mxu0 %v947
        %v1199 = vpop.f32.mrb[0].mxu0
        %v1200 = vadd.f32 %v873, %v1199
        %v1201 = vpop.f32.mrb[0].mxu0
        %v1202 = vadd.f32 %v875, %v1201
        %1203 = vmatprep.mubr.f32.mxu0 0.0
        %1204 = vmatmul.mubr.f32.gmra.mrb[0].mxu0 %v949
        %v1205 = vpop.f32.mrb[0].mxu0
        %v1206 = vadd.f32 %v879, %v1205
        %v1207 = vpop.f32.mrb[0].mxu0
        %v1208 = vadd.f32 %v881, %v1207
        %1209 = vmatprep.mubr.f32.mxu0 0.0
        %1210 = vmatmul.mubr.f32.gmra.mrb[0].mxu0 %v951
        %v1211 = vpop.f32.mrb[0].mxu0
        %v1212 = vadd.f32 %v885, %v1211
        %v1213 = vpop.f32.mrb[0].mxu0
        %v1214 = vadd.f32 %v887, %v1213
        %1215 = vdwg.mxu0
        %vm1216 = vcmask 1045504
        %v1217 = vrot.slane %v390, 2
        %v1218 = vrot.slane %v391, 2
        %v1219 = vsel %vm1216, %v1217, %v1218
        %v1220 = vrot.slane %v392, 2
        %v1221 = vsel %vm1216, %v1218, %v1220
        %v1222 = vrot.slane %v393, 2
        %v1223 = vsel %vm1216, %v1220, %v1222
        %v1224 = vrot.slane %v394, 2
        %v1225 = vsel %vm1216, %v1222, %v1224
        %v1226 = vrot.slane %v395, 2
        %v1227 = vrot.slane %v396, 2
        %v1228 = vsel %vm1216, %v1226, %v1227
        %v1229 = vrot.slane %v397, 2
        %v1230 = vsel %vm1216, %v1227, %v1229
        %v1231 = vrot.slane %v398, 2
        %v1232 = vsel %vm1216, %v1229, %v1231
        %v1233 = vrot.slane %v399, 2
        %v1234 = vsel %vm1216, %v1231, %v1233
        %v1235 = vrot.slane %v400, 2
        %v1236 = vrot.slane %v401, 2
        %v1237 = vsel %vm1216, %v1235, %v1236
        %v1238 = vrot.slane %v402, 2
        %v1239 = vsel %vm1216, %v1236, %v1238
        %v1240 = vrot.slane %v403, 2
        %v1241 = vsel %vm1216, %v1238, %v1240
        %v1242 = vrot.slane %v404, 2
        %v1243 = vsel %vm1216, %v1240, %v1242
        %v1244 = vrot.slane %v405, 2
        %v1245 = vrot.slane %v406, 2
        %v1246 = vsel %vm1216, %v1244, %v1245
        %v1247 = vrot.slane %v407, 2
        %v1248 = vsel %vm1216, %v1245, %v1247
        %v1249 = vrot.slane %v408, 2
        %v1250 = vsel %vm1216, %v1247, %v1249
        %v1251 = vrot.slane %v409, 2
        %v1252 = vsel %vm1216, %v1249, %v1251
        %v1253 = vrot.slane %v410, 2
        %v1254 = vrot.slane %v411, 2
        %v1255 = vsel %vm1216, %v1253, %v1254
        %v1256 = vrot.slane %v412, 2
        %v1257 = vsel %vm1216, %v1254, %v1256
        %v1258 = vrot.slane %v413, 2
        %v1259 = vsel %vm1216, %v1256, %v1258
        %v1260 = vrot.slane %v414, 2
        %v1261 = vsel %vm1216, %v1258, %v1260
        %v1262 = vrot.slane %v415, 2
        %v1263 = vrot.slane %v416, 2
        %v1264 = vsel %vm1216, %v1262, %v1263
        %v1265 = vrot.slane %v417, 2
        %v1266 = vsel %vm1216, %v1263, %v1265
        %v1267 = vrot.slane %v418, 2
        %v1268 = vsel %vm1216, %v1265, %v1267
        %v1269 = vrot.slane %v419, 2
        %v1270 = vsel %vm1216, %v1267, %v1269
        %v1271 = vrot.slane %v420, 2
        %v1272 = vrot.slane %v421, 2
        %v1273 = vsel %vm1216, %v1271, %v1272
        %v1274 = vrot.slane %v422, 2
        %v1275 = vsel %vm1216, %v1272, %v1274
        %v1276 = vrot.slane %v423, 2
        %v1277 = vsel %vm1216, %v1274, %v1276
        %v1278 = vrot.slane %v424, 2
        %v1279 = vsel %vm1216, %v1276, %v1278
        %v1280 = vrot.slane %v425, 2
        %v1281 = vrot.slane %v426, 2
        %v1282 = vsel %vm1216, %v1280, %v1281
        %v1283 = vrot.slane %v427, 2
        %v1284 = vsel %vm1216, %v1281, %v1283
        %v1285 = vrot.slane %v428, 2
        %v1286 = vsel %vm1216, %v1283, %v1285
        %v1287 = vrot.slane %v429, 2
        %v1288 = vsel %vm1216, %v1285, %v1287
        %s1289 = scalar_lea.vmem %s1, 128
        %v1290 = vld [vmem:[%s1289] sm:$0xff]
        %v1291 = vld [vmem:[%s1289 + $0x8] sm:$0xff]
        %v1292 = vld [vmem:[%s1289 + $0x10] sm:$0xff]
        %v1293 = vld [vmem:[%s1289 + $0x18] sm:$0xff]
        %v1294 = vld [vmem:[%s1289 + $0x20] sm:$0xff]
        %v1295 = vld [vmem:[%s1289 + $0x28] sm:$0xff]
        %v1296 = vld [vmem:[%s1289 + $0x30] sm:$0xf]
        %v1297 = vld [vmem:[%s1289 + $0x38] sm:$0xf]
        %v1298 = vsel %vm560, %v1219, 0
        %v1300 = vsel %vm560, %v1221, 0
        %v1302 = vsel %vm560, %v1223, 0
        %v1304 = vsel %vm560, %v1225, 0
        %v1306 = vsel %vm560, %v1228, 0
        %v1308 = vsel %vm560, %v1230, 0
        %v1310 = vsel %vm560, %v1232, 0
        %v1312 = vsel %vm560, %v1234, 0
        %v1314 = vsel %vm560, %v1237, 0
        %v1316 = vsel %vm560, %v1239, 0
        %v1318 = vsel %vm560, %v1241, 0
        %v1320 = vsel %vm560, %v1243, 0
        %v1322 = vsel %vm560, %v1246, 0
        %v1324 = vsel %vm560, %v1248, 0
        %v1326 = vsel %vm560, %v1250, 0
        %v1328 = vsel %vm560, %v1252, 0
        %v1330 = vsel %vm560, %v1255, 0
        %v1332 = vsel %vm560, %v1257, 0
        %v1334 = vsel %vm560, %v1259, 0
        %v1336 = vsel %vm560, %v1261, 0
        %v1338 = vsel %vm560, %v1264, 0
        %v1340 = vsel %vm560, %v1266, 0
        %v1342 = vsel %vm560, %v1268, 0
        %v1344 = vsel %vm560, %v1270, 0
        %v1346 = vsel %vm560, %v1273, 0
        %v1348 = vsel %vm560, %v1275, 0
        %v1350 = vsel %vm560, %v1277, 0
        %v1352 = vsel %vm560, %v1279, 0
        %v1354 = vsel %vm560, %v1282, 0
        %v1356 = vsel %vm560, %v1284, 0
        %v1358 = vsel %vm560, %v1286, 0
        %v1360 = vsel %vm560, %v1288, 0
        %v1363 = vsel %vm625, %v1296, 0
        %v1366 = vsel %vm625, %v1297, 0
        %1368 = vmatprep.subr.mxu0 %v1291
        %1369 = vmatpush1.msra.mxu0 %v1290
        %1370 = vmatprep.subr.mxu0 %v1293
        %1371 = vmatpush1.msra.mxu0 %v1292
        %1372 = vmatprep.subr.mxu0 %v1295
        %1373 = vmatpush1.msra.mxu0 %v1294
        %1374 = vmatprep.subr.mxu0 %v1366
        %1375 = vmatpush1.msra.mxu0 %v1363
        %1376 = vmatprep.subr.mxu0 0.0
        %1377 = vmatpush1.msra.mxu0 0.0
        %1378 = vmatprep.subr.mxu0 0.0
        %1379 = vmatpush1.msra.mxu0 0.0
        %1380 = vmatprep.subr.mxu0 0.0
        %1381 = vmatpush1.msra.mxu0 0.0
        %1382 = vmatprep.subr.mxu0 0.0
        %1383 = vmatpush1.msra.mxu0 0.0
        %1384 = vmatprep.subr.mxu0 0.0
        %1385 = vmatpush1.msra.mxu0 0.0
        %1386 = vmatprep.subr.mxu0 0.0
        %1387 = vmatpush1.msra.mxu0 0.0
        %1388 = vmatprep.subr.mxu0 0.0
        %1389 = vmatpush1.msra.mxu0 0.0
        %1390 = vmatprep.subr.mxu0 0.0
        %1391 = vmatpush1.msra.mxu0 0.0
        %1392 = vmatprep.subr.mxu0 0.0
        %1393 = vmatpush1.msra.mxu0 0.0
        %1394 = vmatprep.subr.mxu0 0.0
        %1395 = vmatpush1.msra.mxu0 0.0
        %1396 = vmatprep.subr.mxu0 0.0
        %1397 = vmatpush1.msra.mxu0 0.0
        %1398 = vmatprep.subr.mxu0 0.0
        %1399 = vmatpush1.msra.mxu0 0.0
        %1400 = vmatprep.subr.mxu0 0.0
        %1401 = vmatpush1.msra.mxu0 0.0
        %1402 = vmatprep.subr.mxu0 0.0
        %1403 = vmatpush1.msra.mxu0 0.0
        %1404 = vmatprep.subr.mxu0 0.0
        %1405 = vmatpush1.msra.mxu0 0.0
        %1406 = vmatprep.subr.mxu0 0.0
        %1407 = vmatpush1.msra.mxu0 0.0
        %1408 = vmatprep.subr.mxu0 0.0
        %1409 = vmatpush1.msra.mxu0 0.0
        %1410 = vmatprep.subr.mxu0 0.0
        %1411 = vmatpush1.msra.mxu0 0.0
        %1412 = vmatprep.subr.mxu0 0.0
        %1413 = vmatpush1.msra.mxu0 0.0
        %1414 = vmatprep.subr.mxu0 0.0
        %1415 = vmatpush1.msra.mxu0 0.0
        %1416 = vmatprep.subr.mxu0 0.0
        %1417 = vmatpush1.msra.mxu0 0.0
        %1418 = vmatprep.subr.mxu0 0.0
        %1419 = vmatpush1.msra.mxu0 0.0
        %1420 = vmatprep.subr.mxu0 0.0
        %1421 = vmatpush1.msra.mxu0 0.0
        %1422 = vmatprep.subr.mxu0 0.0
        %1423 = vmatpush1.msra.mxu0 0.0
        %1424 = vmatprep.subr.mxu0 0.0
        %1425 = vmatpush1.msra.mxu0 0.0
        %1426 = vmatprep.subr.mxu0 0.0
        %1427 = vmatpush1.msra.mxu0 0.0
        %1428 = vmatprep.subr.mxu0 0.0
        %1429 = vmatpush1.msra.mxu0 0.0
        %1430 = vmatprep.subr.mxu0 0.0
        %1431 = vmatpush1.msra.mxu0 0.0
        %1432 = vmatprep.mubr.f32.mxu0 0.0
        %1433 = vmatmul.mubr.f32.gmra.mrb[0].mxu0 %v1298
        %v1434 = vpop.f32.mrb[0].mxu0
        %v1435 = vadd.f32 0.0, %v1434
        %v1436 = vpop.f32.mrb[0].mxu0
        %v1437 = vadd.f32 0.0, %v1436
        %1438 = vmatprep.mubr.f32.mxu0 0.0
        %1439 = vmatmul.mubr.f32.gmra.mrb[0].mxu0 %v1300
        %v1440 = vpop.f32.mrb[0].mxu0
        %v1441 = vadd.f32 0.0, %v1440
        %v1442 = vpop.f32.mrb[0].mxu0
        %v1443 = vadd.f32 0.0, %v1442
        %1444 = vmatprep.mubr.f32.mxu0 0.0
        %1445 = vmatmul.mubr.f32.gmra.mrb[0].mxu0 %v1302
        %v1446 = vpop.f32.mrb[0].mxu0
        %v1447 = vadd.f32 0.0, %v1446
        %v1448 = vpop.f32.mrb[0].mxu0
        %v1449 = vadd.f32 0.0, %v1448
        %1450 = vmatprep.mubr.f32.mxu0 0.0
        %1451 = vmatmul.mubr.f32.gmra.mrb[0].mxu0 %v1304
        %v1452 = vpop.f32.mrb[0].mxu0
        %v1453 = vadd.f32 0.0, %v1452
        %v1454 = vpop.f32.mrb[0].mxu0
        %v1455 = vadd.f32 0.0, %v1454
        %1456 = vmatprep.mubr.f32.mxu0 0.0
        %1457 = vmatmul.mubr.f32.gmra.mrb[0].mxu0 %v1306
        %v1458 = vpop.f32.mrb[0].mxu0
        %v1459 = vadd.f32 0.0, %v1458
        %v1460 = vpop.f32.mrb[0].mxu0
        %v1461 = vadd.f32 0.0, %v1460
        %1462 = vmatprep.mubr.f32.mxu0 0.0
        %1463 = vmatmul.mubr.f32.gmra.mrb[0].mxu0 %v1308
        %v1464 = vpop.f32.mrb[0].mxu0
        %v1465 = vadd.f32 0.0, %v1464
        %v1466 = vpop.f32.mrb[0].mxu0
        %v1467 = vadd.f32 0.0, %v1466
        %1468 = vmatprep.mubr.f32.mxu0 0.0
        %1469 = vmatmul.mubr.f32.gmra.mrb[0].mxu0 %v1310
        %v1470 = vpop.f32.mrb[0].mxu0
        %v1471 = vadd.f32 0.0, %v1470
        %v1472 = vpop.f32.mrb[0].mxu0
        %v1473 = vadd.f32 0.0, %v1472
        %1474 = vmatprep.mubr.f32.mxu0 0.0
        %1475 = vmatmul.mubr.f32.gmra.mrb[0].mxu0 %v1312
        %v1476 = vpop.f32.mrb[0].mxu0
        %v1477 = vadd.f32 0.0, %v1476
        %v1478 = vpop.f32.mrb[0].mxu0
        %v1479 = vadd.f32 0.0, %v1478
        %1480 = vmatprep.mubr.f32.mxu0 0.0
        %1481 = vmatmul.mubr.f32.gmra.mrb[0].mxu0 %v1314
        %v1482 = vpop.f32.mrb[0].mxu0
        %v1483 = vadd.f32 0.0, %v1482
        %v1484 = vpop.f32.mrb[0].mxu0
        %v1485 = vadd.f32 0.0, %v1484
        %1486 = vmatprep.mubr.f32.mxu0 0.0
        %1487 = vmatmul.mubr.f32.gmra.mrb[0].mxu0 %v1316
        %v1488 = vpop.f32.mrb[0].mxu0
        %v1489 = vadd.f32 0.0, %v1488
        %v1490 = vpop.f32.mrb[0].mxu0
        %v1491 = vadd.f32 0.0, %v1490
        %1492 = vmatprep.mubr.f32.mxu0 0.0
        %1493 = vmatmul.mubr.f32.gmra.mrb[0].mxu0 %v1318
        %v1494 = vpop.f32.mrb[0].mxu0
        %v1495 = vadd.f32 0.0, %v1494
        %v1496 = vpop.f32.mrb[0].mxu0
        %v1497 = vadd.f32 0.0, %v1496
        %1498 = vmatprep.mubr.f32.mxu0 0.0
        %1499 = vmatmul.mubr.f32.gmra.mrb[0].mxu0 %v1320
        %v1500 = vpop.f32.mrb[0].mxu0
        %v1501 = vadd.f32 0.0, %v1500
        %v1502 = vpop.f32.mrb[0].mxu0
        %v1503 = vadd.f32 0.0, %v1502
        %1504 = vmatprep.mubr.f32.mxu0 0.0
        %1505 = vmatmul.mubr.f32.gmra.mrb[0].mxu0 %v1322
        %v1506 = vpop.f32.mrb[0].mxu0
        %v1507 = vadd.f32 0.0, %v1506
        %v1508 = vpop.f32.mrb[0].mxu0
        %v1509 = vadd.f32 0.0, %v1508
        %1510 = vmatprep.mubr.f32.mxu0 0.0
        %1511 = vmatmul.mubr.f32.gmra.mrb[0].mxu0 %v1324
        %v1512 = vpop.f32.mrb[0].mxu0
        %v1513 = vadd.f32 0.0, %v1512
        %v1514 = vpop.f32.mrb[0].mxu0
        %v1515 = vadd.f32 0.0, %v1514
        %1516 = vmatprep.mubr.f32.mxu0 0.0
        %1517 = vmatmul.mubr.f32.gmra.mrb[0].mxu0 %v1326
        %v1518 = vpop.f32.mrb[0].mxu0
        %v1519 = vadd.f32 0.0, %v1518
        %v1520 = vpop.f32.mrb[0].mxu0
        %v1521 = vadd.f32 0.0, %v1520
        %1522 = vmatprep.mubr.f32.mxu0 0.0
        %1523 = vmatmul.mubr.f32.gmra.mrb[0].mxu0 %v1328
        %v1524 = vpop.f32.mrb[0].mxu0
        %v1525 = vadd.f32 0.0, %v1524
        %v1526 = vpop.f32.mrb[0].mxu0
        %v1527 = vadd.f32 0.0, %v1526
        %1528 = vmatprep.mubr.f32.mxu0 0.0
        %1529 = vmatmul.mubr.f32.gmra.mrb[0].mxu0 %v1330
        %v1530 = vpop.f32.mrb[0].mxu0
        %v1531 = vadd.f32 0.0, %v1530
        %v1532 = vpop.f32.mrb[0].mxu0
        %v1533 = vadd.f32 0.0, %v1532
        %1534 = vmatprep.mubr.f32.mxu0 0.0
        %1535 = vmatmul.mubr.f32.gmra.mrb[0].mxu0 %v1332
        %v1536 = vpop.f32.mrb[0].mxu0
        %v1537 = vadd.f32 0.0, %v1536
        %v1538 = vpop.f32.mrb[0].mxu0
        %v1539 = vadd.f32 0.0, %v1538
        %1540 = vmatprep.mubr.f32.mxu0 0.0
        %1541 = vmatmul.mubr.f32.gmra.mrb[0].mxu0 %v1334
        %v1542 = vpop.f32.mrb[0].mxu0
        %v1543 = vadd.f32 0.0, %v1542
        %v1544 = vpop.f32.mrb[0].mxu0
        %v1545 = vadd.f32 0.0, %v1544
        %1546 = vmatprep.mubr.f32.mxu0 0.0
        %1547 = vmatmul.mubr.f32.gmra.mrb[0].mxu0 %v1336
        %v1548 = vpop.f32.mrb[0].mxu0
        %v1549 = vadd.f32 0.0, %v1548
        %v1550 = vpop.f32.mrb[0].mxu0
        %v1551 = vadd.f32 0.0, %v1550
        %1552 = vmatprep.mubr.f32.mxu0 0.0
        %1553 = vmatmul.mubr.f32.gmra.mrb[0].mxu0 %v1338
        %v1554 = vpop.f32.mrb[0].mxu0
        %v1555 = vadd.f32 0.0, %v1554
        %v1556 = vpop.f32.mrb[0].mxu0
        %v1557 = vadd.f32 0.0, %v1556
        %1558 = vmatprep.mubr.f32.mxu0 0.0
        %1559 = vmatmul.mubr.f32.gmra.mrb[0].mxu0 %v1340
        %v1560 = vpop.f32.mrb[0].mxu0
        %v1561 = vadd.f32 0.0, %v1560
        %v1562 = vpop.f32.mrb[0].mxu0
        %v1563 = vadd.f32 0.0, %v1562
        %1564 = vmatprep.mubr.f32.mxu0 0.0
        %1565 = vmatmul.mubr.f32.gmra.mrb[0].mxu0 %v1342
        %v1566 = vpop.f32.mrb[0].mxu0
        %v1567 = vadd.f32 0.0, %v1566
        %v1568 = vpop.f32.mrb[0].mxu0
        %v1569 = vadd.f32 0.0, %v1568
        %1570 = vmatprep.mubr.f32.mxu0 0.0
        %1571 = vmatmul.mubr.f32.gmra.mrb[0].mxu0 %v1344
        %v1572 = vpop.f32.mrb[0].mxu0
        %v1573 = vadd.f32 0.0, %v1572
        %v1574 = vpop.f32.mrb[0].mxu0
        %v1575 = vadd.f32 0.0, %v1574
        %1576 = vmatprep.mubr.f32.mxu0 0.0
        %1577 = vmatmul.mubr.f32.gmra.mrb[0].mxu0 %v1346
        %v1578 = vpop.f32.mrb[0].mxu0
        %v1579 = vadd.f32 0.0, %v1578
        %v1580 = vpop.f32.mrb[0].mxu0
        %v1581 = vadd.f32 0.0, %v1580
        %1582 = vmatprep.mubr.f32.mxu0 0.0
        %1583 = vmatmul.mubr.f32.gmra.mrb[0].mxu0 %v1348
        %v1584 = vpop.f32.mrb[0].mxu0
        %v1585 = vadd.f32 0.0, %v1584
        %v1586 = vpop.f32.mrb[0].mxu0
        %v1587 = vadd.f32 0.0, %v1586
        %1588 = vmatprep.mubr.f32.mxu0 0.0
        %1589 = vmatmul.mubr.f32.gmra.mrb[0].mxu0 %v1350
        %v1590 = vpop.f32.mrb[0].mxu0
        %v1591 = vadd.f32 0.0, %v1590
        %v1592 = vpop.f32.mrb[0].mxu0
        %v1593 = vadd.f32 0.0, %v1592
        %1594 = vmatprep.mubr.f32.mxu0 0.0
        %1595 = vmatmul.mubr.f32.gmra.mrb[0].mxu0 %v1352
        %v1596 = vpop.f32.mrb[0].mxu0
        %v1597 = vadd.f32 0.0, %v1596
        %v1598 = vpop.f32.mrb[0].mxu0
        %v1599 = vadd.f32 0.0, %v1598
        %1600 = vmatprep.mubr.f32.mxu0 0.0
        %1601 = vmatmul.mubr.f32.gmra.mrb[0].mxu0 %v1354
        %v1602 = vpop.f32.mrb[0].mxu0
        %v1603 = vadd.f32 0.0, %v1602
        %v1604 = vpop.f32.mrb[0].mxu0
        %v1605 = vadd.f32 0.0, %v1604
        %1606 = vmatprep.mubr.f32.mxu0 0.0
        %1607 = vmatmul.mubr.f32.gmra.mrb[0].mxu0 %v1356
        %v1608 = vpop.f32.mrb[0].mxu0
        %v1609 = vadd.f32 0.0, %v1608
        %v1610 = vpop.f32.mrb[0].mxu0
        %v1611 = vadd.f32 0.0, %v1610
        %1612 = vmatprep.mubr.f32.mxu0 0.0
        %1613 = vmatmul.mubr.f32.gmra.mrb[0].mxu0 %v1358
        %v1614 = vpop.f32.mrb[0].mxu0
        %v1615 = vadd.f32 0.0, %v1614
        %v1616 = vpop.f32.mrb[0].mxu0
        %v1617 = vadd.f32 0.0, %v1616
        %1618 = vmatprep.mubr.f32.mxu0 0.0
        %1619 = vmatmul.mubr.f32.gmra.mrb[0].mxu0 %v1360
        %v1620 = vpop.f32.mrb[0].mxu0
        %v1621 = vadd.f32 0.0, %v1620
        %v1622 = vpop.f32.mrb[0].mxu0
        %v1623 = vadd.f32 0.0, %v1622
        %1624 = vdwg.mxu0
        %v1625 = vadd.f32 %v1026, %v1435
        %v1626 = vadd.f32 %v1028, %v1437
        %v1627 = vadd.f32 %v1032, %v1441
        %v1628 = vadd.f32 %v1034, %v1443
        %v1629 = vadd.f32 %v1038, %v1447
        %v1630 = vadd.f32 %v1040, %v1449
        %v1631 = vadd.f32 %v1044, %v1453
        %v1632 = vadd.f32 %v1046, %v1455
        %v1633 = vadd.f32 %v1050, %v1459
        %v1634 = vadd.f32 %v1052, %v1461
        %v1635 = vadd.f32 %v1056, %v1465
        %v1636 = vadd.f32 %v1058, %v1467
        %v1637 = vadd.f32 %v1062, %v1471
        %v1638 = vadd.f32 %v1064, %v1473
        %v1639 = vadd.f32 %v1068, %v1477
        %v1640 = vadd.f32 %v1070, %v1479
        %v1641 = vadd.f32 %v1074, %v1483
        %v1642 = vadd.f32 %v1076, %v1485
        %v1643 = vadd.f32 %v1080, %v1489
        %v1644 = vadd.f32 %v1082, %v1491
        %v1645 = vadd.f32 %v1086, %v1495
        %v1646 = vadd.f32 %v1088, %v1497
        %v1647 = vadd.f32 %v1092, %v1501
        %v1648 = vadd.f32 %v1094, %v1503
        %v1649 = vadd.f32 %v1098, %v1507
        %v1650 = vadd.f32 %v1100, %v1509
        %v1651 = vadd.f32 %v1104, %v1513
        %v1652 = vadd.f32 %v1106, %v1515
        %v1653 = vadd.f32 %v1110, %v1519
        %v1654 = vadd.f32 %v1112, %v1521
        %v1655 = vadd.f32 %v1116, %v1525
        %v1656 = vadd.f32 %v1118, %v1527
        %v1657 = vadd.f32 %v1122, %v1531
        %v1658 = vadd.f32 %v1124, %v1533
        %v1659 = vadd.f32 %v1128, %v1537
        %v1660 = vadd.f32 %v1130, %v1539
        %v1661 = vadd.f32 %v1134, %v1543
        %v1662 = vadd.f32 %v1136, %v1545
        %v1663 = vadd.f32 %v1140, %v1549
        %v1664 = vadd.f32 %v1142, %v1551
        %v1665 = vadd.f32 %v1146, %v1555
        %v1666 = vadd.f32 %v1148, %v1557
        %v1667 = vadd.f32 %v1152, %v1561
        %v1668 = vadd.f32 %v1154, %v1563
        %v1669 = vadd.f32 %v1158, %v1567
        %v1670 = vadd.f32 %v1160, %v1569
        %v1671 = vadd.f32 %v1164, %v1573
        %v1672 = vadd.f32 %v1166, %v1575
        %v1673 = vadd.f32 %v1170, %v1579
        %v1674 = vadd.f32 %v1172, %v1581
        %v1675 = vadd.f32 %v1176, %v1585
        %v1676 = vadd.f32 %v1178, %v1587
        %v1677 = vadd.f32 %v1182, %v1591
        %v1678 = vadd.f32 %v1184, %v1593
        %v1679 = vadd.f32 %v1188, %v1597
        %v1680 = vadd.f32 %v1190, %v1599
        %v1681 = vadd.f32 %v1194, %v1603
        %v1682 = vadd.f32 %v1196, %v1605
        %v1683 = vadd.f32 %v1200, %v1609
        %v1684 = vadd.f32 %v1202, %v1611
        %v1685 = vadd.f32 %v1206, %v1615
        %v1686 = vadd.f32 %v1208, %v1617
        %v1687 = vadd.f32 %v1212, %v1621
        %v1688 = vadd.f32 %v1214, %v1623
        %vm1689 = vcmask 1044480
        %v1690 = vrot.slane %v390, 3
        %v1691 = vrot.slane %v391, 3
        %v1692 = vsel %vm1689, %v1690, %v1691
        %v1693 = vrot.slane %v392, 3
        %v1694 = vsel %vm1689, %v1691, %v1693
        %v1695 = vrot.slane %v393, 3
        %v1696 = vsel %vm1689, %v1693, %v1695
        %v1697 = vrot.slane %v394, 3
        %v1698 = vsel %vm1689, %v1695, %v1697
        %v1699 = vrot.slane %v395, 3
        %v1700 = vrot.slane %v396, 3
        %v1701 = vsel %vm1689, %v1699, %v1700
        %v1702 = vrot.slane %v397, 3
        %v1703 = vsel %vm1689, %v1700, %v1702
        %v1704 = vrot.slane %v398, 3
        %v1705 = vsel %vm1689, %v1702, %v1704
        %v1706 = vrot.slane %v399, 3
        %v1707 = vsel %vm1689, %v1704, %v1706
        %v1708 = vrot.slane %v400, 3
        %v1709 = vrot.slane %v401, 3
        %v1710 = vsel %vm1689, %v1708, %v1709
        %v1711 = vrot.slane %v402, 3
        %v1712 = vsel %vm1689, %v1709, %v1711
        %v1713 = vrot.slane %v403, 3
        %v1714 = vsel %vm1689, %v1711, %v1713
        %v1715 = vrot.slane %v404, 3
        %v1716 = vsel %vm1689, %v1713, %v1715
        %v1717 = vrot.slane %v405, 3
        %v1718 = vrot.slane %v406, 3
        %v1719 = vsel %vm1689, %v1717, %v1718
        %v1720 = vrot.slane %v407, 3
        %v1721 = vsel %vm1689, %v1718, %v1720
        %v1722 = vrot.slane %v408, 3
        %v1723 = vsel %vm1689, %v1720, %v1722
        %v1724 = vrot.slane %v409, 3
        %v1725 = vsel %vm1689, %v1722, %v1724
        %v1726 = vrot.slane %v410, 3
        %v1727 = vrot.slane %v411, 3
        %v1728 = vsel %vm1689, %v1726, %v1727
        %v1729 = vrot.slane %v412, 3
        %v1730 = vsel %vm1689, %v1727, %v1729
        %v1731 = vrot.slane %v413, 3
        %v1732 = vsel %vm1689, %v1729, %v1731
        %v1733 = vrot.slane %v414, 3
        %v1734 = vsel %vm1689, %v1731, %v1733
        %v1735 = vrot.slane %v415, 3
        %v1736 = vrot.slane %v416, 3
        %v1737 = vsel %vm1689, %v1735, %v1736
        %v1738 = vrot.slane %v417, 3
        %v1739 = vsel %vm1689, %v1736, %v1738
        %v1740 = vrot.slane %v418, 3
        %v1741 = vsel %vm1689, %v1738, %v1740
        %v1742 = vrot.slane %v419, 3
        %v1743 = vsel %vm1689, %v1740, %v1742
        %v1744 = vrot.slane %v420, 3
        %v1745 = vrot.slane %v421, 3
        %v1746 = vsel %vm1689, %v1744, %v1745
        %v1747 = vrot.slane %v422, 3
        %v1748 = vsel %vm1689, %v1745, %v1747
        %v1749 = vrot.slane %v423, 3
        %v1750 = vsel %vm1689, %v1747, %v1749
        %v1751 = vrot.slane %v424, 3
        %v1752 = vsel %vm1689, %v1749, %v1751
        %v1753 = vrot.slane %v425, 3
        %v1754 = vrot.slane %v426, 3
        %v1755 = vsel %vm1689, %v1753, %v1754
        %v1756 = vrot.slane %v427, 3
        %v1757 = vsel %vm1689, %v1754, %v1756
        %v1758 = vrot.slane %v428, 3
        %v1759 = vsel %vm1689, %v1756, %v1758
        %v1760 = vrot.slane %v429, 3
        %v1761 = vsel %vm1689, %v1758, %v1760
        %s1762 = scalar_lea.vmem %s1, 192
        %v1763 = vld [vmem:[%s1762] sm:$0xff]
        %v1764 = vld [vmem:[%s1762 + $0x8] sm:$0xff]
        %v1765 = vld [vmem:[%s1762 + $0x10] sm:$0xff]
        %v1766 = vld [vmem:[%s1762 + $0x18] sm:$0xff]
        %v1767 = vld [vmem:[%s1762 + $0x20] sm:$0xff]
        %v1768 = vld [vmem:[%s1762 + $0x28] sm:$0xff]
        %v1769 = vld [vmem:[%s1762 + $0x30] sm:$0xf]
        %v1770 = vld [vmem:[%s1762 + $0x38] sm:$0xf]
        %v1771 = vsel %vm560, %v1692, 0
        %v1773 = vsel %vm560, %v1694, 0
        %v1775 = vsel %vm560, %v1696, 0
        %v1777 = vsel %vm560, %v1698, 0
        %v1779 = vsel %vm560, %v1701, 0
        %v1781 = vsel %vm560, %v1703, 0
        %v1783 = vsel %vm560, %v1705, 0
        %v1785 = vsel %vm560, %v1707, 0
        %v1787 = vsel %vm560, %v1710, 0
        %v1789 = vsel %vm560, %v1712, 0
        %v1791 = vsel %vm560, %v1714, 0
        %v1793 = vsel %vm560, %v1716, 0
        %v1795 = vsel %vm560, %v1719, 0
        %v1797 = vsel %vm560, %v1721, 0
        %v1799 = vsel %vm560, %v1723, 0
        %v1801 = vsel %vm560, %v1725, 0
        %v1803 = vsel %vm560, %v1728, 0
        %v1805 = vsel %vm560, %v1730, 0
        %v1807 = vsel %vm560, %v1732, 0
        %v1809 = vsel %vm560, %v1734, 0
        %v1811 = vsel %vm560, %v1737, 0
        %v1813 = vsel %vm560, %v1739, 0
        %v1815 = vsel %vm560, %v1741, 0
        %v1817 = vsel %vm560, %v1743, 0
        %v1819 = vsel %vm560, %v1746, 0
        %v1821 = vsel %vm560, %v1748, 0
        %v1823 = vsel %vm560, %v1750, 0
        %v1825 = vsel %vm560, %v1752, 0
        %v1827 = vsel %vm560, %v1755, 0
        %v1829 = vsel %vm560, %v1757, 0
        %v1831 = vsel %vm560, %v1759, 0
        %v1833 = vsel %vm560, %v1761, 0
        %v1836 = vsel %vm625, %v1769, 0
        %v1839 = vsel %vm625, %v1770, 0
        %1841 = vmatprep.subr.mxu0 %v1764
        %1842 = vmatpush1.msra.mxu0 %v1763
        %1843 = vmatprep.subr.mxu0 %v1766
        %1844 = vmatpush1.msra.mxu0 %v1765
        %1845 = vmatprep.subr.mxu0 %v1768
        %1846 = vmatpush1.msra.mxu0 %v1767
        %1847 = vmatprep.subr.mxu0 %v1839
        %1848 = vmatpush1.msra.mxu0 %v1836
        %1849 = vmatprep.subr.mxu0 0.0
        %1850 = vmatpush1.msra.mxu0 0.0
        %1851 = vmatprep.subr.mxu0 0.0
        %1852 = vmatpush1.msra.mxu0 0.0
        %1853 = vmatprep.subr.mxu0 0.0
        %1854 = vmatpush1.msra.mxu0 0.0
        %1855 = vmatprep.subr.mxu0 0.0
        %1856 = vmatpush1.msra.mxu0 0.0
        %1857 = vmatprep.subr.mxu0 0.0
        %1858 = vmatpush1.msra.mxu0 0.0
        %1859 = vmatprep.subr.mxu0 0.0
        %1860 = vmatpush1.msra.mxu0 0.0
        %1861 = vmatprep.subr.mxu0 0.0
        %1862 = vmatpush1.msra.mxu0 0.0
        %1863 = vmatprep.subr.mxu0 0.0
        %1864 = vmatpush1.msra.mxu0 0.0
        %1865 = vmatprep.subr.mxu0 0.0
        %1866 = vmatpush1.msra.mxu0 0.0
        %1867 = vmatprep.subr.mxu0 0.0
        %1868 = vmatpush1.msra.mxu0 0.0
        %1869 = vmatprep.subr.mxu0 0.0
        %1870 = vmatpush1.msra.mxu0 0.0
        %1871 = vmatprep.subr.mxu0 0.0
        %1872 = vmatpush1.msra.mxu0 0.0
        %1873 = vmatprep.subr.mxu0 0.0
        %1874 = vmatpush1.msra.mxu0 0.0
        %1875 = vmatprep.subr.mxu0 0.0
        %1876 = vmatpush1.msra.mxu0 0.0
        %1877 = vmatprep.subr.mxu0 0.0
        %1878 = vmatpush1.msra.mxu0 0.0
        %1879 = vmatprep.subr.mxu0 0.0
        %1880 = vmatpush1.msra.mxu0 0.0
        %1881 = vmatprep.subr.mxu0 0.0
        %1882 = vmatpush1.msra.mxu0 0.0
        %1883 = vmatprep.subr.mxu0 0.0
        %1884 = vmatpush1.msra.mxu0 0.0
        %1885 = vmatprep.subr.mxu0 0.0
        %1886 = vmatpush1.msra.mxu0 0.0
        %1887 = vmatprep.subr.mxu0 0.0
        %1888 = vmatpush1.msra.mxu0 0.0
        %1889 = vmatprep.subr.mxu0 0.0
        %1890 = vmatpush1.msra.mxu0 0.0
        %1891 = vmatprep.subr.mxu0 0.0
        %1892 = vmatpush1.msra.mxu0 0.0
        %1893 = vmatprep.subr.mxu0 0.0
        %1894 = vmatpush1.msra.mxu0 0.0
        %1895 = vmatprep.subr.mxu0 0.0
        %1896 = vmatpush1.msra.mxu0 0.0
        %1897 = vmatprep.subr.mxu0 0.0
        %1898 = vmatpush1.msra.mxu0 0.0
        %1899 = vmatprep.subr.mxu0 0.0
        %1900 = vmatpush1.msra.mxu0 0.0
        %1901 = vmatprep.subr.mxu0 0.0
        %1902 = vmatpush1.msra.mxu0 0.0
        %1903 = vmatprep.subr.mxu0 0.0
        %1904 = vmatpush1.msra.mxu0 0.0
        %1905 = vmatprep.mubr.f32.mxu0 0.0
        %1906 = vmatmul.mubr.f32.gmra.mrb[0].mxu0 %v1771
        %v1907 = vpop.f32.mrb[0].mxu0
        %v1908 = vadd.f32 0.0, %v1907
        %v1909 = vpop.f32.mrb[0].mxu0
        %v1910 = vadd.f32 0.0, %v1909
        %1911 = vmatprep.mubr.f32.mxu0 0.0
        %1912 = vmatmul.mubr.f32.gmra.mrb[0].mxu0 %v1773
        %v1913 = vpop.f32.mrb[0].mxu0
        %v1914 = vadd.f32 0.0, %v1913
        %v1915 = vpop.f32.mrb[0].mxu0
        %v1916 = vadd.f32 0.0, %v1915
        %1917 = vmatprep.mubr.f32.mxu0 0.0
        %1918 = vmatmul.mubr.f32.gmra.mrb[0].mxu0 %v1775
        %v1919 = vpop.f32.mrb[0].mxu0
        %v1920 = vadd.f32 0.0, %v1919
        %v1921 = vpop.f32.mrb[0].mxu0
        %v1922 = vadd.f32 0.0, %v1921
        %1923 = vmatprep.mubr.f32.mxu0 0.0
        %1924 = vmatmul.mubr.f32.gmra.mrb[0].mxu0 %v1777
        %v1925 = vpop.f32.mrb[0].mxu0
        %v1926 = vadd.f32 0.0, %v1925
        %v1927 = vpop.f32.mrb[0].mxu0
        %v1928 = vadd.f32 0.0, %v1927
        %1929 = vmatprep.mubr.f32.mxu0 0.0
        %1930 = vmatmul.mubr.f32.gmra.mrb[0].mxu0 %v1779
        %v1931 = vpop.f32.mrb[0].mxu0
        %v1932 = vadd.f32 0.0, %v1931
        %v1933 = vpop.f32.mrb[0].mxu0
        %v1934 = vadd.f32 0.0, %v1933
        %1935 = vmatprep.mubr.f32.mxu0 0.0
        %1936 = vmatmul.mubr.f32.gmra.mrb[0].mxu0 %v1781
        %v1937 = vpop.f32.mrb[0].mxu0
        %v1938 = vadd.f32 0.0, %v1937
        %v1939 = vpop.f32.mrb[0].mxu0
        %v1940 = vadd.f32 0.0, %v1939
        %1941 = vmatprep.mubr.f32.mxu0 0.0
        %1942 = vmatmul.mubr.f32.gmra.mrb[0].mxu0 %v1783
        %v1943 = vpop.f32.mrb[0].mxu0
        %v1944 = vadd.f32 0.0, %v1943
        %v1945 = vpop.f32.mrb[0].mxu0
        %v1946 = vadd.f32 0.0, %v1945
        %1947 = vmatprep.mubr.f32.mxu0 0.0
        %1948 = vmatmul.mubr.f32.gmra.mrb[0].mxu0 %v1785
        %v1949 = vpop.f32.mrb[0].mxu0
        %v1950 = vadd.f32 0.0, %v1949
        %v1951 = vpop.f32.mrb[0].mxu0
        %v1952 = vadd.f32 0.0, %v1951
        %1953 = vmatprep.mubr.f32.mxu0 0.0
        %1954 = vmatmul.mubr.f32.gmra.mrb[0].mxu0 %v1787
        %v1955 = vpop.f32.mrb[0].mxu0
        %v1956 = vadd.f32 0.0, %v1955
        %v1957 = vpop.f32.mrb[0].mxu0
        %v1958 = vadd.f32 0.0, %v1957
        %1959 = vmatprep.mubr.f32.mxu0 0.0
        %1960 = vmatmul.mubr.f32.gmra.mrb[0].mxu0 %v1789
        %v1961 = vpop.f32.mrb[0].mxu0
        %v1962 = vadd.f32 0.0, %v1961
        %v1963 = vpop.f32.mrb[0].mxu0
        %v1964 = vadd.f32 0.0, %v1963
        %1965 = vmatprep.mubr.f32.mxu0 0.0
        %1966 = vmatmul.mubr.f32.gmra.mrb[0].mxu0 %v1791
        %v1967 = vpop.f32.mrb[0].mxu0
        %v1968 = vadd.f32 0.0, %v1967
        %v1969 = vpop.f32.mrb[0].mxu0
        %v1970 = vadd.f32 0.0, %v1969
        %1971 = vmatprep.mubr.f32.mxu0 0.0
        %1972 = vmatmul.mubr.f32.gmra.mrb[0].mxu0 %v1793
        %v1973 = vpop.f32.mrb[0].mxu0
        %v1974 = vadd.f32 0.0, %v1973
        %v1975 = vpop.f32.mrb[0].mxu0
        %v1976 = vadd.f32 0.0, %v1975
        %1977 = vmatprep.mubr.f32.mxu0 0.0
        %1978 = vmatmul.mubr.f32.gmra.mrb[0].mxu0 %v1795
        %v1979 = vpop.f32.mrb[0].mxu0
        %v1980 = vadd.f32 0.0, %v1979
        %v1981 = vpop.f32.mrb[0].mxu0
        %v1982 = vadd.f32 0.0, %v1981
        %1983 = vmatprep.mubr.f32.mxu0 0.0
        %1984 = vmatmul.mubr.f32.gmra.mrb[0].mxu0 %v1797
        %v1985 = vpop.f32.mrb[0].mxu0
        %v1986 = vadd.f32 0.0, %v1985
        %v1987 = vpop.f32.mrb[0].mxu0
        %v1988 = vadd.f32 0.0, %v1987
        %1989 = vmatprep.mubr.f32.mxu0 0.0
        %1990 = vmatmul.mubr.f32.gmra.mrb[0].mxu0 %v1799
        %v1991 = vpop.f32.mrb[0].mxu0
        %v1992 = vadd.f32 0.0, %v1991
        %v1993 = vpop.f32.mrb[0].mxu0
        %v1994 = vadd.f32 0.0, %v1993
        %1995 = vmatprep.mubr.f32.mxu0 0.0
        %1996 = vmatmul.mubr.f32.gmra.mrb[0].mxu0 %v1801
        %v1997 = vpop.f32.mrb[0].mxu0
        %v1998 = vadd.f32 0.0, %v1997
        %v1999 = vpop.f32.mrb[0].mxu0
        %v2000 = vadd.f32 0.0, %v1999
        %2001 = vmatprep.mubr.f32.mxu0 0.0
        %2002 = vmatmul.mubr.f32.gmra.mrb[0].mxu0 %v1803
        %v2003 = vpop.f32.mrb[0].mxu0
        %v2004 = vadd.f32 0.0, %v2003
        %v2005 = vpop.f32.mrb[0].mxu0
        %v2006 = vadd.f32 0.0, %v2005
        %2007 = vmatprep.mubr.f32.mxu0 0.0
        %2008 = vmatmul.mubr.f32.gmra.mrb[0].mxu0 %v1805
        %v2009 = vpop.f32.mrb[0].mxu0
        %v2010 = vadd.f32 0.0, %v2009
        %v2011 = vpop.f32.mrb[0].mxu0
        %v2012 = vadd.f32 0.0, %v2011
        %2013 = vmatprep.mubr.f32.mxu0 0.0
        %2014 = vmatmul.mubr.f32.gmra.mrb[0].mxu0 %v1807
        %v2015 = vpop.f32.mrb[0].mxu0
        %v2016 = vadd.f32 0.0, %v2015
        %v2017 = vpop.f32.mrb[0].mxu0
        %v2018 = vadd.f32 0.0, %v2017
        %2019 = vmatprep.mubr.f32.mxu0 0.0
        %2020 = vmatmul.mubr.f32.gmra.mrb[0].mxu0 %v1809
        %v2021 = vpop.f32.mrb[0].mxu0
        %v2022 = vadd.f32 0.0, %v2021
        %v2023 = vpop.f32.mrb[0].mxu0
        %v2024 = vadd.f32 0.0, %v2023
        %2025 = vmatprep.mubr.f32.mxu0 0.0
        %2026 = vmatmul.mubr.f32.gmra.mrb[0].mxu0 %v1811
        %v2027 = vpop.f32.mrb[0].mxu0
        %v2028 = vadd.f32 0.0, %v2027
        %v2029 = vpop.f32.mrb[0].mxu0
        %v2030 = vadd.f32 0.0, %v2029
        %2031 = vmatprep.mubr.f32.mxu0 0.0
        %2032 = vmatmul.mubr.f32.gmra.mrb[0].mxu0 %v1813
        %v2033 = vpop.f32.mrb[0].mxu0
        %v2034 = vadd.f32 0.0, %v2033
        %v2035 = vpop.f32.mrb[0].mxu0
        %v2036 = vadd.f32 0.0, %v2035
        %2037 = vmatprep.mubr.f32.mxu0 0.0
        %2038 = vmatmul.mubr.f32.gmra.mrb[0].mxu0 %v1815
        %v2039 = vpop.f32.mrb[0].mxu0
        %v2040 = vadd.f32 0.0, %v2039
        %v2041 = vpop.f32.mrb[0].mxu0
        %v2042 = vadd.f32 0.0, %v2041
        %2043 = vmatprep.mubr.f32.mxu0 0.0
        %2044 = vmatmul.mubr.f32.gmra.mrb[0].mxu0 %v1817
        %v2045 = vpop.f32.mrb[0].mxu0
        %v2046 = vadd.f32 0.0, %v2045
        %v2047 = vpop.f32.mrb[0].mxu0
        %v2048 = vadd.f32 0.0, %v2047
        %2049 = vmatprep.mubr.f32.mxu0 0.0
        %2050 = vmatmul.mubr.f32.gmra.mrb[0].mxu0 %v1819
        %v2051 = vpop.f32.mrb[0].mxu0
        %v2052 = vadd.f32 0.0, %v2051
        %v2053 = vpop.f32.mrb[0].mxu0
        %v2054 = vadd.f32 0.0, %v2053
        %2055 = vmatprep.mubr.f32.mxu0 0.0
        %2056 = vmatmul.mubr.f32.gmra.mrb[0].mxu0 %v1821
        %v2057 = vpop.f32.mrb[0].mxu0
        %v2058 = vadd.f32 0.0, %v2057
        %v2059 = vpop.f32.mrb[0].mxu0
        %v2060 = vadd.f32 0.0, %v2059
        %2061 = vmatprep.mubr.f32.mxu0 0.0
        %2062 = vmatmul.mubr.f32.gmra.mrb[0].mxu0 %v1823
        %v2063 = vpop.f32.mrb[0].mxu0
        %v2064 = vadd.f32 0.0, %v2063
        %v2065 = vpop.f32.mrb[0].mxu0
        %v2066 = vadd.f32 0.0, %v2065
        %2067 = vmatprep.mubr.f32.mxu0 0.0
        %2068 = vmatmul.mubr.f32.gmra.mrb[0].mxu0 %v1825
        %v2069 = vpop.f32.mrb[0].mxu0
        %v2070 = vadd.f32 0.0, %v2069
        %v2071 = vpop.f32.mrb[0].mxu0
        %v2072 = vadd.f32 0.0, %v2071
        %2073 = vmatprep.mubr.f32.mxu0 0.0
        %2074 = vmatmul.mubr.f32.gmra.mrb[0].mxu0 %v1827
        %v2075 = vpop.f32.mrb[0].mxu0
        %v2076 = vadd.f32 0.0, %v2075
        %v2077 = vpop.f32.mrb[0].mxu0
        %v2078 = vadd.f32 0.0, %v2077
        %2079 = vmatprep.mubr.f32.mxu0 0.0
        %2080 = vmatmul.mubr.f32.gmra.mrb[0].mxu0 %v1829
        %v2081 = vpop.f32.mrb[0].mxu0
        %v2082 = vadd.f32 0.0, %v2081
        %v2083 = vpop.f32.mrb[0].mxu0
        %v2084 = vadd.f32 0.0, %v2083
        %2085 = vmatprep.mubr.f32.mxu0 0.0
        %2086 = vmatmul.mubr.f32.gmra.mrb[0].mxu0 %v1831
        %v2087 = vpop.f32.mrb[0].mxu0
        %v2088 = vadd.f32 0.0, %v2087
        %v2089 = vpop.f32.mrb[0].mxu0
        %v2090 = vadd.f32 0.0, %v2089
        %2091 = vmatprep.mubr.f32.mxu0 0.0
        %2092 = vmatmul.mubr.f32.gmra.mrb[0].mxu0 %v1833
        %v2093 = vpop.f32.mrb[0].mxu0
        %v2094 = vadd.f32 0.0, %v2093
        %v2095 = vpop.f32.mrb[0].mxu0
        %v2096 = vadd.f32 0.0, %v2095
        %2097 = vdwg.mxu0
        %v2098 = vadd.f32 %v1625, %v1908
        %v2099 = vadd.f32 %v1626, %v1910
        %v2100 = vadd.f32 %v1627, %v1914
        %v2101 = vadd.f32 %v1628, %v1916
        %v2102 = vadd.f32 %v1629, %v1920
        %v2103 = vadd.f32 %v1630, %v1922
        %v2104 = vadd.f32 %v1631, %v1926
        %v2105 = vadd.f32 %v1632, %v1928
        %v2106 = vadd.f32 %v1633, %v1932
        %v2107 = vadd.f32 %v1634, %v1934
        %v2108 = vadd.f32 %v1635, %v1938
        %v2109 = vadd.f32 %v1636, %v1940
        %v2110 = vadd.f32 %v1637, %v1944
        %v2111 = vadd.f32 %v1638, %v1946
        %v2112 = vadd.f32 %v1639, %v1950
        %v2113 = vadd.f32 %v1640, %v1952
        %v2114 = vadd.f32 %v1641, %v1956
        %v2115 = vadd.f32 %v1642, %v1958
        %v2116 = vadd.f32 %v1643, %v1962
        %v2117 = vadd.f32 %v1644, %v1964
        %v2118 = vadd.f32 %v1645, %v1968
        %v2119 = vadd.f32 %v1646, %v1970
        %v2120 = vadd.f32 %v1647, %v1974
        %v2121 = vadd.f32 %v1648, %v1976
        %v2122 = vadd.f32 %v1649, %v1980
        %v2123 = vadd.f32 %v1650, %v1982
        %v2124 = vadd.f32 %v1651, %v1986
        %v2125 = vadd.f32 %v1652, %v1988
        %v2126 = vadd.f32 %v1653, %v1992
        %v2127 = vadd.f32 %v1654, %v1994
        %v2128 = vadd.f32 %v1655, %v1998
        %v2129 = vadd.f32 %v1656, %v2000
        %v2130 = vadd.f32 %v1657, %v2004
        %v2131 = vadd.f32 %v1658, %v2006
        %v2132 = vadd.f32 %v1659, %v2010
        %v2133 = vadd.f32 %v1660, %v2012
        %v2134 = vadd.f32 %v1661, %v2016
        %v2135 = vadd.f32 %v1662, %v2018
        %v2136 = vadd.f32 %v1663, %v2022
        %v2137 = vadd.f32 %v1664, %v2024
        %v2138 = vadd.f32 %v1665, %v2028
        %v2139 = vadd.f32 %v1666, %v2030
        %v2140 = vadd.f32 %v1667, %v2034
        %v2141 = vadd.f32 %v1668, %v2036
        %v2142 = vadd.f32 %v1669, %v2040
        %v2143 = vadd.f32 %v1670, %v2042
        %v2144 = vadd.f32 %v1671, %v2046
        %v2145 = vadd.f32 %v1672, %v2048
        %v2146 = vadd.f32 %v1673, %v2052
        %v2147 = vadd.f32 %v1674, %v2054
        %v2148 = vadd.f32 %v1675, %v2058
        %v2149 = vadd.f32 %v1676, %v2060
        %v2150 = vadd.f32 %v1677, %v2064
        %v2151 = vadd.f32 %v1678, %v2066
        %v2152 = vadd.f32 %v1679, %v2070
        %v2153 = vadd.f32 %v1680, %v2072
        %v2154 = vadd.f32 %v1681, %v2076
        %v2155 = vadd.f32 %v1682, %v2078
        %v2156 = vadd.f32 %v1683, %v2082
        %v2157 = vadd.f32 %v1684, %v2084
        %v2158 = vadd.f32 %v1685, %v2088
        %v2159 = vadd.f32 %v1686, %v2090
        %v2160 = vadd.f32 %v1687, %v2094
        %v2161 = vadd.f32 %v1688, %v2096
        %v2162 = vrot.slane %v390, 4
        %v2163 = vrot.slane %v391, 4
        %v2164 = vsel %vm625, %v2162, %v2163
        %v2165 = vrot.slane %v392, 4
        %v2166 = vsel %vm625, %v2163, %v2165
        %v2167 = vrot.slane %v393, 4
        %v2168 = vsel %vm625, %v2165, %v2167
        %v2169 = vrot.slane %v394, 4
        %v2170 = vsel %vm625, %v2167, %v2169
        %v2171 = vrot.slane %v395, 4
        %v2172 = vrot.slane %v396, 4
        %v2173 = vsel %vm625, %v2171, %v2172
        %v2174 = vrot.slane %v397, 4
        %v2175 = vsel %vm625, %v2172, %v2174
        %v2176 = vrot.slane %v398, 4
        %v2177 = vsel %vm625, %v2174, %v2176
        %v2178 = vrot.slane %v399, 4
        %v2179 = vsel %vm625, %v2176, %v2178
        %v2180 = vrot.slane %v400, 4
        %v2181 = vrot.slane %v401, 4
        %v2182 = vsel %vm625, %v2180, %v2181
        %v2183 = vrot.slane %v402, 4
        %v2184 = vsel %vm625, %v2181, %v2183
        %v2185 = vrot.slane %v403, 4
        %v2186 = vsel %vm625, %v2183, %v2185
        %v2187 = vrot.slane %v404, 4
        %v2188 = vsel %vm625, %v2185, %v2187
        %v2189 = vrot.slane %v405, 4
        %v2190 = vrot.slane %v406, 4
        %v2191 = vsel %vm625, %v2189, %v2190
        %v2192 = vrot.slane %v407, 4
        %v2193 = vsel %vm625, %v2190, %v2192
        %v2194 = vrot.slane %v408, 4
        %v2195 = vsel %vm625, %v2192, %v2194
        %v2196 = vrot.slane %v409, 4
        %v2197 = vsel %vm625, %v2194, %v2196
        %v2198 = vrot.slane %v410, 4
        %v2199 = vrot.slane %v411, 4
        %v2200 = vsel %vm625, %v2198, %v2199
        %v2201 = vrot.slane %v412, 4
        %v2202 = vsel %vm625, %v2199, %v2201
        %v2203 = vrot.slane %v413, 4
        %v2204 = vsel %vm625, %v2201, %v2203
        %v2205 = vrot.slane %v414, 4
        %v2206 = vsel %vm625, %v2203, %v2205
        %v2207 = vrot.slane %v415, 4
        %v2208 = vrot.slane %v416, 4
        %v2209 = vsel %vm625, %v2207, %v2208
        %v2210 = vrot.slane %v417, 4
        %v2211 = vsel %vm625, %v2208, %v2210
        %v2212 = vrot.slane %v418, 4
        %v2213 = vsel %vm625, %v2210, %v2212
        %v2214 = vrot.slane %v419, 4
        %v2215 = vsel %vm625, %v2212, %v2214
        %v2216 = vrot.slane %v420, 4
        %v2217 = vrot.slane %v421, 4
        %v2218 = vsel %vm625, %v2216, %v2217
        %v2219 = vrot.slane %v422, 4
        %v2220 = vsel %vm625, %v2217, %v2219
        %v2221 = vrot.slane %v423, 4
        %v2222 = vsel %vm625, %v2219, %v2221
        %v2223 = vrot.slane %v424, 4
        %v2224 = vsel %vm625, %v2221, %v2223
        %v2225 = vrot.slane %v425, 4
        %v2226 = vrot.slane %v426, 4
        %v2227 = vsel %vm625, %v2225, %v2226
        %v2228 = vrot.slane %v427, 4
        %v2229 = vsel %vm625, %v2226, %v2228
        %v2230 = vrot.slane %v428, 4
        %v2231 = vsel %vm625, %v2228, %v2230
        %v2232 = vrot.slane %v429, 4
        %v2233 = vsel %vm625, %v2230, %v2232
        %s2234 = scalar_lea.vmem %s1, 256
        %v2235 = vld [vmem:[%s2234] sm:$0xff]
        %v2236 = vld [vmem:[%s2234 + $0x8] sm:$0xff]
        %v2237 = vld [vmem:[%s2234 + $0x10] sm:$0xff]
        %v2238 = vld [vmem:[%s2234 + $0x18] sm:$0xff]
        %v2239 = vld [vmem:[%s2234 + $0x20] sm:$0xff]
        %v2240 = vld [vmem:[%s2234 + $0x28] sm:$0xff]
        %v2241 = vld [vmem:[%s2234 + $0x30] sm:$0xf]
        %v2242 = vld [vmem:[%s2234 + $0x38] sm:$0xf]
        %v2243 = vsel %vm560, %v2164, 0
        %v2245 = vsel %vm560, %v2166, 0
        %v2247 = vsel %vm560, %v2168, 0
        %v2249 = vsel %vm560, %v2170, 0
        %v2251 = vsel %vm560, %v2173, 0
        %v2253 = vsel %vm560, %v2175, 0
        %v2255 = vsel %vm560, %v2177, 0
        %v2257 = vsel %vm560, %v2179, 0
        %v2259 = vsel %vm560, %v2182, 0
        %v2261 = vsel %vm560, %v2184, 0
        %v2263 = vsel %vm560, %v2186, 0
        %v2265 = vsel %vm560, %v2188, 0
        %v2267 = vsel %vm560, %v2191, 0
        %v2269 = vsel %vm560, %v2193, 0
        %v2271 = vsel %vm560, %v2195, 0
        %v2273 = vsel %vm560, %v2197, 0
        %v2275 = vsel %vm560, %v2200, 0
        %v2277 = vsel %vm560, %v2202, 0
        %v2279 = vsel %vm560, %v2204, 0
        %v2281 = vsel %vm560, %v2206, 0
        %v2283 = vsel %vm560, %v2209, 0
        %v2285 = vsel %vm560, %v2211, 0
        %v2287 = vsel %vm560, %v2213, 0
        %v2289 = vsel %vm560, %v2215, 0
        %v2291 = vsel %vm560, %v2218, 0
        %v2293 = vsel %vm560, %v2220, 0
        %v2295 = vsel %vm560, %v2222, 0
        %v2297 = vsel %vm560, %v2224, 0
        %v2299 = vsel %vm560, %v2227, 0
        %v2301 = vsel %vm560, %v2229, 0
        %v2303 = vsel %vm560, %v2231, 0
        %v2305 = vsel %vm560, %v2233, 0
        %v2308 = vsel %vm625, %v2241, 0
        %v2311 = vsel %vm625, %v2242, 0
        %2313 = vmatprep.subr.mxu0 %v2236
        %2314 = vmatpush1.msra.mxu0 %v2235
        %2315 = vmatprep.subr.mxu0 %v2238
        %2316 = vmatpush1.msra.mxu0 %v2237
        %2317 = vmatprep.subr.mxu0 %v2240
        %2318 = vmatpush1.msra.mxu0 %v2239
        %2319 = vmatprep.subr.mxu0 %v2311
        %2320 = vmatpush1.msra.mxu0 %v2308
        %2321 = vmatprep.subr.mxu0 0.0
        %2322 = vmatpush1.msra.mxu0 0.0
        %2323 = vmatprep.subr.mxu0 0.0
        %2324 = vmatpush1.msra.mxu0 0.0
        %2325 = vmatprep.subr.mxu0 0.0
        %2326 = vmatpush1.msra.mxu0 0.0
        %2327 = vmatprep.subr.mxu0 0.0
        %2328 = vmatpush1.msra.mxu0 0.0
        %2329 = vmatprep.subr.mxu0 0.0
        %2330 = vmatpush1.msra.mxu0 0.0
        %2331 = vmatprep.subr.mxu0 0.0
        %2332 = vmatpush1.msra.mxu0 0.0
        %2333 = vmatprep.subr.mxu0 0.0
        %2334 = vmatpush1.msra.mxu0 0.0
        %2335 = vmatprep.subr.mxu0 0.0
        %2336 = vmatpush1.msra.mxu0 0.0
        %2337 = vmatprep.subr.mxu0 0.0
        %2338 = vmatpush1.msra.mxu0 0.0
        %2339 = vmatprep.subr.mxu0 0.0
        %2340 = vmatpush1.msra.mxu0 0.0
        %2341 = vmatprep.subr.mxu0 0.0
        %2342 = vmatpush1.msra.mxu0 0.0
        %2343 = vmatprep.subr.mxu0 0.0
        %2344 = vmatpush1.msra.mxu0 0.0
        %2345 = vmatprep.subr.mxu0 0.0
        %2346 = vmatpush1.msra.mxu0 0.0
        %2347 = vmatprep.subr.mxu0 0.0
        %2348 = vmatpush1.msra.mxu0 0.0
        %2349 = vmatprep.subr.mxu0 0.0
        %2350 = vmatpush1.msra.mxu0 0.0
        %2351 = vmatprep.subr.mxu0 0.0
        %2352 = vmatpush1.msra.mxu0 0.0
        %2353 = vmatprep.subr.mxu0 0.0
        %2354 = vmatpush1.msra.mxu0 0.0
        %2355 = vmatprep.subr.mxu0 0.0
        %2356 = vmatpush1.msra.mxu0 0.0
        %2357 = vmatprep.subr.mxu0 0.0
        %2358 = vmatpush1.msra.mxu0 0.0
        %2359 = vmatprep.subr.mxu0 0.0
        %2360 = vmatpush1.msra.mxu0 0.0
        %2361 = vmatprep.subr.mxu0 0.0
        %2362 = vmatpush1.msra.mxu0 0.0
        %2363 = vmatprep.subr.mxu0 0.0
        %2364 = vmatpush1.msra.mxu0 0.0
        %2365 = vmatprep.subr.mxu0 0.0
        %2366 = vmatpush1.msra.mxu0 0.0
        %2367 = vmatprep.subr.mxu0 0.0
        %2368 = vmatpush1.msra.mxu0 0.0
        %2369 = vmatprep.subr.mxu0 0.0
        %2370 = vmatpush1.msra.mxu0 0.0
        %2371 = vmatprep.subr.mxu0 0.0
        %2372 = vmatpush1.msra.mxu0 0.0
        %2373 = vmatprep.subr.mxu0 0.0
        %2374 = vmatpush1.msra.mxu0 0.0
        %2375 = vmatprep.subr.mxu0 0.0
        %2376 = vmatpush1.msra.mxu0 0.0
        %2377 = vmatprep.mubr.f32.mxu0 0.0
        %2378 = vmatmul.mubr.f32.gmra.mrb[0].mxu0 %v2243
        %v2379 = vpop.f32.mrb[0].mxu0
        %v2380 = vadd.f32 0.0, %v2379
        %v2381 = vpop.f32.mrb[0].mxu0
        %v2382 = vadd.f32 0.0, %v2381
        %2383 = vmatprep.mubr.f32.mxu0 0.0
        %2384 = vmatmul.mubr.f32.gmra.mrb[0].mxu0 %v2245
        %v2385 = vpop.f32.mrb[0].mxu0
        %v2386 = vadd.f32 0.0, %v2385
        %v2387 = vpop.f32.mrb[0].mxu0
        %v2388 = vadd.f32 0.0, %v2387
        %2389 = vmatprep.mubr.f32.mxu0 0.0
        %2390 = vmatmul.mubr.f32.gmra.mrb[0].mxu0 %v2247
        %v2391 = vpop.f32.mrb[0].mxu0
        %v2392 = vadd.f32 0.0, %v2391
        %v2393 = vpop.f32.mrb[0].mxu0
        %v2394 = vadd.f32 0.0, %v2393
        %2395 = vmatprep.mubr.f32.mxu0 0.0
        %2396 = vmatmul.mubr.f32.gmra.mrb[0].mxu0 %v2249
        %v2397 = vpop.f32.mrb[0].mxu0
        %v2398 = vadd.f32 0.0, %v2397
        %v2399 = vpop.f32.mrb[0].mxu0
        %v2400 = vadd.f32 0.0, %v2399
        %2401 = vmatprep.mubr.f32.mxu0 0.0
        %2402 = vmatmul.mubr.f32.gmra.mrb[0].mxu0 %v2251
        %v2403 = vpop.f32.mrb[0].mxu0
        %v2404 = vadd.f32 0.0, %v2403
        %v2405 = vpop.f32.mrb[0].mxu0
        %v2406 = vadd.f32 0.0, %v2405
        %2407 = vmatprep.mubr.f32.mxu0 0.0
        %2408 = vmatmul.mubr.f32.gmra.mrb[0].mxu0 %v2253
        %v2409 = vpop.f32.mrb[0].mxu0
        %v2410 = vadd.f32 0.0, %v2409
        %v2411 = vpop.f32.mrb[0].mxu0
        %v2412 = vadd.f32 0.0, %v2411
        %2413 = vmatprep.mubr.f32.mxu0 0.0
        %2414 = vmatmul.mubr.f32.gmra.mrb[0].mxu0 %v2255
        %v2415 = vpop.f32.mrb[0].mxu0
        %v2416 = vadd.f32 0.0, %v2415
        %v2417 = vpop.f32.mrb[0].mxu0
        %v2418 = vadd.f32 0.0, %v2417
        %2419 = vmatprep.mubr.f32.mxu0 0.0
        %2420 = vmatmul.mubr.f32.gmra.mrb[0].mxu0 %v2257
        %v2421 = vpop.f32.mrb[0].mxu0
        %v2422 = vadd.f32 0.0, %v2421
        %v2423 = vpop.f32.mrb[0].mxu0
        %v2424 = vadd.f32 0.0, %v2423
        %2425 = vmatprep.mubr.f32.mxu0 0.0
        %2426 = vmatmul.mubr.f32.gmra.mrb[0].mxu0 %v2259
        %v2427 = vpop.f32.mrb[0].mxu0
        %v2428 = vadd.f32 0.0, %v2427
        %v2429 = vpop.f32.mrb[0].mxu0
        %v2430 = vadd.f32 0.0, %v2429
        %2431 = vmatprep.mubr.f32.mxu0 0.0
        %2432 = vmatmul.mubr.f32.gmra.mrb[0].mxu0 %v2261
        %v2433 = vpop.f32.mrb[0].mxu0
        %v2434 = vadd.f32 0.0, %v2433
        %v2435 = vpop.f32.mrb[0].mxu0
        %v2436 = vadd.f32 0.0, %v2435
        %2437 = vmatprep.mubr.f32.mxu0 0.0
        %2438 = vmatmul.mubr.f32.gmra.mrb[0].mxu0 %v2263
        %v2439 = vpop.f32.mrb[0].mxu0
        %v2440 = vadd.f32 0.0, %v2439
        %v2441 = vpop.f32.mrb[0].mxu0
        %v2442 = vadd.f32 0.0, %v2441
        %2443 = vmatprep.mubr.f32.mxu0 0.0
        %2444 = vmatmul.mubr.f32.gmra.mrb[0].mxu0 %v2265
        %v2445 = vpop.f32.mrb[0].mxu0
        %v2446 = vadd.f32 0.0, %v2445
        %v2447 = vpop.f32.mrb[0].mxu0
        %v2448 = vadd.f32 0.0, %v2447
        %2449 = vmatprep.mubr.f32.mxu0 0.0
        %2450 = vmatmul.mubr.f32.gmra.mrb[0].mxu0 %v2267
        %v2451 = vpop.f32.mrb[0].mxu0
        %v2452 = vadd.f32 0.0, %v2451
        %v2453 = vpop.f32.mrb[0].mxu0
        %v2454 = vadd.f32 0.0, %v2453
        %2455 = vmatprep.mubr.f32.mxu0 0.0
        %2456 = vmatmul.mubr.f32.gmra.mrb[0].mxu0 %v2269
        %v2457 = vpop.f32.mrb[0].mxu0
        %v2458 = vadd.f32 0.0, %v2457
        %v2459 = vpop.f32.mrb[0].mxu0
        %v2460 = vadd.f32 0.0, %v2459
        %2461 = vmatprep.mubr.f32.mxu0 0.0
        %2462 = vmatmul.mubr.f32.gmra.mrb[0].mxu0 %v2271
        %v2463 = vpop.f32.mrb[0].mxu0
        %v2464 = vadd.f32 0.0, %v2463
        %v2465 = vpop.f32.mrb[0].mxu0
        %v2466 = vadd.f32 0.0, %v2465
        %2467 = vmatprep.mubr.f32.mxu0 0.0
        %2468 = vmatmul.mubr.f32.gmra.mrb[0].mxu0 %v2273
        %v2469 = vpop.f32.mrb[0].mxu0
        %v2470 = vadd.f32 0.0, %v2469
        %v2471 = vpop.f32.mrb[0].mxu0
        %v2472 = vadd.f32 0.0, %v2471
        %2473 = vmatprep.mubr.f32.mxu0 0.0
        %2474 = vmatmul.mubr.f32.gmra.mrb[0].mxu0 %v2275
        %v2475 = vpop.f32.mrb[0].mxu0
        %v2476 = vadd.f32 0.0, %v2475
        %v2477 = vpop.f32.mrb[0].mxu0
        %v2478 = vadd.f32 0.0, %v2477
        %2479 = vmatprep.mubr.f32.mxu0 0.0
        %2480 = vmatmul.mubr.f32.gmra.mrb[0].mxu0 %v2277
        %v2481 = vpop.f32.mrb[0].mxu0
        %v2482 = vadd.f32 0.0, %v2481
        %v2483 = vpop.f32.mrb[0].mxu0
        %v2484 = vadd.f32 0.0, %v2483
        %2485 = vmatprep.mubr.f32.mxu0 0.0
        %2486 = vmatmul.mubr.f32.gmra.mrb[0].mxu0 %v2279
        %v2487 = vpop.f32.mrb[0].mxu0
        %v2488 = vadd.f32 0.0, %v2487
        %v2489 = vpop.f32.mrb[0].mxu0
        %v2490 = vadd.f32 0.0, %v2489
        %2491 = vmatprep.mubr.f32.mxu0 0.0
        %2492 = vmatmul.mubr.f32.gmra.mrb[0].mxu0 %v2281
        %v2493 = vpop.f32.mrb[0].mxu0
        %v2494 = vadd.f32 0.0, %v2493
        %v2495 = vpop.f32.mrb[0].mxu0
        %v2496 = vadd.f32 0.0, %v2495
        %2497 = vmatprep.mubr.f32.mxu0 0.0
        %2498 = vmatmul.mubr.f32.gmra.mrb[0].mxu0 %v2283
        %v2499 = vpop.f32.mrb[0].mxu0
        %v2500 = vadd.f32 0.0, %v2499
        %v2501 = vpop.f32.mrb[0].mxu0
        %v2502 = vadd.f32 0.0, %v2501
        %2503 = vmatprep.mubr.f32.mxu0 0.0
        %2504 = vmatmul.mubr.f32.gmra.mrb[0].mxu0 %v2285
        %v2505 = vpop.f32.mrb[0].mxu0
        %v2506 = vadd.f32 0.0, %v2505
        %v2507 = vpop.f32.mrb[0].mxu0
        %v2508 = vadd.f32 0.0, %v2507
        %2509 = vmatprep.mubr.f32.mxu0 0.0
        %2510 = vmatmul.mubr.f32.gmra.mrb[0].mxu0 %v2287
        %v2511 = vpop.f32.mrb[0].mxu0
        %v2512 = vadd.f32 0.0, %v2511
        %v2513 = vpop.f32.mrb[0].mxu0
        %v2514 = vadd.f32 0.0, %v2513
        %2515 = vmatprep.mubr.f32.mxu0 0.0
        %2516 = vmatmul.mubr.f32.gmra.mrb[0].mxu0 %v2289
        %v2517 = vpop.f32.mrb[0].mxu0
        %v2518 = vadd.f32 0.0, %v2517
        %v2519 = vpop.f32.mrb[0].mxu0
        %v2520 = vadd.f32 0.0, %v2519
        %2521 = vmatprep.mubr.f32.mxu0 0.0
        %2522 = vmatmul.mubr.f32.gmra.mrb[0].mxu0 %v2291
        %v2523 = vpop.f32.mrb[0].mxu0
        %v2524 = vadd.f32 0.0, %v2523
        %v2525 = vpop.f32.mrb[0].mxu0
        %v2526 = vadd.f32 0.0, %v2525
        %2527 = vmatprep.mubr.f32.mxu0 0.0
        %2528 = vmatmul.mubr.f32.gmra.mrb[0].mxu0 %v2293
        %v2529 = vpop.f32.mrb[0].mxu0
        %v2530 = vadd.f32 0.0, %v2529
        %v2531 = vpop.f32.mrb[0].mxu0
        %v2532 = vadd.f32 0.0, %v2531
        %2533 = vmatprep.mubr.f32.mxu0 0.0
        %2534 = vmatmul.mubr.f32.gmra.mrb[0].mxu0 %v2295
        %v2535 = vpop.f32.mrb[0].mxu0
        %v2536 = vadd.f32 0.0, %v2535
        %v2537 = vpop.f32.mrb[0].mxu0
        %v2538 = vadd.f32 0.0, %v2537
        %2539 = vmatprep.mubr.f32.mxu0 0.0
        %2540 = vmatmul.mubr.f32.gmra.mrb[0].mxu0 %v2297
        %v2541 = vpop.f32.mrb[0].mxu0
        %v2542 = vadd.f32 0.0, %v2541
        %v2543 = vpop.f32.mrb[0].mxu0
        %v2544 = vadd.f32 0.0, %v2543
        %2545 = vmatprep.mubr.f32.mxu0 0.0
        %2546 = vmatmul.mubr.f32.gmra.mrb[0].mxu0 %v2299
        %v2547 = vpop.f32.mrb[0].mxu0
        %v2548 = vadd.f32 0.0, %v2547
        %v2549 = vpop.f32.mrb[0].mxu0
        %v2550 = vadd.f32 0.0, %v2549
        %2551 = vmatprep.mubr.f32.mxu0 0.0
        %2552 = vmatmul.mubr.f32.gmra.mrb[0].mxu0 %v2301
        %v2553 = vpop.f32.mrb[0].mxu0
        %v2554 = vadd.f32 0.0, %v2553
        %v2555 = vpop.f32.mrb[0].mxu0
        %v2556 = vadd.f32 0.0, %v2555
        %2557 = vmatprep.mubr.f32.mxu0 0.0
        %2558 = vmatmul.mubr.f32.gmra.mrb[0].mxu0 %v2303
        %v2559 = vpop.f32.mrb[0].mxu0
        %v2560 = vadd.f32 0.0, %v2559
        %v2561 = vpop.f32.mrb[0].mxu0
        %v2562 = vadd.f32 0.0, %v2561
        %2563 = vmatprep.mubr.f32.mxu0 0.0
        %2564 = vmatmul.mubr.f32.gmra.mrb[0].mxu0 %v2305
        %v2565 = vpop.f32.mrb[0].mxu0
        %v2566 = vadd.f32 0.0, %v2565
        %v2567 = vpop.f32.mrb[0].mxu0
        %v2568 = vadd.f32 0.0, %v2567
        %2569 = vdwg.mxu0
        %v2570 = vadd.f32 %v2098, %v2380
        %v2571 = vadd.f32 %v2099, %v2382
        %v2572 = vadd.f32 %v2100, %v2386
        %v2573 = vadd.f32 %v2101, %v2388
        %v2574 = vadd.f32 %v2102, %v2392
        %v2575 = vadd.f32 %v2103, %v2394
        %v2576 = vadd.f32 %v2104, %v2398
        %v2577 = vadd.f32 %v2105, %v2400
        %v2578 = vadd.f32 %v2106, %v2404
        %v2579 = vadd.f32 %v2107, %v2406
        %v2580 = vadd.f32 %v2108, %v2410
        %v2581 = vadd.f32 %v2109, %v2412
        %v2582 = vadd.f32 %v2110, %v2416
        %v2583 = vadd.f32 %v2111, %v2418
        %v2584 = vadd.f32 %v2112, %v2422
        %v2585 = vadd.f32 %v2113, %v2424
        %v2586 = vadd.f32 %v2114, %v2428
        %v2587 = vadd.f32 %v2115, %v2430
        %v2588 = vadd.f32 %v2116, %v2434
        %v2589 = vadd.f32 %v2117, %v2436
        %v2590 = vadd.f32 %v2118, %v2440
        %v2591 = vadd.f32 %v2119, %v2442
        %v2592 = vadd.f32 %v2120, %v2446
        %v2593 = vadd.f32 %v2121, %v2448
        %v2594 = vadd.f32 %v2122, %v2452
        %v2595 = vadd.f32 %v2123, %v2454
        %v2596 = vadd.f32 %v2124, %v2458
        %v2597 = vadd.f32 %v2125, %v2460
        %v2598 = vadd.f32 %v2126, %v2464
        %v2599 = vadd.f32 %v2127, %v2466
        %v2600 = vadd.f32 %v2128, %v2470
        %v2601 = vadd.f32 %v2129, %v2472
        %v2602 = vadd.f32 %v2130, %v2476
        %v2603 = vadd.f32 %v2131, %v2478
        %v2604 = vadd.f32 %v2132, %v2482
        %v2605 = vadd.f32 %v2133, %v2484
        %v2606 = vadd.f32 %v2134, %v2488
        %v2607 = vadd.f32 %v2135, %v2490
        %v2608 = vadd.f32 %v2136, %v2494
        %v2609 = vadd.f32 %v2137, %v2496
        %v2610 = vadd.f32 %v2138, %v2500
        %v2611 = vadd.f32 %v2139, %v2502
        %v2612 = vadd.f32 %v2140, %v2506
        %v2613 = vadd.f32 %v2141, %v2508
        %v2614 = vadd.f32 %v2142, %v2512
        %v2615 = vadd.f32 %v2143, %v2514
        %v2616 = vadd.f32 %v2144, %v2518
        %v2617 = vadd.f32 %v2145, %v2520
        %v2618 = vadd.f32 %v2146, %v2524
        %v2619 = vadd.f32 %v2147, %v2526
        %v2620 = vadd.f32 %v2148, %v2530
        %v2621 = vadd.f32 %v2149, %v2532
        %v2622 = vadd.f32 %v2150, %v2536
        %v2623 = vadd.f32 %v2151, %v2538
        %v2624 = vadd.f32 %v2152, %v2542
        %v2625 = vadd.f32 %v2153, %v2544
        %v2626 = vadd.f32 %v2154, %v2548
        %v2627 = vadd.f32 %v2155, %v2550
        %v2628 = vadd.f32 %v2156, %v2554
        %v2629 = vadd.f32 %v2157, %v2556
        %v2630 = vadd.f32 %v2158, %v2560
        %v2631 = vadd.f32 %v2159, %v2562
        %v2632 = vadd.f32 %v2160, %v2566
        %v2633 = vadd.f32 %v2161, %v2568
        %v2634 = vld [vmem:[%s2] sm:$0x3]
        %v2636 = vlaneseq
        %v2637 = vshrl.u32 %v2636, 7
        %v2638 = vsub.s32 0, %v2637
        %v2639 = vrot.slane %v2634, %v2638
        %v2640 = vlaneseq
        %v2641 = vshrl.u32 %v2640, 7
        %v2642 = vsub.s32 1, %v2641
        %v2643 = vrot.slane %v2634, %v2642
        %v2646 = vadd.f32 %v2570, %v2639
        %v2647 = vadd.f32 %v2571, %v2643
        %v2648 = vadd.f32 %v2572, %v2639
        %v2649 = vadd.f32 %v2573, %v2643
        %v2650 = vadd.f32 %v2574, %v2639
        %v2651 = vadd.f32 %v2575, %v2643
        %v2652 = vadd.f32 %v2576, %v2639
        %v2653 = vadd.f32 %v2577, %v2643
        %v2654 = vadd.f32 %v2578, %v2639
        %v2655 = vadd.f32 %v2579, %v2643
        %v2656 = vadd.f32 %v2580, %v2639
        %v2657 = vadd.f32 %v2581, %v2643
        %v2658 = vadd.f32 %v2582, %v2639
        %v2659 = vadd.f32 %v2583, %v2643
        %v2660 = vadd.f32 %v2584, %v2639
        %v2661 = vadd.f32 %v2585, %v2643
        %v2662 = vadd.f32 %v2586, %v2639
        %v2663 = vadd.f32 %v2587, %v2643
        %v2664 = vadd.f32 %v2588, %v2639
        %v2665 = vadd.f32 %v2589, %v2643
        %v2666 = vadd.f32 %v2590, %v2639
        %v2667 = vadd.f32 %v2591, %v2643
        %v2668 = vadd.f32 %v2592, %v2639
        %v2669 = vadd.f32 %v2593, %v2643
        %v2670 = vadd.f32 %v2594, %v2639
        %v2671 = vadd.f32 %v2595, %v2643
        %v2672 = vadd.f32 %v2596, %v2639
        %v2673 = vadd.f32 %v2597, %v2643
        %v2674 = vadd.f32 %v2598, %v2639
        %v2675 = vadd.f32 %v2599, %v2643
        %v2676 = vadd.f32 %v2600, %v2639
        %v2677 = vadd.f32 %v2601, %v2643
        %v2678 = vadd.f32 %v2602, %v2639
        %v2679 = vadd.f32 %v2603, %v2643
        %v2680 = vadd.f32 %v2604, %v2639
        %v2681 = vadd.f32 %v2605, %v2643
        %v2682 = vadd.f32 %v2606, %v2639
        %v2683 = vadd.f32 %v2607, %v2643
        %v2684 = vadd.f32 %v2608, %v2639
        %v2685 = vadd.f32 %v2609, %v2643
        %v2686 = vadd.f32 %v2610, %v2639
        %v2687 = vadd.f32 %v2611, %v2643
        %v2688 = vadd.f32 %v2612, %v2639
        %v2689 = vadd.f32 %v2613, %v2643
        %v2690 = vadd.f32 %v2614, %v2639
        %v2691 = vadd.f32 %v2615, %v2643
        %v2692 = vadd.f32 %v2616, %v2639
        %v2693 = vadd.f32 %v2617, %v2643
        %v2694 = vadd.f32 %v2618, %v2639
        %v2695 = vadd.f32 %v2619, %v2643
        %v2696 = vadd.f32 %v2620, %v2639
        %v2697 = vadd.f32 %v2621, %v2643
        %v2698 = vadd.f32 %v2622, %v2639
        %v2699 = vadd.f32 %v2623, %v2643
        %v2700 = vadd.f32 %v2624, %v2639
        %v2701 = vadd.f32 %v2625, %v2643
        %v2702 = vadd.f32 %v2626, %v2639
        %v2703 = vadd.f32 %v2627, %v2643
        %v2704 = vadd.f32 %v2628, %v2639
        %v2705 = vadd.f32 %v2629, %v2643
        %v2706 = vadd.f32 %v2630, %v2639
        %v2707 = vadd.f32 %v2631, %v2643
        %v2708 = vadd.f32 %v2632, %v2639
        %v2709 = vadd.f32 %v2633, %v2643
        %v2710 = vmax.f32 %v2646, 0.0
        %v2711 = vmax.f32 %v2647, 0.0
        %v2712 = vmax.f32 %v2648, 0.0
        %v2713 = vmax.f32 %v2649, 0.0
        %v2714 = vmax.f32 %v2650, 0.0
        %v2715 = vmax.f32 %v2651, 0.0
        %v2716 = vmax.f32 %v2652, 0.0
        %v2717 = vmax.f32 %v2653, 0.0
        %v2718 = vmax.f32 %v2654, 0.0
        %v2719 = vmax.f32 %v2655, 0.0
        %v2720 = vmax.f32 %v2656, 0.0
        %v2721 = vmax.f32 %v2657, 0.0
        %v2722 = vmax.f32 %v2658, 0.0
        %v2723 = vmax.f32 %v2659, 0.0
        %v2724 = vmax.f32 %v2660, 0.0
        %v2725 = vmax.f32 %v2661, 0.0
        %v2726 = vmax.f32 %v2662, 0.0
        %v2727 = vmax.f32 %v2663, 0.0
        %v2728 = vmax.f32 %v2664, 0.0
        %v2729 = vmax.f32 %v2665, 0.0
        %v2730 = vmax.f32 %v2666, 0.0
        %v2731 = vmax.f32 %v2667, 0.0
        %v2732 = vmax.f32 %v2668, 0.0
        %v2733 = vmax.f32 %v2669, 0.0
        %v2734 = vmax.f32 %v2670, 0.0
        %v2735 = vmax.f32 %v2671, 0.0
        %v2736 = vmax.f32 %v2672, 0.0
        %v2737 = vmax.f32 %v2673, 0.0
        %v2738 = vmax.f32 %v2674, 0.0
        %v2739 = vmax.f32 %v2675, 0.0
        %v2740 = vmax.f32 %v2676, 0.0
        %v2741 = vmax.f32 %v2677, 0.0
        %v2742 = vmax.f32 %v2678, 0.0
        %v2743 = vmax.f32 %v2679, 0.0
        %v2744 = vmax.f32 %v2680, 0.0
        %v2745 = vmax.f32 %v2681, 0.0
        %v2746 = vmax.f32 %v2682, 0.0
        %v2747 = vmax.f32 %v2683, 0.0
        %v2748 = vmax.f32 %v2684, 0.0
        %v2749 = vmax.f32 %v2685, 0.0
        %v2750 = vmax.f32 %v2686, 0.0
        %v2751 = vmax.f32 %v2687, 0.0
        %v2752 = vmax.f32 %v2688, 0.0
        %v2753 = vmax.f32 %v2689, 0.0
        %v2754 = vmax.f32 %v2690, 0.0
        %v2755 = vmax.f32 %v2691, 0.0
        %v2756 = vmax.f32 %v2692, 0.0
        %v2757 = vmax.f32 %v2693, 0.0
        %v2758 = vmax.f32 %v2694, 0.0
        %v2759 = vmax.f32 %v2695, 0.0
        %v2760 = vmax.f32 %v2696, 0.0
        %v2761 = vmax.f32 %v2697, 0.0
        %v2762 = vmax.f32 %v2698, 0.0
        %v2763 = vmax.f32 %v2699, 0.0
        %v2764 = vmax.f32 %v2700, 0.0
        %v2765 = vmax.f32 %v2701, 0.0
        %v2766 = vmax.f32 %v2702, 0.0
        %v2767 = vmax.f32 %v2703, 0.0
        %v2768 = vmax.f32 %v2704, 0.0
        %v2769 = vmax.f32 %v2705, 0.0
        %v2770 = vmax.f32 %v2706, 0.0
        %v2771 = vmax.f32 %v2707, 0.0
        %v2772 = vmax.f32 %v2708, 0.0
        %v2773 = vmax.f32 %v2709, 0.0
        %2838 = vrot.lane.b32.xlu0 %v2710, 56
        %v2839 = vpop.permute.xlu0 %2838
        %2840 = vrot.lane.b32.xlu0 %v2711, 56
        %v2841 = vpop.permute.xlu0 %2840
        %2842 = vrot.lane.b32.xlu0 %v2712, 56
        %v2843 = vpop.permute.xlu0 %2842
        %2844 = vrot.lane.b32.xlu0 %v2713, 56
        %v2845 = vpop.permute.xlu0 %2844
        %2846 = vrot.lane.b32.xlu0 %v2714, 56
        %v2847 = vpop.permute.xlu0 %2846
        %2848 = vrot.lane.b32.xlu0 %v2715, 56
        %v2849 = vpop.permute.xlu0 %2848
        %2850 = vrot.lane.b32.xlu0 %v2716, 56
        %v2851 = vpop.permute.xlu0 %2850
        %2852 = vrot.lane.b32.xlu0 %v2717, 56
        %v2853 = vpop.permute.xlu0 %2852
        %2854 = vrot.lane.b32.xlu0 %v2718, 56
        %v2855 = vpop.permute.xlu0 %2854
        %2856 = vrot.lane.b32.xlu0 %v2719, 56
        %v2857 = vpop.permute.xlu0 %2856
        %2858 = vrot.lane.b32.xlu0 %v2720, 56
        %v2859 = vpop.permute.xlu0 %2858
        %2860 = vrot.lane.b32.xlu0 %v2721, 56
        %v2861 = vpop.permute.xlu0 %2860
        %2862 = vrot.lane.b32.xlu0 %v2722, 56
        %v2863 = vpop.permute.xlu0 %2862
        %2864 = vrot.lane.b32.xlu0 %v2723, 56
        %v2865 = vpop.permute.xlu0 %2864
        %2866 = vrot.lane.b32.xlu0 %v2724, 56
        %v2867 = vpop.permute.xlu0 %2866
        %2868 = vrot.lane.b32.xlu0 %v2725, 56
        %v2869 = vpop.permute.xlu0 %2868
        %2870 = vrot.lane.b32.xlu0 %v2726, 56
        %v2871 = vpop.permute.xlu0 %2870
        %2872 = vrot.lane.b32.xlu0 %v2727, 56
        %v2873 = vpop.permute.xlu0 %2872
        %2874 = vrot.lane.b32.xlu0 %v2728, 56
        %v2875 = vpop.permute.xlu0 %2874
        %2876 = vrot.lane.b32.xlu0 %v2729, 56
        %v2877 = vpop.permute.xlu0 %2876
        %2878 = vrot.lane.b32.xlu0 %v2730, 56
        %v2879 = vpop.permute.xlu0 %2878
        %2880 = vrot.lane.b32.xlu0 %v2731, 56
        %v2881 = vpop.permute.xlu0 %2880
        %2882 = vrot.lane.b32.xlu0 %v2732, 56
        %v2883 = vpop.permute.xlu0 %2882
        %2884 = vrot.lane.b32.xlu0 %v2733, 56
        %v2885 = vpop.permute.xlu0 %2884
        %2886 = vrot.lane.b32.xlu0 %v2734, 56
        %v2887 = vpop.permute.xlu0 %2886
        %2888 = vrot.lane.b32.xlu0 %v2735, 56
        %v2889 = vpop.permute.xlu0 %2888
        %2890 = vrot.lane.b32.xlu0 %v2736, 56
        %v2891 = vpop.permute.xlu0 %2890
        %2892 = vrot.lane.b32.xlu0 %v2737, 56
        %v2893 = vpop.permute.xlu0 %2892
        %2894 = vrot.lane.b32.xlu0 %v2738, 56
        %v2895 = vpop.permute.xlu0 %2894
        %2896 = vrot.lane.b32.xlu0 %v2739, 56
        %v2897 = vpop.permute.xlu0 %2896
        %2898 = vrot.lane.b32.xlu0 %v2740, 56
        %v2899 = vpop.permute.xlu0 %2898
        %2900 = vrot.lane.b32.xlu0 %v2741, 56
        %v2901 = vpop.permute.xlu0 %2900
        %2902 = vrot.lane.b32.xlu0 %v2742, 56
        %v2903 = vpop.permute.xlu0 %2902
        %2904 = vrot.lane.b32.xlu0 %v2743, 56
        %v2905 = vpop.permute.xlu0 %2904
        %2906 = vrot.lane.b32.xlu0 %v2744, 56
        %v2907 = vpop.permute.xlu0 %2906
        %2908 = vrot.lane.b32.xlu0 %v2745, 56
        %v2909 = vpop.permute.xlu0 %2908
        %2910 = vrot.lane.b32.xlu0 %v2746, 56
        %v2911 = vpop.permute.xlu0 %2910
        %2912 = vrot.lane.b32.xlu0 %v2747, 56
        %v2913 = vpop.permute.xlu0 %2912
        %2914 = vrot.lane.b32.xlu0 %v2748, 56
        %v2915 = vpop.permute.xlu0 %2914
        %2916 = vrot.lane.b32.xlu0 %v2749, 56
        %v2917 = vpop.permute.xlu0 %2916
        %2918 = vrot.lane.b32.xlu0 %v2750, 56
        %v2919 = vpop.permute.xlu0 %2918
        %2920 = vrot.lane.b32.xlu0 %v2751, 56
        %v2921 = vpop.permute.xlu0 %2920
        %2922 = vrot.lane.b32.xlu0 %v2752, 56
        %v2923 = vpop.permute.xlu0 %2922
        %2924 = vrot.lane.b32.xlu0 %v2753, 56
        %v2925 = vpop.permute.xlu0 %2924
        %2926 = vrot.lane.b32.xlu0 %v2754, 56
        %v2927 = vpop.permute.xlu0 %2926
        %2928 = vrot.lane.b32.xlu0 %v2755, 56
        %v2929 = vpop.permute.xlu0 %2928
        %2930 = vrot.lane.b32.xlu0 %v2756, 56
        %v2931 = vpop.permute.xlu0 %2930
        %2932 = vrot.lane.b32.xlu0 %v2757, 56
        %v2933 = vpop.permute.xlu0 %2932
        %2934 = vrot.lane.b32.xlu0 %v2758, 56
        %v2935 = vpop.permute.xlu0 %2934
        %2936 = vrot.lane.b32.xlu0 %v2759, 56
        %v2937 = vpop.permute.xlu0 %2936
        %2938 = vrot.lane.b32.xlu0 %v2760, 56
        %v2939 = vpop.permute.xlu0 %2938
        %2940 = vrot.lane.b32.xlu0 %v2761, 56
        %v2941 = vpop.permute.xlu0 %2940
        %2942 = vrot.lane.b32.xlu0 %v2762, 56
        %v2943 = vpop.permute.xlu0 %2942
        %2944 = vrot.lane.b32.xlu0 %v2763, 56
        %v2945 = vpop.permute.xlu0 %2944
        %2946 = vrot.lane.b32.xlu0 %v2764, 56
        %v2947 = vpop.permute.xlu0 %2946
        %2948 = vrot.lane.b32.xlu0 %v2765, 56
        %v2949 = vpop.permute.xlu0 %2948
        %2950 = vrot.lane.b32.xlu0 %v2766, 56
        %v2951 = vpop.permute.xlu0 %2950
        %2952 = vrot.lane.b32.xlu0 %v2767, 56
        %v2953 = vpop.permute.xlu0 %2952
        %2954 = vrot.lane.b32.xlu0 %v2768, 56
        %v2955 = vpop.permute.xlu0 %2954
        %2956 = vrot.lane.b32.xlu0 %v2769, 56
        %v2957 = vpop.permute.xlu0 %2956
        %2958 = vrot.lane.b32.xlu0 %v2770, 56
        %v2959 = vpop.permute.xlu0 %2958
        %2960 = vrot.lane.b32.xlu0 %v2771, 56
        %v2961 = vpop.permute.xlu0 %2960
        %2962 = vrot.lane.b32.xlu0 %v2772, 56
        %v2963 = vpop.permute.xlu0 %2962
        %2964 = vrot.lane.b32.xlu0 %v2773, 56
        %v2965 = vpop.permute.xlu0 %2964
        %vm2966 = vcmask 457728
        %v2967 = vsel %vm2966, %v2839, %v2841
        %v2968 = vsel %vm2966, %v2843, %v2845
        %v2969 = vsel %vm2966, %v2847, %v2849
        %v2970 = vsel %vm2966, %v2851, %v2853
        %v2971 = vsel %vm2966, %v2855, %v2857
        %v2972 = vsel %vm2966, %v2859, %v2861
        %v2973 = vsel %vm2966, %v2863, %v2865
        %v2974 = vsel %vm2966, %v2867, %v2869
        %v2975 = vsel %vm2966, %v2871, %v2873
        %v2976 = vsel %vm2966, %v2875, %v2877
        %v2977 = vsel %vm2966, %v2879, %v2881
        %v2978 = vsel %vm2966, %v2883, %v2885
        %v2979 = vsel %vm2966, %v2887, %v2889
        %v2980 = vsel %vm2966, %v2891, %v2893
        %v2981 = vsel %vm2966, %v2895, %v2897
        %v2982 = vsel %vm2966, %v2899, %v2901
        %v2983 = vsel %vm2966, %v2903, %v2905
        %v2984 = vsel %vm2966, %v2907, %v2909
        %v2985 = vsel %vm2966, %v2911, %v2913
        %v2986 = vsel %vm2966, %v2915, %v2917
        %v2987 = vsel %vm2966, %v2919, %v2921
        %v2988 = vsel %vm2966, %v2923, %v2925
        %v2989 = vsel %vm2966, %v2927, %v2929
        %v2990 = vsel %vm2966, %v2931, %v2933
        %v2991 = vsel %vm2966, %v2935, %v2937
        %v2992 = vsel %vm2966, %v2939, %v2941
        %v2993 = vsel %vm2966, %v2943, %v2945
        %v2994 = vsel %vm2966, %v2947, %v2949
        %v2995 = vsel %vm2966, %v2951, %v2953
        %v2996 = vsel %vm2966, %v2955, %v2957
        %v2997 = vsel %vm2966, %v2959, %v2961
        %v2998 = vsel %vm2966, %v2963, %v2965
        %v3031 = vmax.f32 %v2710, %v2967
        %v3032 = vmax.f32 %v2712, %v2968
        %v3033 = vmax.f32 %v2714, %v2969
        %v3034 = vmax.f32 %v2716, %v2970
        %v3035 = vmax.f32 %v2718, %v2971
        %v3036 = vmax.f32 %v2720, %v2972
        %v3037 = vmax.f32 %v2722, %v2973
        %v3038 = vmax.f32 %v2724, %v2974
        %v3039 = vmax.f32 %v2726, %v2975
        %v3040 = vmax.f32 %v2728, %v2976
        %v3041 = vmax.f32 %v2730, %v2977
        %v3042 = vmax.f32 %v2732, %v2978
        %v3043 = vmax.f32 %v2734, %v2979
        %v3044 = vmax.f32 %v2736, %v2980
        %v3045 = vmax.f32 %v2738, %v2981
        %v3046 = vmax.f32 %v2740, %v2982
        %v3047 = vmax.f32 %v2742, %v2983
        %v3048 = vmax.f32 %v2744, %v2984
        %v3049 = vmax.f32 %v2746, %v2985
        %v3050 = vmax.f32 %v2748, %v2986
        %v3051 = vmax.f32 %v2750, %v2987
        %v3052 = vmax.f32 %v2752, %v2988
        %v3053 = vmax.f32 %v2754, %v2989
        %v3054 = vmax.f32 %v2756, %v2990
        %v3055 = vmax.f32 %v2758, %v2991
        %v3056 = vmax.f32 %v2760, %v2992
        %v3057 = vmax.f32 %v2762, %v2993
        %v3058 = vmax.f32 %v2764, %v2994
        %v3059 = vmax.f32 %v2766, %v2995
        %v3060 = vmax.f32 %v2768, %v2996
        %v3061 = vmax.f32 %v2770, %v2997
        %v3062 = vmax.f32 %v2772, %v2998
        %vm3063 = vcmask 588800
        %3064 = vst.msk [vmem:[#allocation2] sm:$0xff] %vm3063, %v3031
        %3065 = vst.msk [vmem:[#allocation2 + $0x8] sm:$0xff] %vm3063, %v3032
        %3066 = vst.msk [vmem:[#allocation2 + $0x10] sm:$0xff] %vm3063, %v3033
        %3067 = vst.msk [vmem:[#allocation2 + $0x18] sm:$0xff] %vm3063, %v3034
        %3068 = vst.msk [vmem:[#allocation2 + $0x20] sm:$0xff] %vm3063, %v3035
        %3069 = vst.msk [vmem:[#allocation2 + $0x28] sm:$0xff] %vm3063, %v3036
        %3070 = vst.msk [vmem:[#allocation2 + $0x30] sm:$0xff] %vm3063, %v3037
        %3071 = vst.msk [vmem:[#allocation2 + $0x38] sm:$0xff] %vm3063, %v3038
        %3072 = vst.msk [vmem:[#allocation2 + $0x40] sm:$0xff] %vm3063, %v3039
        %3073 = vst.msk [vmem:[#allocation2 + $0x48] sm:$0xff] %vm3063, %v3040
        %3074 = vst.msk [vmem:[#allocation2 + $0x50] sm:$0xff] %vm3063, %v3041
        %3075 = vst.msk [vmem:[#allocation2 + $0x58] sm:$0xff] %vm3063, %v3042
        %3076 = vst.msk [vmem:[#allocation2 + $0x60] sm:$0xff] %vm3063, %v3043
        %3077 = vst.msk [vmem:[#allocation2 + $0x68] sm:$0xff] %vm3063, %v3044
        %3078 = vst.msk [vmem:[#allocation2 + $0x70] sm:$0xff] %vm3063, %v3045
        %3079 = vst.msk [vmem:[#allocation2 + $0x78] sm:$0xff] %vm3063, %v3046
        %3080 = vst.msk [vmem:[#allocation2 + $0x80] sm:$0xff] %vm3063, %v3047
        %3081 = vst.msk [vmem:[#allocation2 + $0x88] sm:$0xff] %vm3063, %v3048
        %3082 = vst.msk [vmem:[#allocation2 + $0x90] sm:$0xff] %vm3063, %v3049
        %3083 = vst.msk [vmem:[#allocation2 + $0x98] sm:$0xff] %vm3063, %v3050
        %3084 = vst.msk [vmem:[#allocation2 + $0xa0] sm:$0xff] %vm3063, %v3051
        %3085 = vst.msk [vmem:[#allocation2 + $0xa8] sm:$0xff] %vm3063, %v3052
        %3086 = vst.msk [vmem:[#allocation2 + $0xb0] sm:$0xff] %vm3063, %v3053
        %3087 = vst.msk [vmem:[#allocation2 + $0xb8] sm:$0xff] %vm3063, %v3054
        %3088 = vst.msk [vmem:[#allocation2 + $0xc0] sm:$0xff] %vm3063, %v3055
        %3089 = vst.msk [vmem:[#allocation2 + $0xc8] sm:$0xff] %vm3063, %v3056
        %3090 = vst.msk [vmem:[#allocation2 + $0xd0] sm:$0xff] %vm3063, %v3057
        %3091 = vst.msk [vmem:[#allocation2 + $0xd8] sm:$0xff] %vm3063, %v3058
        %3092 = vst.msk [vmem:[#allocation2 + $0xe0] sm:$0xff] %vm3063, %v3059
        %3093 = vst.msk [vmem:[#allocation2 + $0xe8] sm:$0xff] %vm3063, %v3060
        %3094 = vst.msk [vmem:[#allocation2 + $0xf0] sm:$0xff] %vm3063, %v3061
        %3095 = vst.msk [vmem:[#allocation2 + $0xf8] sm:$0xff] %vm3063, %v3062
        %v3096 = vld [vmem:[#allocation2] ss:$2 sm:$0xff]
        %s3097 = scalar_lea.vmem [#allocation2], 16
        %v3098 = vld [vmem:[%s3097] ss:$2 sm:$0xff]
        %s3099 = scalar_lea.vmem [#allocation2], 32
        %v3100 = vld [vmem:[%s3099] ss:$2 sm:$0xff]
        %s3101 = scalar_lea.vmem [#allocation2], 48
        %v3102 = vld [vmem:[%s3101] ss:$2 sm:$0xff]
        %s3103 = scalar_lea.vmem [#allocation2], 64
        %v3104 = vld [vmem:[%s3103] ss:$2 sm:$0xff]
        %s3105 = scalar_lea.vmem [#allocation2], 80
        %v3106 = vld [vmem:[%s3105] ss:$2 sm:$0xff]
        %s3107 = scalar_lea.vmem [#allocation2], 96
        %v3108 = vld [vmem:[%s3107] ss:$2 sm:$0xff]
        %s3109 = scalar_lea.vmem [#allocation2], 112
        %v3110 = vld [vmem:[%s3109] ss:$2 sm:$0xff]
        %s3111 = scalar_lea.vmem [#allocation2], 128
        %v3112 = vld [vmem:[%s3111] ss:$2 sm:$0xff]
        %s3113 = scalar_lea.vmem [#allocation2], 144
        %v3114 = vld [vmem:[%s3113] ss:$2 sm:$0xff]
        %s3115 = scalar_lea.vmem [#allocation2], 160
        %v3116 = vld [vmem:[%s3115] ss:$2 sm:$0xff]
        %s3117 = scalar_lea.vmem [#allocation2], 176
        %v3118 = vld [vmem:[%s3117] ss:$2 sm:$0xff]
        %s3119 = scalar_lea.vmem [#allocation2], 192
        %v3120 = vld [vmem:[%s3119] ss:$2 sm:$0xff]
        %s3121 = scalar_lea.vmem [#allocation2], 208
        %v3122 = vld [vmem:[%s3121] ss:$2 sm:$0xff]
        %s3123 = scalar_lea.vmem [#allocation2], 224
        %v3124 = vld [vmem:[%s3123] ss:$2 sm:$0xff]
        %s3125 = scalar_lea.vmem [#allocation2], 240
        %v3126 = vld [vmem:[%s3125] ss:$2 sm:$0xff]
        %s3127 = scalar_lea.vmem [#allocation2], 1
        %v3128 = vld [vmem:[%s3127] ss:$2 sm:$0xff]
        %s3129 = scalar_lea.vmem [#allocation2], 17
        %v3130 = vld [vmem:[%s3129] ss:$2 sm:$0xff]
        %s3131 = scalar_lea.vmem [#allocation2], 33
        %v3132 = vld [vmem:[%s3131] ss:$2 sm:$0xff]
        %s3133 = scalar_lea.vmem [#allocation2], 49
        %v3134 = vld [vmem:[%s3133] ss:$2 sm:$0xff]
        %s3135 = scalar_lea.vmem [#allocation2], 65
        %v3136 = vld [vmem:[%s3135] ss:$2 sm:$0xff]
        %s3137 = scalar_lea.vmem [#allocation2], 81
        %v3138 = vld [vmem:[%s3137] ss:$2 sm:$0xff]
        %s3139 = scalar_lea.vmem [#allocation2], 97
        %v3140 = vld [vmem:[%s3139] ss:$2 sm:$0xff]
        %s3141 = scalar_lea.vmem [#allocation2], 113
        %v3142 = vld [vmem:[%s3141] ss:$2 sm:$0xff]
        %s3143 = scalar_lea.vmem [#allocation2], 129
        %v3144 = vld [vmem:[%s3143] ss:$2 sm:$0xff]
        %s3145 = scalar_lea.vmem [#allocation2], 145
        %v3146 = vld [vmem:[%s3145] ss:$2 sm:$0xff]
        %s3147 = scalar_lea.vmem [#allocation2], 161
        %v3148 = vld [vmem:[%s3147] ss:$2 sm:$0xff]
        %s3149 = scalar_lea.vmem [#allocation2], 177
        %v3150 = vld [vmem:[%s3149] ss:$2 sm:$0xff]
        %s3151 = scalar_lea.vmem [#allocation2], 193
        %v3152 = vld [vmem:[%s3151] ss:$2 sm:$0xff]
        %s3153 = scalar_lea.vmem [#allocation2], 209
        %v3154 = vld [vmem:[%s3153] ss:$2 sm:$0xff]
        %s3155 = scalar_lea.vmem [#allocation2], 225
        %v3156 = vld [vmem:[%s3155] ss:$2 sm:$0xff]
        %s3157 = scalar_lea.vmem [#allocation2], 241
        %v3158 = vld [vmem:[%s3157] ss:$2 sm:$0xff]
        %v3159 = vmax.f32 %v3096, %v3128
        %v3160 = vmax.f32 %v3098, %v3130
        %v3161 = vmax.f32 %v3100, %v3132
        %v3162 = vmax.f32 %v3102, %v3134
        %v3163 = vmax.f32 %v3104, %v3136
        %v3164 = vmax.f32 %v3106, %v3138
        %v3165 = vmax.f32 %v3108, %v3140
        %v3166 = vmax.f32 %v3110, %v3142
        %v3167 = vmax.f32 %v3112, %v3144
        %v3168 = vmax.f32 %v3114, %v3146
        %v3169 = vmax.f32 %v3116, %v3148
        %v3170 = vmax.f32 %v3118, %v3150
        %v3171 = vmax.f32 %v3120, %v3152
        %v3172 = vmax.f32 %v3122, %v3154
        %v3173 = vmax.f32 %v3124, %v3156
        %v3174 = vmax.f32 %v3126, %v3158
        %v3175 = vld [vmem:[%s3] sm:$0xff]
        %v3176 = vld [vmem:[%s3 + $0x8] sm:$0xff]
        %v3177 = vld [vmem:[%s3 + $0x10] sm:$0xff]
        %v3178 = vld [vmem:[%s3 + $0x18] sm:$0xff]
        %v3179 = vld [vmem:[%s3 + $0x20] sm:$0xff]
        %v3180 = vld [vmem:[%s3 + $0x28] sm:$0xff]
        %v3181 = vld [vmem:[%s3 + $0x30] sm:$0xff]
        %v3182 = vld [vmem:[%s3 + $0x38] sm:$0xff]
        %v3183 = vld [vmem:[%s3 + $0x40] sm:$0xff]
        %v3200 = vrot.slane %v3159, 1
        %v3201 = vrot.slane %v3160, 1
        %v3202 = vsel %vm478, %v3200, %v3201
        %v3203 = vrot.slane %v3161, 1
        %v3204 = vrot.slane %v3162, 1
        %v3205 = vsel %vm478, %v3203, %v3204
        %v3206 = vrot.slane %v3163, 1
        %v3207 = vrot.slane %v3164, 1
        %v3208 = vsel %vm478, %v3206, %v3207
        %v3209 = vrot.slane %v3165, 1
        %v3210 = vrot.slane %v3166, 1
        %v3211 = vsel %vm478, %v3209, %v3210
        %v3212 = vrot.slane %v3167, 1
        %v3213 = vrot.slane %v3168, 1
        %v3214 = vsel %vm478, %v3212, %v3213
        %v3215 = vrot.slane %v3169, 1
        %v3216 = vrot.slane %v3170, 1
        %v3217 = vsel %vm478, %v3215, %v3216
        %v3218 = vrot.slane %v3171, 1
        %v3219 = vrot.slane %v3172, 1
        %v3220 = vsel %vm478, %v3218, %v3219
        %v3221 = vrot.slane %v3173, 1
        %v3222 = vrot.slane %v3174, 1
        %v3223 = vsel %vm478, %v3221, %v3222
        %s3224 = scalar_lea.vmem %s3, 72
        %v3225 = vld [vmem:[%s3224] sm:$0xff]
        %v3226 = vld [vmem:[%s3224 + $0x8] sm:$0xff]
        %v3227 = vld [vmem:[%s3224 + $0x10] sm:$0xff]
        %v3228 = vld [vmem:[%s3224 + $0x18] sm:$0xff]
        %v3229 = vld [vmem:[%s3224 + $0x20] sm:$0xff]
        %v3230 = vld [vmem:[%s3224 + $0x28] sm:$0xff]
        %v3231 = vld [vmem:[%s3224 + $0x30] sm:$0xff]
        %v3232 = vld [vmem:[%s3224 + $0x38] sm:$0xff]
        %v3233 = vld [vmem:[%s3224 + $0x40] sm:$0xff]
        %v3234 = vsel %vm3063, %v3202, 0
        %v3236 = vsel %vm3063, %v3205, 0
        %v3238 = vsel %vm3063, %v3208, 0
        %v3240 = vsel %vm3063, %v3211, 0
        %v3242 = vsel %vm3063, %v3214, 0
        %v3244 = vsel %vm3063, %v3217, 0
        %v3246 = vsel %vm3063, %v3220, 0
        %v3248 = vsel %vm3063, %v3223, 0
        %3250 = vmatprep.subr.mxu0 0.0
        %3251 = vmatpush1.msra.mxu0 %v3225
        %3252 = vmatprep.subr.mxu0 0.0
        %3253 = vmatpush1.msra.mxu0 %v3226
        %3254 = vmatprep.subr.mxu0 0.0
        %3255 = vmatpush1.msra.mxu0 %v3227
        %3256 = vmatprep.subr.mxu0 0.0
        %3257 = vmatpush1.msra.mxu0 %v3228
        %3258 = vmatprep.subr.mxu0 0.0
        %3259 = vmatpush1.msra.mxu0 %v3229
        %3260 = vmatprep.subr.mxu0 0.0
        %3261 = vmatpush1.msra.mxu0 %v3230
        %3262 = vmatprep.subr.mxu0 0.0
        %3263 = vmatpush1.msra.mxu0 %v3231
        %3264 = vmatprep.subr.mxu0 0.0
        %3265 = vmatpush1.msra.mxu0 %v3232
        %3266 = vmatprep.subr.mxu0 0.0
        %3267 = vmatpush1.msra.mxu0 %v3233
        %3268 = vmatprep.subr.mxu0 0.0
        %3269 = vmatpush1.msra.mxu0 0.0
        %3270 = vmatprep.subr.mxu0 0.0
        %3271 = vmatpush1.msra.mxu0 0.0
        %3272 = vmatprep.subr.mxu0 0.0
        %3273 = vmatpush1.msra.mxu0 0.0
        %3274 = vmatprep.subr.mxu0 0.0
        %3275 = vmatpush1.msra.mxu0 0.0
        %3276 = vmatprep.subr.mxu0 0.0
        %3277 = vmatpush1.msra.mxu0 0.0
        %3278 = vmatprep.subr.mxu0 0.0
        %3279 = vmatpush1.msra.mxu0 0.0
        %3280 = vmatprep.subr.mxu0 0.0
        %3281 = vmatpush1.msra.mxu0 0.0
        %3282 = vmatprep.subr.mxu0 0.0
        %3283 = vmatpush1.msra.mxu0 0.0
        %3284 = vmatprep.subr.mxu0 0.0
        %3285 = vmatpush1.msra.mxu0 0.0
        %3286 = vmatprep.subr.mxu0 0.0
        %3287 = vmatpush1.msra.mxu0 0.0
        %3288 = vmatprep.subr.mxu0 0.0
        %3289 = vmatpush1.msra.mxu0 0.0
        %3290 = vmatprep.subr.mxu0 0.0
        %3291 = vmatpush1.msra.mxu0 0.0
        %3292 = vmatprep.subr.mxu0 0.0
        %3293 = vmatpush1.msra.mxu0 0.0
        %3294 = vmatprep.subr.mxu0 0.0
        %3295 = vmatpush1.msra.mxu0 0.0
        %3296 = vmatprep.subr.mxu0 0.0
        %3297 = vmatpush1.msra.mxu0 0.0
        %3298 = vmatprep.subr.mxu0 0.0
        %3299 = vmatpush1.msra.mxu0 0.0
        %3300 = vmatprep.subr.mxu0 0.0
        %3301 = vmatpush1.msra.mxu0 0.0
        %3302 = vmatprep.subr.mxu0 0.0
        %3303 = vmatpush1.msra.mxu0 0.0
        %3304 = vmatprep.subr.mxu0 0.0
        %3305 = vmatpush1.msra.mxu0 0.0
        %3306 = vmatprep.subr.mxu0 0.0
        %3307 = vmatpush1.msra.mxu0 0.0
        %3308 = vmatprep.subr.mxu0 0.0
        %3309 = vmatpush1.msra.mxu0 0.0
        %3310 = vmatprep.subr.mxu0 0.0
        %3311 = vmatpush1.msra.mxu0 0.0
        %3312 = vmatprep.subr.mxu0 0.0
        %3313 = vmatpush1.msra.mxu0 0.0
        %3314 = vmatprep.mubr.f32.mxu0 0.0
        %3315 = vmatmul.mubr.f32.gmra.mrb[0].mxu0 %v3234
        %v3316 = vpop.f32.mrb[0].mxu0
        %v3317 = vadd.f32 0.0, %v3316
        %v3318 = vpop.f32.mrb[0].mxu0
        %3319 = vmatprep.mubr.f32.mxu0 0.0
        %3320 = vmatmul.mubr.f32.gmra.mrb[0].mxu0 %v3236
        %v3321 = vpop.f32.mrb[0].mxu0
        %v3322 = vadd.f32 0.0, %v3321
        %v3323 = vpop.f32.mrb[0].mxu0
        %3324 = vmatprep.mubr.f32.mxu0 0.0
        %3325 = vmatmul.mubr.f32.gmra.mrb[0].mxu0 %v3238
        %v3326 = vpop.f32.mrb[0].mxu0
        %v3327 = vadd.f32 0.0, %v3326
        %v3328 = vpop.f32.mrb[0].mxu0
        %3329 = vmatprep.mubr.f32.mxu0 0.0
        %3330 = vmatmul.mubr.f32.gmra.mrb[0].mxu0 %v3240
        %v3331 = vpop.f32.mrb[0].mxu0
        %v3332 = vadd.f32 0.0, %v3331
        %v3333 = vpop.f32.mrb[0].mxu0
        %3334 = vmatprep.mubr.f32.mxu0 0.0
        %3335 = vmatmul.mubr.f32.gmra.mrb[0].mxu0 %v3242
        %v3336 = vpop.f32.mrb[0].mxu0
        %v3337 = vadd.f32 0.0, %v3336
        %v3338 = vpop.f32.mrb[0].mxu0
        %3339 = vmatprep.mubr.f32.mxu0 0.0
        %3340 = vmatmul.mubr.f32.gmra.mrb[0].mxu0 %v3244
        %v3341 = vpop.f32.mrb[0].mxu0
        %v3342 = vadd.f32 0.0, %v3341
        %v3343 = vpop.f32.mrb[0].mxu0
        %3344 = vmatprep.mubr.f32.mxu0 0.0
        %3345 = vmatmul.mubr.f32.gmra.mrb[0].mxu0 %v3246
        %v3346 = vpop.f32.mrb[0].mxu0
        %v3347 = vadd.f32 0.0, %v3346
        %v3348 = vpop.f32.mrb[0].mxu0
        %3349 = vmatprep.mubr.f32.mxu0 0.0
        %3350 = vmatmul.mubr.f32.gmra.mrb[0].mxu0 %v3248
        %v3351 = vpop.f32.mrb[0].mxu0
        %v3352 = vadd.f32 0.0, %v3351
        %v3353 = vpop.f32.mrb[0].mxu0
        %3354 = vdwg.mxu0
        %v3355 = vsel %vm3063, %v3159, 0
        %v3357 = vsel %vm3063, %v3161, 0
        %v3359 = vsel %vm3063, %v3163, 0
        %v3361 = vsel %vm3063, %v3165, 0
        %v3363 = vsel %vm3063, %v3167, 0
        %v3365 = vsel %vm3063, %v3169, 0
        %v3367 = vsel %vm3063, %v3171, 0
        %v3369 = vsel %vm3063, %v3173, 0
        %3371 = vmatprep.subr.mxu0 0.0
        %3372 = vmatpush1.msra.mxu0 %v3175
        %3373 = vmatprep.subr.mxu0 0.0
        %3374 = vmatpush1.msra.mxu0 %v3176
        %3375 = vmatprep.subr.mxu0 0.0
        %3376 = vmatpush1.msra.mxu0 %v3177
        %3377 = vmatprep.subr.mxu0 0.0
        %3378 = vmatpush1.msra.mxu0 %v3178
        %3379 = vmatprep.subr.mxu0 0.0
        %3380 = vmatpush1.msra.mxu0 %v3179
        %3381 = vmatprep.subr.mxu0 0.0
        %3382 = vmatpush1.msra.mxu0 %v3180
        %3383 = vmatprep.subr.mxu0 0.0
        %3384 = vmatpush1.msra.mxu0 %v3181
        %3385 = vmatprep.subr.mxu0 0.0
        %3386 = vmatpush1.msra.mxu0 %v3182
        %3387 = vmatprep.subr.mxu0 0.0
        %3388 = vmatpush1.msra.mxu0 %v3183
        %3389 = vmatprep.subr.mxu0 0.0
        %3390 = vmatpush1.msra.mxu0 0.0
        %3391 = vmatprep.subr.mxu0 0.0
        %3392 = vmatpush1.msra.mxu0 0.0
        %3393 = vmatprep.subr.mxu0 0.0
        %3394 = vmatpush1.msra.mxu0 0.0
        %3395 = vmatprep.subr.mxu0 0.0
        %3396 = vmatpush1.msra.mxu0 0.0
        %3397 = vmatprep.subr.mxu0 0.0
        %3398 = vmatpush1.msra.mxu0 0.0
        %3399 = vmatprep.subr.mxu0 0.0
        %3400 = vmatpush1.msra.mxu0 0.0
        %3401 = vmatprep.subr.mxu0 0.0
        %3402 = vmatpush1.msra.mxu0 0.0
        %3403 = vmatprep.subr.mxu0 0.0
        %3404 = vmatpush1.msra.mxu0 0.0
        %3405 = vmatprep.subr.mxu0 0.0
        %3406 = vmatpush1.msra.mxu0 0.0
        %3407 = vmatprep.subr.mxu0 0.0
        %3408 = vmatpush1.msra.mxu0 0.0
        %3409 = vmatprep.subr.mxu0 0.0
        %3410 = vmatpush1.msra.mxu0 0.0
        %3411 = vmatprep.subr.mxu0 0.0
        %3412 = vmatpush1.msra.mxu0 0.0
        %3413 = vmatprep.subr.mxu0 0.0
        %3414 = vmatpush1.msra.mxu0 0.0
        %3415 = vmatprep.subr.mxu0 0.0
        %3416 = vmatpush1.msra.mxu0 0.0
        %3417 = vmatprep.subr.mxu0 0.0
        %3418 = vmatpush1.msra.mxu0 0.0
        %3419 = vmatprep.subr.mxu0 0.0
        %3420 = vmatpush1.msra.mxu0 0.0
        %3421 = vmatprep.subr.mxu0 0.0
        %3422 = vmatpush1.msra.mxu0 0.0
        %3423 = vmatprep.subr.mxu0 0.0
        %3424 = vmatpush1.msra.mxu0 0.0
        %3425 = vmatprep.subr.mxu0 0.0
        %3426 = vmatpush1.msra.mxu0 0.0
        %3427 = vmatprep.subr.mxu0 0.0
        %3428 = vmatpush1.msra.mxu0 0.0
        %3429 = vmatprep.subr.mxu0 0.0
        %3430 = vmatpush1.msra.mxu0 0.0
        %3431 = vmatprep.subr.mxu0 0.0
        %3432 = vmatpush1.msra.mxu0 0.0
        %3433 = vmatprep.subr.mxu0 0.0
        %3434 = vmatpush1.msra.mxu0 0.0
        %3435 = vmatprep.mubr.f32.mxu0 0.0
        %3436 = vmatmul.mubr.f32.gmra.mrb[0].mxu0 %v3355
        %v3437 = vpop.f32.mrb[0].mxu0
        %v3438 = vadd.f32 %v3317, %v3437
        %v3439 = vpop.f32.mrb[0].mxu0
        %3440 = vmatprep.mubr.f32.mxu0 0.0
        %3441 = vmatmul.mubr.f32.gmra.mrb[0].mxu0 %v3357
        %v3442 = vpop.f32.mrb[0].mxu0
        %v3443 = vadd.f32 %v3322, %v3442
        %v3444 = vpop.f32.mrb[0].mxu0
        %3445 = vmatprep.mubr.f32.mxu0 0.0
        %3446 = vmatmul.mubr.f32.gmra.mrb[0].mxu0 %v3359
        %v3447 = vpop.f32.mrb[0].mxu0
        %v3448 = vadd.f32 %v3327, %v3447
        %v3449 = vpop.f32.mrb[0].mxu0
        %3450 = vmatprep.mubr.f32.mxu0 0.0
        %3451 = vmatmul.mubr.f32.gmra.mrb[0].mxu0 %v3361
        %v3452 = vpop.f32.mrb[0].mxu0
        %v3453 = vadd.f32 %v3332, %v3452
        %v3454 = vpop.f32.mrb[0].mxu0
        %3455 = vmatprep.mubr.f32.mxu0 0.0
        %3456 = vmatmul.mubr.f32.gmra.mrb[0].mxu0 %v3363
        %v3457 = vpop.f32.mrb[0].mxu0
        %v3458 = vadd.f32 %v3337, %v3457
        %v3459 = vpop.f32.mrb[0].mxu0
        %3460 = vmatprep.mubr.f32.mxu0 0.0
        %3461 = vmatmul.mubr.f32.gmra.mrb[0].mxu0 %v3365
        %v3462 = vpop.f32.mrb[0].mxu0
        %v3463 = vadd.f32 %v3342, %v3462
        %v3464 = vpop.f32.mrb[0].mxu0
        %3465 = vmatprep.mubr.f32.mxu0 0.0
        %3466 = vmatmul.mubr.f32.gmra.mrb[0].mxu0 %v3367
        %v3467 = vpop.f32.mrb[0].mxu0
        %v3468 = vadd.f32 %v3347, %v3467
        %v3469 = vpop.f32.mrb[0].mxu0
        %3470 = vmatprep.mubr.f32.mxu0 0.0
        %3471 = vmatmul.mubr.f32.gmra.mrb[0].mxu0 %v3369
        %v3472 = vpop.f32.mrb[0].mxu0
        %v3473 = vadd.f32 %v3352, %v3472
        %v3474 = vpop.f32.mrb[0].mxu0
        %3475 = vdwg.mxu0
        %v3476 = vrot.slane %v3159, 2
        %v3477 = vrot.slane %v3160, 2
        %v3478 = vsel %vm1216, %v3476, %v3477
        %v3479 = vrot.slane %v3161, 2
        %v3480 = vrot.slane %v3162, 2
        %v3481 = vsel %vm1216, %v3479, %v3480
        %v3482 = vrot.slane %v3163, 2
        %v3483 = vrot.slane %v3164, 2
        %v3484 = vsel %vm1216, %v3482, %v3483
        %v3485 = vrot.slane %v3165, 2
        %v3486 = vrot.slane %v3166, 2
        %v3487 = vsel %vm1216, %v3485, %v3486
        %v3488 = vrot.slane %v3167, 2
        %v3489 = vrot.slane %v3168, 2
        %v3490 = vsel %vm1216, %v3488, %v3489
        %v3491 = vrot.slane %v3169, 2
        %v3492 = vrot.slane %v3170, 2
        %v3493 = vsel %vm1216, %v3491, %v3492
        %v3494 = vrot.slane %v3171, 2
        %v3495 = vrot.slane %v3172, 2
        %v3496 = vsel %vm1216, %v3494, %v3495
        %v3497 = vrot.slane %v3173, 2
        %v3498 = vrot.slane %v3174, 2
        %v3499 = vsel %vm1216, %v3497, %v3498
        %s3500 = scalar_lea.vmem %s3, 144
        %v3501 = vld [vmem:[%s3500] sm:$0xff]
        %v3502 = vld [vmem:[%s3500 + $0x8] sm:$0xff]
        %v3503 = vld [vmem:[%s3500 + $0x10] sm:$0xff]
        %v3504 = vld [vmem:[%s3500 + $0x18] sm:$0xff]
        %v3505 = vld [vmem:[%s3500 + $0x20] sm:$0xff]
        %v3506 = vld [vmem:[%s3500 + $0x28] sm:$0xff]
        %v3507 = vld [vmem:[%s3500 + $0x30] sm:$0xff]
        %v3508 = vld [vmem:[%s3500 + $0x38] sm:$0xff]
        %v3509 = vld [vmem:[%s3500 + $0x40] sm:$0xff]
        %v3510 = vsel %vm3063, %v3478, 0
        %v3512 = vsel %vm3063, %v3481, 0
        %v3514 = vsel %vm3063, %v3484, 0
        %v3516 = vsel %vm3063, %v3487, 0
        %v3518 = vsel %vm3063, %v3490, 0
        %v3520 = vsel %vm3063, %v3493, 0
        %v3522 = vsel %vm3063, %v3496, 0
        %v3524 = vsel %vm3063, %v3499, 0
        %3526 = vmatprep.subr.mxu0 0.0
        %3527 = vmatpush1.msra.mxu0 %v3501
        %3528 = vmatprep.subr.mxu0 0.0
        %3529 = vmatpush1.msra.mxu0 %v3502
        %3530 = vmatprep.subr.mxu0 0.0
        %3531 = vmatpush1.msra.mxu0 %v3503
        %3532 = vmatprep.subr.mxu0 0.0
        %3533 = vmatpush1.msra.mxu0 %v3504
        %3534 = vmatprep.subr.mxu0 0.0
        %3535 = vmatpush1.msra.mxu0 %v3505
        %3536 = vmatprep.subr.mxu0 0.0
        %3537 = vmatpush1.msra.mxu0 %v3506
        %3538 = vmatprep.subr.mxu0 0.0
        %3539 = vmatpush1.msra.mxu0 %v3507
        %3540 = vmatprep.subr.mxu0 0.0
        %3541 = vmatpush1.msra.mxu0 %v3508
        %3542 = vmatprep.subr.mxu0 0.0
        %3543 = vmatpush1.msra.mxu0 %v3509
        %3544 = vmatprep.subr.mxu0 0.0
        %3545 = vmatpush1.msra.mxu0 0.0
        %3546 = vmatprep.subr.mxu0 0.0
        %3547 = vmatpush1.msra.mxu0 0.0
        %3548 = vmatprep.subr.mxu0 0.0
        %3549 = vmatpush1.msra.mxu0 0.0
        %3550 = vmatprep.subr.mxu0 0.0
        %3551 = vmatpush1.msra.mxu0 0.0
        %3552 = vmatprep.subr.mxu0 0.0
        %3553 = vmatpush1.msra.mxu0 0.0
        %3554 = vmatprep.subr.mxu0 0.0
        %3555 = vmatpush1.msra.mxu0 0.0
        %3556 = vmatprep.subr.mxu0 0.0
        %3557 = vmatpush1.msra.mxu0 0.0
        %3558 = vmatprep.subr.mxu0 0.0
        %3559 = vmatpush1.msra.mxu0 0.0
        %3560 = vmatprep.subr.mxu0 0.0
        %3561 = vmatpush1.msra.mxu0 0.0
        %3562 = vmatprep.subr.mxu0 0.0
        %3563 = vmatpush1.msra.mxu0 0.0
        %3564 = vmatprep.subr.mxu0 0.0
        %3565 = vmatpush1.msra.mxu0 0.0
        %3566 = vmatprep.subr.mxu0 0.0
        %3567 = vmatpush1.msra.mxu0 0.0
        %3568 = vmatprep.subr.mxu0 0.0
        %3569 = vmatpush1.msra.mxu0 0.0
        %3570 = vmatprep.subr.mxu0 0.0
        %3571 = vmatpush1.msra.mxu0 0.0
        %3572 = vmatprep.subr.mxu0 0.0
        %3573 = vmatpush1.msra.mxu0 0.0
        %3574 = vmatprep.subr.mxu0 0.0
        %3575 = vmatpush1.msra.mxu0 0.0
        %3576 = vmatprep.subr.mxu0 0.0
        %3577 = vmatpush1.msra.mxu0 0.0
        %3578 = vmatprep.subr.mxu0 0.0
        %3579 = vmatpush1.msra.mxu0 0.0
        %3580 = vmatprep.subr.mxu0 0.0
        %3581 = vmatpush1.msra.mxu0 0.0
        %3582 = vmatprep.subr.mxu0 0.0
        %3583 = vmatpush1.msra.mxu0 0.0
        %3584 = vmatprep.subr.mxu0 0.0
        %3585 = vmatpush1.msra.mxu0 0.0
        %3586 = vmatprep.subr.mxu0 0.0
        %3587 = vmatpush1.msra.mxu0 0.0
        %3588 = vmatprep.subr.mxu0 0.0
        %3589 = vmatpush1.msra.mxu0 0.0
        %3590 = vmatprep.mubr.f32.mxu0 0.0
        %3591 = vmatmul.mubr.f32.gmra.mrb[0].mxu0 %v3510
        %v3592 = vpop.f32.mrb[0].mxu0
        %v3593 = vadd.f32 0.0, %v3592
        %v3594 = vpop.f32.mrb[0].mxu0
        %3595 = vmatprep.mubr.f32.mxu0 0.0
        %3596 = vmatmul.mubr.f32.gmra.mrb[0].mxu0 %v3512
        %v3597 = vpop.f32.mrb[0].mxu0
        %v3598 = vadd.f32 0.0, %v3597
        %v3599 = vpop.f32.mrb[0].mxu0
        %3600 = vmatprep.mubr.f32.mxu0 0.0
        %3601 = vmatmul.mubr.f32.gmra.mrb[0].mxu0 %v3514
        %v3602 = vpop.f32.mrb[0].mxu0
        %v3603 = vadd.f32 0.0, %v3602
        %v3604 = vpop.f32.mrb[0].mxu0
        %3605 = vmatprep.mubr.f32.mxu0 0.0
        %3606 = vmatmul.mubr.f32.gmra.mrb[0].mxu0 %v3516
        %v3607 = vpop.f32.mrb[0].mxu0
        %v3608 = vadd.f32 0.0, %v3607
        %v3609 = vpop.f32.mrb[0].mxu0
        %3610 = vmatprep.mubr.f32.mxu0 0.0
        %3611 = vmatmul.mubr.f32.gmra.mrb[0].mxu0 %v3518
        %v3612 = vpop.f32.mrb[0].mxu0
        %v3613 = vadd.f32 0.0, %v3612
        %v3614 = vpop.f32.mrb[0].mxu0
        %3615 = vmatprep.mubr.f32.mxu0 0.0
        %3616 = vmatmul.mubr.f32.gmra.mrb[0].mxu0 %v3520
        %v3617 = vpop.f32.mrb[0].mxu0
        %v3618 = vadd.f32 0.0, %v3617
        %v3619 = vpop.f32.mrb[0].mxu0
        %3620 = vmatprep.mubr.f32.mxu0 0.0
        %3621 = vmatmul.mubr.f32.gmra.mrb[0].mxu0 %v3522
        %v3622 = vpop.f32.mrb[0].mxu0
        %v3623 = vadd.f32 0.0, %v3622
        %v3624 = vpop.f32.mrb[0].mxu0
        %3625 = vmatprep.mubr.f32.mxu0 0.0
        %3626 = vmatmul.mubr.f32.gmra.mrb[0].mxu0 %v3524
        %v3627 = vpop.f32.mrb[0].mxu0
        %v3628 = vadd.f32 0.0, %v3627
        %v3629 = vpop.f32.mrb[0].mxu0
        %3630 = vdwg.mxu0
        %v3631 = vadd.f32 %v3438, %v3593
        %v3632 = vadd.f32 %v3443, %v3598
        %v3633 = vadd.f32 %v3448, %v3603
        %v3634 = vadd.f32 %v3453, %v3608
        %v3635 = vadd.f32 %v3458, %v3613
        %v3636 = vadd.f32 %v3463, %v3618
        %v3637 = vadd.f32 %v3468, %v3623
        %v3638 = vadd.f32 %v3473, %v3628
        %v3639 = vrot.slane %v3159, 3
        %v3640 = vrot.slane %v3160, 3
        %v3641 = vsel %vm1689, %v3639, %v3640
        %v3642 = vrot.slane %v3161, 3
        %v3643 = vrot.slane %v3162, 3
        %v3644 = vsel %vm1689, %v3642, %v3643
        %v3645 = vrot.slane %v3163, 3
        %v3646 = vrot.slane %v3164, 3
        %v3647 = vsel %vm1689, %v3645, %v3646
        %v3648 = vrot.slane %v3165, 3
        %v3649 = vrot.slane %v3166, 3
        %v3650 = vsel %vm1689, %v3648, %v3649
        %v3651 = vrot.slane %v3167, 3
        %v3652 = vrot.slane %v3168, 3
        %v3653 = vsel %vm1689, %v3651, %v3652
        %v3654 = vrot.slane %v3169, 3
        %v3655 = vrot.slane %v3170, 3
        %v3656 = vsel %vm1689, %v3654, %v3655
        %v3657 = vrot.slane %v3171, 3
        %v3658 = vrot.slane %v3172, 3
        %v3659 = vsel %vm1689, %v3657, %v3658
        %v3660 = vrot.slane %v3173, 3
        %v3661 = vrot.slane %v3174, 3
        %v3662 = vsel %vm1689, %v3660, %v3661
        %s3663 = scalar_lea.vmem %s3, 216
        %v3664 = vld [vmem:[%s3663] sm:$0xff]
        %v3665 = vld [vmem:[%s3663 + $0x8] sm:$0xff]
        %v3666 = vld [vmem:[%s3663 + $0x10] sm:$0xff]
        %v3667 = vld [vmem:[%s3663 + $0x18] sm:$0xff]
        %v3668 = vld [vmem:[%s3663 + $0x20] sm:$0xff]
        %v3669 = vld [vmem:[%s3663 + $0x28] sm:$0xff]
        %v3670 = vld [vmem:[%s3663 + $0x30] sm:$0xff]
        %v3671 = vld [vmem:[%s3663 + $0x38] sm:$0xff]
        %v3672 = vld [vmem:[%s3663 + $0x40] sm:$0xff]
        %v3673 = vsel %vm3063, %v3641, 0
        %v3675 = vsel %vm3063, %v3644, 0
        %v3677 = vsel %vm3063, %v3647, 0
        %v3679 = vsel %vm3063, %v3650, 0
        %v3681 = vsel %vm3063, %v3653, 0
        %v3683 = vsel %vm3063, %v3656, 0
        %v3685 = vsel %vm3063, %v3659, 0
        %v3687 = vsel %vm3063, %v3662, 0
        %3689 = vmatprep.subr.mxu0 0.0
        %3690 = vmatpush1.msra.mxu0 %v3664
        %3691 = vmatprep.subr.mxu0 0.0
        %3692 = vmatpush1.msra.mxu0 %v3665
        %3693 = vmatprep.subr.mxu0 0.0
        %3694 = vmatpush1.msra.mxu0 %v3666
        %3695 = vmatprep.subr.mxu0 0.0
        %3696 = vmatpush1.msra.mxu0 %v3667
        %3697 = vmatprep.subr.mxu0 0.0
        %3698 = vmatpush1.msra.mxu0 %v3668
        %3699 = vmatprep.subr.mxu0 0.0
        %3700 = vmatpush1.msra.mxu0 %v3669
        %3701 = vmatprep.subr.mxu0 0.0
        %3702 = vmatpush1.msra.mxu0 %v3670
        %3703 = vmatprep.subr.mxu0 0.0
        %3704 = vmatpush1.msra.mxu0 %v3671
        %3705 = vmatprep.subr.mxu0 0.0
        %3706 = vmatpush1.msra.mxu0 %v3672
        %3707 = vmatprep.subr.mxu0 0.0
        %3708 = vmatpush1.msra.mxu0 0.0
        %3709 = vmatprep.subr.mxu0 0.0
        %3710 = vmatpush1.msra.mxu0 0.0
        %3711 = vmatprep.subr.mxu0 0.0
        %3712 = vmatpush1.msra.mxu0 0.0
        %3713 = vmatprep.subr.mxu0 0.0
        %3714 = vmatpush1.msra.mxu0 0.0
        %3715 = vmatprep.subr.mxu0 0.0
        %3716 = vmatpush1.msra.mxu0 0.0
        %3717 = vmatprep.subr.mxu0 0.0
        %3718 = vmatpush1.msra.mxu0 0.0
        %3719 = vmatprep.subr.mxu0 0.0
        %3720 = vmatpush1.msra.mxu0 0.0
        %3721 = vmatprep.subr.mxu0 0.0
        %3722 = vmatpush1.msra.mxu0 0.0
        %3723 = vmatprep.subr.mxu0 0.0
        %3724 = vmatpush1.msra.mxu0 0.0
        %3725 = vmatprep.subr.mxu0 0.0
        %3726 = vmatpush1.msra.mxu0 0.0
        %3727 = vmatprep.subr.mxu0 0.0
        %3728 = vmatpush1.msra.mxu0 0.0
        %3729 = vmatprep.subr.mxu0 0.0
        %3730 = vmatpush1.msra.mxu0 0.0
        %3731 = vmatprep.subr.mxu0 0.0
        %3732 = vmatpush1.msra.mxu0 0.0
        %3733 = vmatprep.subr.mxu0 0.0
        %3734 = vmatpush1.msra.mxu0 0.0
        %3735 = vmatprep.subr.mxu0 0.0
        %3736 = vmatpush1.msra.mxu0 0.0
        %3737 = vmatprep.subr.mxu0 0.0
        %3738 = vmatpush1.msra.mxu0 0.0
        %3739 = vmatprep.subr.mxu0 0.0
        %3740 = vmatpush1.msra.mxu0 0.0
        %3741 = vmatprep.subr.mxu0 0.0
        %3742 = vmatpush1.msra.mxu0 0.0
        %3743 = vmatprep.subr.mxu0 0.0
        %3744 = vmatpush1.msra.mxu0 0.0
        %3745 = vmatprep.subr.mxu0 0.0
        %3746 = vmatpush1.msra.mxu0 0.0
        %3747 = vmatprep.subr.mxu0 0.0
        %3748 = vmatpush1.msra.mxu0 0.0
        %3749 = vmatprep.subr.mxu0 0.0
        %3750 = vmatpush1.msra.mxu0 0.0
        %3751 = vmatprep.subr.mxu0 0.0
        %3752 = vmatpush1.msra.mxu0 0.0
        %3753 = vmatprep.mubr.f32.mxu0 0.0
        %3754 = vmatmul.mubr.f32.gmra.mrb[0].mxu0 %v3673
        %v3755 = vpop.f32.mrb[0].mxu0
        %v3756 = vadd.f32 0.0, %v3755
        %v3757 = vpop.f32.mrb[0].mxu0
        %3758 = vmatprep.mubr.f32.mxu0 0.0
        %3759 = vmatmul.mubr.f32.gmra.mrb[0].mxu0 %v3675
        %v3760 = vpop.f32.mrb[0].mxu0
        %v3761 = vadd.f32 0.0, %v3760
        %v3762 = vpop.f32.mrb[0].mxu0
        %3763 = vmatprep.mubr.f32.mxu0 0.0
        %3764 = vmatmul.mubr.f32.gmra.mrb[0].mxu0 %v3677
        %v3765 = vpop.f32.mrb[0].mxu0
        %v3766 = vadd.f32 0.0, %v3765
        %v3767 = vpop.f32.mrb[0].mxu0
        %3768 = vmatprep.mubr.f32.mxu0 0.0
        %3769 = vmatmul.mubr.f32.gmra.mrb[0].mxu0 %v3679
        %v3770 = vpop.f32.mrb[0].mxu0
        %v3771 = vadd.f32 0.0, %v3770
        %v3772 = vpop.f32.mrb[0].mxu0
        %3773 = vmatprep.mubr.f32.mxu0 0.0
        %3774 = vmatmul.mubr.f32.gmra.mrb[0].mxu0 %v3681
        %v3775 = vpop.f32.mrb[0].mxu0
        %v3776 = vadd.f32 0.0, %v3775
        %v3777 = vpop.f32.mrb[0].mxu0
        %3778 = vmatprep.mubr.f32.mxu0 0.0
        %3779 = vmatmul.mubr.f32.gmra.mrb[0].mxu0 %v3683
        %v3780 = vpop.f32.mrb[0].mxu0
        %v3781 = vadd.f32 0.0, %v3780
        %v3782 = vpop.f32.mrb[0].mxu0
        %3783 = vmatprep.mubr.f32.mxu0 0.0
        %3784 = vmatmul.mubr.f32.gmra.mrb[0].mxu0 %v3685
        %v3785 = vpop.f32.mrb[0].mxu0
        %v3786 = vadd.f32 0.0, %v3785
        %v3787 = vpop.f32.mrb[0].mxu0
        %3788 = vmatprep.mubr.f32.mxu0 0.0
        %3789 = vmatmul.mubr.f32.gmra.mrb[0].mxu0 %v3687
        %v3790 = vpop.f32.mrb[0].mxu0
        %v3791 = vadd.f32 0.0, %v3790
        %v3792 = vpop.f32.mrb[0].mxu0
        %3793 = vdwg.mxu0
        %v3794 = vadd.f32 %v3631, %v3756
        %v3795 = vadd.f32 %v3632, %v3761
        %v3796 = vadd.f32 %v3633, %v3766
        %v3797 = vadd.f32 %v3634, %v3771
        %v3798 = vadd.f32 %v3635, %v3776
        %v3799 = vadd.f32 %v3636, %v3781
        %v3800 = vadd.f32 %v3637, %v3786
        %v3801 = vadd.f32 %v3638, %v3791
        %v3802 = vrot.slane %v3159, 4
        %v3803 = vrot.slane %v3160, 4
        %v3804 = vsel %vm625, %v3802, %v3803
        %v3805 = vrot.slane %v3161, 4
        %v3806 = vrot.slane %v3162, 4
        %v3807 = vsel %vm625, %v3805, %v3806
        %v3808 = vrot.slane %v3163, 4
        %v3809 = vrot.slane %v3164, 4
        %v3810 = vsel %vm625, %v3808, %v3809
        %v3811 = vrot.slane %v3165, 4
        %v3812 = vrot.slane %v3166, 4
        %v3813 = vsel %vm625, %v3811, %v3812
        %v3814 = vrot.slane %v3167, 4
        %v3815 = vrot.slane %v3168, 4
        %v3816 = vsel %vm625, %v3814, %v3815
        %v3817 = vrot.slane %v3169, 4
        %v3818 = vrot.slane %v3170, 4
        %v3819 = vsel %vm625, %v3817, %v3818
        %v3820 = vrot.slane %v3171, 4
        %v3821 = vrot.slane %v3172, 4
        %v3822 = vsel %vm625, %v3820, %v3821
        %v3823 = vrot.slane %v3173, 4
        %v3824 = vrot.slane %v3174, 4
        %v3825 = vsel %vm625, %v3823, %v3824
        %s3826 = scalar_lea.vmem %s3, 288
        %v3827 = vld [vmem:[%s3826] sm:$0xff]
        %v3828 = vld [vmem:[%s3826 + $0x8] sm:$0xff]
        %v3829 = vld [vmem:[%s3826 + $0x10] sm:$0xff]
        %v3830 = vld [vmem:[%s3826 + $0x18] sm:$0xff]
        %v3831 = vld [vmem:[%s3826 + $0x20] sm:$0xff]
        %v3832 = vld [vmem:[%s3826 + $0x28] sm:$0xff]
        %v3833 = vld [vmem:[%s3826 + $0x30] sm:$0xff]
        %v3834 = vld [vmem:[%s3826 + $0x38] sm:$0xff]
        %v3835 = vld [vmem:[%s3826 + $0x40] sm:$0xff]
        %v3836 = vsel %vm3063, %v3804, 0
        %v3838 = vsel %vm3063, %v3807, 0
        %v3840 = vsel %vm3063, %v3810, 0
        %v3842 = vsel %vm3063, %v3813, 0
        %v3844 = vsel %vm3063, %v3816, 0
        %v3846 = vsel %vm3063, %v3819, 0
        %v3848 = vsel %vm3063, %v3822, 0
        %v3850 = vsel %vm3063, %v3825, 0
        %3852 = vmatprep.subr.mxu0 0.0
        %3853 = vmatpush1.msra.mxu0 %v3827
        %3854 = vmatprep.subr.mxu0 0.0
        %3855 = vmatpush1.msra.mxu0 %v3828
        %3856 = vmatprep.subr.mxu0 0.0
        %3857 = vmatpush1.msra.mxu0 %v3829
        %3858 = vmatprep.subr.mxu0 0.0
        %3859 = vmatpush1.msra.mxu0 %v3830
        %3860 = vmatprep.subr.mxu0 0.0
        %3861 = vmatpush1.msra.mxu0 %v3831
        %3862 = vmatprep.subr.mxu0 0.0
        %3863 = vmatpush1.msra.mxu0 %v3832
        %3864 = vmatprep.subr.mxu0 0.0
        %3865 = vmatpush1.msra.mxu0 %v3833
        %3866 = vmatprep.subr.mxu0 0.0
        %3867 = vmatpush1.msra.mxu0 %v3834
        %3868 = vmatprep.subr.mxu0 0.0
        %3869 = vmatpush1.msra.mxu0 %v3835
        %3870 = vmatprep.subr.mxu0 0.0
        %3871 = vmatpush1.msra.mxu0 0.0
        %3872 = vmatprep.subr.mxu0 0.0
        %3873 = vmatpush1.msra.mxu0 0.0
        %3874 = vmatprep.subr.mxu0 0.0
        %3875 = vmatpush1.msra.mxu0 0.0
        %3876 = vmatprep.subr.mxu0 0.0
        %3877 = vmatpush1.msra.mxu0 0.0
        %3878 = vmatprep.subr.mxu0 0.0
        %3879 = vmatpush1.msra.mxu0 0.0
        %3880 = vmatprep.subr.mxu0 0.0
        %3881 = vmatpush1.msra.mxu0 0.0
        %3882 = vmatprep.subr.mxu0 0.0
        %3883 = vmatpush1.msra.mxu0 0.0
        %3884 = vmatprep.subr.mxu0 0.0
        %3885 = vmatpush1.msra.mxu0 0.0
        %3886 = vmatprep.subr.mxu0 0.0
        %3887 = vmatpush1.msra.mxu0 0.0
        %3888 = vmatprep.subr.mxu0 0.0
        %3889 = vmatpush1.msra.mxu0 0.0
        %3890 = vmatprep.subr.mxu0 0.0
        %3891 = vmatpush1.msra.mxu0 0.0
        %3892 = vmatprep.subr.mxu0 0.0
        %3893 = vmatpush1.msra.mxu0 0.0
        %3894 = vmatprep.subr.mxu0 0.0
        %3895 = vmatpush1.msra.mxu0 0.0
        %3896 = vmatprep.subr.mxu0 0.0
        %3897 = vmatpush1.msra.mxu0 0.0
        %3898 = vmatprep.subr.mxu0 0.0
        %3899 = vmatpush1.msra.mxu0 0.0
        %3900 = vmatprep.subr.mxu0 0.0
        %3901 = vmatpush1.msra.mxu0 0.0
        %3902 = vmatprep.subr.mxu0 0.0
        %3903 = vmatpush1.msra.mxu0 0.0
        %3904 = vmatprep.subr.mxu0 0.0
        %3905 = vmatpush1.msra.mxu0 0.0
        %3906 = vmatprep.subr.mxu0 0.0
        %3907 = vmatpush1.msra.mxu0 0.0
        %3908 = vmatprep.subr.mxu0 0.0
        %3909 = vmatpush1.msra.mxu0 0.0
        %3910 = vmatprep.subr.mxu0 0.0
        %3911 = vmatpush1.msra.mxu0 0.0
        %3912 = vmatprep.subr.mxu0 0.0
        %3913 = vmatpush1.msra.mxu0 0.0
        %3914 = vmatprep.subr.mxu0 0.0
        %3915 = vmatpush1.msra.mxu0 0.0
        %3916 = vmatprep.mubr.f32.mxu0 0.0
        %3917 = vmatmul.mubr.f32.gmra.mrb[0].mxu0 %v3836
        %v3918 = vpop.f32.mrb[0].mxu0
        %v3919 = vadd.f32 0.0, %v3918
        %v3920 = vpop.f32.mrb[0].mxu0
        %3921 = vmatprep.mubr.f32.mxu0 0.0
        %3922 = vmatmul.mubr.f32.gmra.mrb[0].mxu0 %v3838
        %v3923 = vpop.f32.mrb[0].mxu0
        %v3924 = vadd.f32 0.0, %v3923
        %v3925 = vpop.f32.mrb[0].mxu0
        %3926 = vmatprep.mubr.f32.mxu0 0.0
        %3927 = vmatmul.mubr.f32.gmra.mrb[0].mxu0 %v3840
        %v3928 = vpop.f32.mrb[0].mxu0
        %v3929 = vadd.f32 0.0, %v3928
        %v3930 = vpop.f32.mrb[0].mxu0
        %3931 = vmatprep.mubr.f32.mxu0 0.0
        %3932 = vmatmul.mubr.f32.gmra.mrb[0].mxu0 %v3842
        %v3933 = vpop.f32.mrb[0].mxu0
        %v3934 = vadd.f32 0.0, %v3933
        %v3935 = vpop.f32.mrb[0].mxu0
        %3936 = vmatprep.mubr.f32.mxu0 0.0
        %3937 = vmatmul.mubr.f32.gmra.mrb[0].mxu0 %v3844
        %v3938 = vpop.f32.mrb[0].mxu0
        %v3939 = vadd.f32 0.0, %v3938
        %v3940 = vpop.f32.mrb[0].mxu0
        %3941 = vmatprep.mubr.f32.mxu0 0.0
        %3942 = vmatmul.mubr.f32.gmra.mrb[0].mxu0 %v3846
        %v3943 = vpop.f32.mrb[0].mxu0
        %v3944 = vadd.f32 0.0, %v3943
        %v3945 = vpop.f32.mrb[0].mxu0
        %3946 = vmatprep.mubr.f32.mxu0 0.0
        %3947 = vmatmul.mubr.f32.gmra.mrb[0].mxu0 %v3848
        %v3948 = vpop.f32.mrb[0].mxu0
        %v3949 = vadd.f32 0.0, %v3948
        %v3950 = vpop.f32.mrb[0].mxu0
        %3951 = vmatprep.mubr.f32.mxu0 0.0
        %3952 = vmatmul.mubr.f32.gmra.mrb[0].mxu0 %v3850
        %v3953 = vpop.f32.mrb[0].mxu0
        %v3954 = vadd.f32 0.0, %v3953
        %v3955 = vpop.f32.mrb[0].mxu0
        %3956 = vdwg.mxu0
        %v3957 = vadd.f32 %v3794, %v3919
        %v3958 = vadd.f32 %v3795, %v3924
        %v3959 = vadd.f32 %v3796, %v3929
        %v3960 = vadd.f32 %v3797, %v3934
        %v3961 = vadd.f32 %v3798, %v3939
        %v3962 = vadd.f32 %v3799, %v3944
        %v3963 = vadd.f32 %v3800, %v3949
        %v3964 = vadd.f32 %v3801, %v3954
        %v3965 = vld [vmem:[%s4] sm:$0x1]
        %v3967 = vlaneseq
        %v3968 = vshrl.u32 %v3967, 7
        %v3969 = vsub.s32 0, %v3968
        %v3970 = vrot.slane %v3965, %v3969
        %v3972 = vadd.f32 %v3957, %v3970
        %v3973 = vadd.f32 %v3958, %v3970
        %v3974 = vadd.f32 %v3959, %v3970
        %v3975 = vadd.f32 %v3960, %v3970
        %v3976 = vadd.f32 %v3961, %v3970
        %v3977 = vadd.f32 %v3962, %v3970
        %v3978 = vadd.f32 %v3963, %v3970
        %v3979 = vadd.f32 %v3964, %v3970
        %v3980 = vmax.f32 %v3972, 0.0
        %v3981 = vmax.f32 %v3973, 0.0
        %v3982 = vmax.f32 %v3974, 0.0
        %v3983 = vmax.f32 %v3975, 0.0
        %v3984 = vmax.f32 %v3976, 0.0
        %v3985 = vmax.f32 %v3977, 0.0
        %v3986 = vmax.f32 %v3978, 0.0
        %v3987 = vmax.f32 %v3979, 0.0
        %3996 = vrot.lane.b32.xlu0 %v3980, 64
        %v3997 = vpop.permute.xlu0 %3996
        %3998 = vrot.lane.b32.xlu0 %v3981, 64
        %v3999 = vpop.permute.xlu0 %3998
        %4000 = vrot.lane.b32.xlu0 %v3982, 64
        %v4001 = vpop.permute.xlu0 %4000
        %4002 = vrot.lane.b32.xlu0 %v3983, 64
        %v4003 = vpop.permute.xlu0 %4002
        %4004 = vrot.lane.b32.xlu0 %v3984, 64
        %v4005 = vpop.permute.xlu0 %4004
        %4006 = vrot.lane.b32.xlu0 %v3985, 64
        %v4007 = vpop.permute.xlu0 %4006
        %4008 = vrot.lane.b32.xlu0 %v3986, 64
        %v4009 = vpop.permute.xlu0 %4008
        %4010 = vrot.lane.b32.xlu0 %v3987, 64
        %v4011 = vpop.permute.xlu0 %4010
        %v4020 = vmax.f32 %v3980, %v3997
        %v4021 = vmax.f32 %v3981, %v3999
        %v4022 = vmax.f32 %v3982, %v4001
        %v4023 = vmax.f32 %v3983, %v4003
        %v4024 = vmax.f32 %v3984, %v4005
        %v4025 = vmax.f32 %v3985, %v4007
        %v4026 = vmax.f32 %v3986, %v4009
        %v4027 = vmax.f32 %v3987, %v4011
        %vm4028 = vcmask 523264
        %4029 = vst.msk [vmem:[#allocation3] sm:$0xff] %vm4028, %v4020
        %4030 = vst.msk [vmem:[#allocation3 + $0x8] sm:$0xff] %vm4028, %v4021
        %4031 = vst.msk [vmem:[#allocation3 + $0x10] sm:$0xff] %vm4028, %v4022
        %4032 = vst.msk [vmem:[#allocation3 + $0x18] sm:$0xff] %vm4028, %v4023
        %4033 = vst.msk [vmem:[#allocation3 + $0x20] sm:$0xff] %vm4028, %v4024
        %4034 = vst.msk [vmem:[#allocation3 + $0x28] sm:$0xff] %vm4028, %v4025
        %4035 = vst.msk [vmem:[#allocation3 + $0x30] sm:$0xff] %vm4028, %v4026
        %4036 = vst.msk [vmem:[#allocation3 + $0x38] sm:$0xff] %vm4028, %v4027
        %v4037 = vld [vmem:[#allocation3] ss:$2 sm:$0xff]
        %s4038 = scalar_lea.vmem [#allocation3], 16
        %v4039 = vld [vmem:[%s4038] ss:$2 sm:$0xff]
        %s4040 = scalar_lea.vmem [#allocation3], 32
        %v4041 = vld [vmem:[%s4040] ss:$2 sm:$0xff]
        %s4042 = scalar_lea.vmem [#allocation3], 48
        %v4043 = vld [vmem:[%s4042] ss:$2 sm:$0xff]
        %s4044 = scalar_lea.vmem [#allocation3], 1
        %v4045 = vld [vmem:[%s4044] ss:$2 sm:$0xff]
        %s4046 = scalar_lea.vmem [#allocation3], 17
        %v4047 = vld [vmem:[%s4046] ss:$2 sm:$0xff]
        %s4048 = scalar_lea.vmem [#allocation3], 33
        %v4049 = vld [vmem:[%s4048] ss:$2 sm:$0xff]
        %s4050 = scalar_lea.vmem [#allocation3], 49
        %v4051 = vld [vmem:[%s4050] ss:$2 sm:$0xff]
        %v4052 = vmax.f32 %v4037, %v4045
        %v4053 = vmax.f32 %v4039, %v4047
        %v4054 = vmax.f32 %v4041, %v4049
        %v4055 = vmax.f32 %v4043, %v4051
        %4056 = vst.msk [vmem:[#allocation4] sm:$0xff] %vm4028, %v4052
        %4057 = vst.msk [vmem:[#allocation4 + $0x8] sm:$0xff] %vm4028, %v4053
        %4058 = vst.msk [vmem:[#allocation4 + $0x10] sm:$0xff] %vm4028, %v4054
        %4059 = vst.msk [vmem:[#allocation4 + $0x18] sm:$0xff] %vm4028, %v4055
        %v4060 = vld [vmem:[#allocation4] ss:$4 sm:$0xff]
        %v4061 = vld [vmem:[%s5] sm:$0xff]
        %v4062 = vld [vmem:[%s5 + $0x8] sm:$0xff]
        %v4063 = vld [vmem:[%s5 + $0x10] sm:$0xff]
        %v4064 = vld [vmem:[%s5 + $0x18] sm:$0xff]
        %v4065 = vld [vmem:[%s5 + $0x20] sm:$0xff]
        %v4066 = vld [vmem:[%s5 + $0x28] sm:$0xff]
        %v4067 = vld [vmem:[%s5 + $0x30] sm:$0xff]
        %v4068 = vld [vmem:[%s5 + $0x38] sm:$0xff]
        %s4069 = scalar_lea.vmem [#allocation4], 1
        %v4070 = vld [vmem:[%s4069] ss:$4 sm:$0xff]
        %s4071 = scalar_lea.vmem %s5, 64
        %v4072 = vld [vmem:[%s4071] sm:$0xff]
        %v4073 = vld [vmem:[%s4071 + $0x8] sm:$0xff]
        %v4074 = vld [vmem:[%s4071 + $0x10] sm:$0xff]
        %v4075 = vld [vmem:[%s4071 + $0x18] sm:$0xff]
        %v4076 = vld [vmem:[%s4071 + $0x20] sm:$0xff]
        %v4077 = vld [vmem:[%s4071 + $0x28] sm:$0xff]
        %v4078 = vld [vmem:[%s4071 + $0x30] sm:$0xff]
        %v4079 = vld [vmem:[%s4071 + $0x38] sm:$0xff]
        %v4081 = vsel %vm4028, %v4070, 0
        %4083 = vmatprep.subr.mxu0 0.0
        %4084 = vmatpush1.msra.mxu0 %v4072
        %4085 = vmatprep.subr.mxu0 0.0
        %4086 = vmatpush1.msra.mxu0 %v4073
        %4087 = vmatprep.subr.mxu0 0.0
        %4088 = vmatpush1.msra.mxu0 %v4074
        %4089 = vmatprep.subr.mxu0 0.0
        %4090 = vmatpush1.msra.mxu0 %v4075
        %4091 = vmatprep.subr.mxu0 0.0
        %4092 = vmatpush1.msra.mxu0 %v4076
        %4093 = vmatprep.subr.mxu0 0.0
        %4094 = vmatpush1.msra.mxu0 %v4077
        %4095 = vmatprep.subr.mxu0 0.0
        %4096 = vmatpush1.msra.mxu0 %v4078
        %4097 = vmatprep.subr.mxu0 0.0
        %4098 = vmatpush1.msra.mxu0 %v4079
        %4099 = vmatprep.subr.mxu0 0.0
        %4100 = vmatpush1.msra.mxu0 0.0
        %4101 = vmatprep.subr.mxu0 0.0
        %4102 = vmatpush1.msra.mxu0 0.0
        %4103 = vmatprep.subr.mxu0 0.0
        %4104 = vmatpush1.msra.mxu0 0.0
        %4105 = vmatprep.subr.mxu0 0.0
        %4106 = vmatpush1.msra.mxu0 0.0
        %4107 = vmatprep.subr.mxu0 0.0
        %4108 = vmatpush1.msra.mxu0 0.0
        %4109 = vmatprep.subr.mxu0 0.0
        %4110 = vmatpush1.msra.mxu0 0.0
        %4111 = vmatprep.subr.mxu0 0.0
        %4112 = vmatpush1.msra.mxu0 0.0
        %4113 = vmatprep.subr.mxu0 0.0
        %4114 = vmatpush1.msra.mxu0 0.0
        %4115 = vmatprep.subr.mxu0 0.0
        %4116 = vmatpush1.msra.mxu0 0.0
        %4117 = vmatprep.subr.mxu0 0.0
        %4118 = vmatpush1.msra.mxu0 0.0
        %4119 = vmatprep.subr.mxu0 0.0
        %4120 = vmatpush1.msra.mxu0 0.0
        %4121 = vmatprep.subr.mxu0 0.0
        %4122 = vmatpush1.msra.mxu0 0.0
        %4123 = vmatprep.subr.mxu0 0.0
        %4124 = vmatpush1.msra.mxu0 0.0
        %4125 = vmatprep.subr.mxu0 0.0
        %4126 = vmatpush1.msra.mxu0 0.0
        %4127 = vmatprep.subr.mxu0 0.0
        %4128 = vmatpush1.msra.mxu0 0.0
        %4129 = vmatprep.subr.mxu0 0.0
        %4130 = vmatpush1.msra.mxu0 0.0
        %4131 = vmatprep.subr.mxu0 0.0
        %4132 = vmatpush1.msra.mxu0 0.0
        %4133 = vmatprep.subr.mxu0 0.0
        %4134 = vmatpush1.msra.mxu0 0.0
        %4135 = vmatprep.subr.mxu0 0.0
        %4136 = vmatpush1.msra.mxu0 0.0
        %4137 = vmatprep.subr.mxu0 0.0
        %4138 = vmatpush1.msra.mxu0 0.0
        %4139 = vmatprep.subr.mxu0 0.0
        %4140 = vmatpush1.msra.mxu0 0.0
        %4141 = vmatprep.subr.mxu0 0.0
        %4142 = vmatpush1.msra.mxu0 0.0
        %4143 = vmatprep.subr.mxu0 0.0
        %4144 = vmatpush1.msra.mxu0 0.0
        %4145 = vmatprep.subr.mxu0 0.0
        %4146 = vmatpush1.msra.mxu0 0.0
        %4147 = vmatprep.mubr.f32.mxu0 0.0
        %4148 = vmatmul.mubr.f32.gmra.mrb[0].mxu0 %v4081
        %v4149 = vpop.f32.mrb[0].mxu0
        %v4150 = vadd.f32 0.0, %v4149
        %v4151 = vpop.f32.mrb[0].mxu0
        %4152 = vdwg.mxu0
        %v4154 = vsel %vm4028, %v4060, 0
        %4156 = vmatprep.subr.mxu0 0.0
        %4157 = vmatpush1.msra.mxu0 %v4061
        %4158 = vmatprep.subr.mxu0 0.0
        %4159 = vmatpush1.msra.mxu0 %v4062
        %4160 = vmatprep.subr.mxu0 0.0
        %4161 = vmatpush1.msra.mxu0 %v4063
        %4162 = vmatprep.subr.mxu0 0.0
        %4163 = vmatpush1.msra.mxu0 %v4064
        %4164 = vmatprep.subr.mxu0 0.0
        %4165 = vmatpush1.msra.mxu0 %v4065
        %4166 = vmatprep.subr.mxu0 0.0
        %4167 = vmatpush1.msra.mxu0 %v4066
        %4168 = vmatprep.subr.mxu0 0.0
        %4169 = vmatpush1.msra.mxu0 %v4067
        %4170 = vmatprep.subr.mxu0 0.0
        %4171 = vmatpush1.msra.mxu0 %v4068
        %4172 = vmatprep.subr.mxu0 0.0
        %4173 = vmatpush1.msra.mxu0 0.0
        %4174 = vmatprep.subr.mxu0 0.0
        %4175 = vmatpush1.msra.mxu0 0.0
        %4176 = vmatprep.subr.mxu0 0.0
        %4177 = vmatpush1.msra.mxu0 0.0
        %4178 = vmatprep.subr.mxu0 0.0
        %4179 = vmatpush1.msra.mxu0 0.0
        %4180 = vmatprep.subr.mxu0 0.0
        %4181 = vmatpush1.msra.mxu0 0.0
        %4182 = vmatprep.subr.mxu0 0.0
        %4183 = vmatpush1.msra.mxu0 0.0
        %4184 = vmatprep.subr.mxu0 0.0
        %4185 = vmatpush1.msra.mxu0 0.0
        %4186 = vmatprep.subr.mxu0 0.0
        %4187 = vmatpush1.msra.mxu0 0.0
        %4188 = vmatprep.subr.mxu0 0.0
        %4189 = vmatpush1.msra.mxu0 0.0
        %4190 = vmatprep.subr.mxu0 0.0
        %4191 = vmatpush1.msra.mxu0 0.0
        %4192 = vmatprep.subr.mxu0 0.0
        %4193 = vmatpush1.msra.mxu0 0.0
        %4194 = vmatprep.subr.mxu0 0.0
        %4195 = vmatpush1.msra.mxu0 0.0
        %4196 = vmatprep.subr.mxu0 0.0
        %4197 = vmatpush1.msra.mxu0 0.0
        %4198 = vmatprep.subr.mxu0 0.0
        %4199 = vmatpush1.msra.mxu0 0.0
        %4200 = vmatprep.subr.mxu0 0.0
        %4201 = vmatpush1.msra.mxu0 0.0
        %4202 = vmatprep.subr.mxu0 0.0
        %4203 = vmatpush1.msra.mxu0 0.0
        %4204 = vmatprep.subr.mxu0 0.0
        %4205 = vmatpush1.msra.mxu0 0.0
        %4206 = vmatprep.subr.mxu0 0.0
        %4207 = vmatpush1.msra.mxu0 0.0
        %4208 = vmatprep.subr.mxu0 0.0
        %4209 = vmatpush1.msra.mxu0 0.0
        %4210 = vmatprep.subr.mxu0 0.0
        %4211 = vmatpush1.msra.mxu0 0.0
        %4212 = vmatprep.subr.mxu0 0.0
        %4213 = vmatpush1.msra.mxu0 0.0
        %4214 = vmatprep.subr.mxu0 0.0
        %4215 = vmatpush1.msra.mxu0 0.0
        %4216 = vmatprep.subr.mxu0 0.0
        %4217 = vmatpush1.msra.mxu0 0.0
        %4218 = vmatprep.subr.mxu0 0.0
        %4219 = vmatpush1.msra.mxu0 0.0
        %4220 = vmatprep.mubr.f32.mxu0 0.0
        %4221 = vmatmul.mubr.f32.gmra.mrb[0].mxu0 %v4154
        %v4222 = vpop.f32.mrb[0].mxu0
        %v4223 = vadd.f32 %v4150, %v4222
        %v4224 = vpop.f32.mrb[0].mxu0
        %4225 = vdwg.mxu0
        %s4226 = scalar_lea.vmem [#allocation4], 2
        %v4227 = vld [vmem:[%s4226] ss:$4 sm:$0xff]
        %s4228 = scalar_lea.vmem %s5, 128
        %v4229 = vld [vmem:[%s4228] sm:$0xff]
        %v4230 = vld [vmem:[%s4228 + $0x8] sm:$0xff]
        %v4231 = vld [vmem:[%s4228 + $0x10] sm:$0xff]
        %v4232 = vld [vmem:[%s4228 + $0x18] sm:$0xff]
        %v4233 = vld [vmem:[%s4228 + $0x20] sm:$0xff]
        %v4234 = vld [vmem:[%s4228 + $0x28] sm:$0xff]
        %v4235 = vld [vmem:[%s4228 + $0x30] sm:$0xff]
        %v4236 = vld [vmem:[%s4228 + $0x38] sm:$0xff]
        %v4238 = vsel %vm4028, %v4227, 0
        %4240 = vmatprep.subr.mxu0 0.0
        %4241 = vmatpush1.msra.mxu0 %v4229
        %4242 = vmatprep.subr.mxu0 0.0
        %4243 = vmatpush1.msra.mxu0 %v4230
        %4244 = vmatprep.subr.mxu0 0.0
        %4245 = vmatpush1.msra.mxu0 %v4231
        %4246 = vmatprep.subr.mxu0 0.0
        %4247 = vmatpush1.msra.mxu0 %v4232
        %4248 = vmatprep.subr.mxu0 0.0
        %4249 = vmatpush1.msra.mxu0 %v4233
        %4250 = vmatprep.subr.mxu0 0.0
        %4251 = vmatpush1.msra.mxu0 %v4234
        %4252 = vmatprep.subr.mxu0 0.0
        %4253 = vmatpush1.msra.mxu0 %v4235
        %4254 = vmatprep.subr.mxu0 0.0
        %4255 = vmatpush1.msra.mxu0 %v4236
        %4256 = vmatprep.subr.mxu0 0.0
        %4257 = vmatpush1.msra.mxu0 0.0
        %4258 = vmatprep.subr.mxu0 0.0
        %4259 = vmatpush1.msra.mxu0 0.0
        %4260 = vmatprep.subr.mxu0 0.0
        %4261 = vmatpush1.msra.mxu0 0.0
        %4262 = vmatprep.subr.mxu0 0.0
        %4263 = vmatpush1.msra.mxu0 0.0
        %4264 = vmatprep.subr.mxu0 0.0
        %4265 = vmatpush1.msra.mxu0 0.0
        %4266 = vmatprep.subr.mxu0 0.0
        %4267 = vmatpush1.msra.mxu0 0.0
        %4268 = vmatprep.subr.mxu0 0.0
        %4269 = vmatpush1.msra.mxu0 0.0
        %4270 = vmatprep.subr.mxu0 0.0
        %4271 = vmatpush1.msra.mxu0 0.0
        %4272 = vmatprep.subr.mxu0 0.0
        %4273 = vmatpush1.msra.mxu0 0.0
        %4274 = vmatprep.subr.mxu0 0.0
        %4275 = vmatpush1.msra.mxu0 0.0
        %4276 = vmatprep.subr.mxu0 0.0
        %4277 = vmatpush1.msra.mxu0 0.0
        %4278 = vmatprep.subr.mxu0 0.0
        %4279 = vmatpush1.msra.mxu0 0.0
        %4280 = vmatprep.subr.mxu0 0.0
        %4281 = vmatpush1.msra.mxu0 0.0
        %4282 = vmatprep.subr.mxu0 0.0
        %4283 = vmatpush1.msra.mxu0 0.0
        %4284 = vmatprep.subr.mxu0 0.0
        %4285 = vmatpush1.msra.mxu0 0.0
        %4286 = vmatprep.subr.mxu0 0.0
        %4287 = vmatpush1.msra.mxu0 0.0
        %4288 = vmatprep.subr.mxu0 0.0
        %4289 = vmatpush1.msra.mxu0 0.0
        %4290 = vmatprep.subr.mxu0 0.0
        %4291 = vmatpush1.msra.mxu0 0.0
        %4292 = vmatprep.subr.mxu0 0.0
        %4293 = vmatpush1.msra.mxu0 0.0
        %4294 = vmatprep.subr.mxu0 0.0
        %4295 = vmatpush1.msra.mxu0 0.0
        %4296 = vmatprep.subr.mxu0 0.0
        %4297 = vmatpush1.msra.mxu0 0.0
        %4298 = vmatprep.subr.mxu0 0.0
        %4299 = vmatpush1.msra.mxu0 0.0
        %4300 = vmatprep.subr.mxu0 0.0
        %4301 = vmatpush1.msra.mxu0 0.0
        %4302 = vmatprep.subr.mxu0 0.0
        %4303 = vmatpush1.msra.mxu0 0.0
        %4304 = vmatprep.mubr.f32.mxu0 0.0
        %4305 = vmatmul.mubr.f32.gmra.mrb[0].mxu0 %v4238
        %v4306 = vpop.f32.mrb[0].mxu0
        %v4307 = vadd.f32 0.0, %v4306
        %v4308 = vpop.f32.mrb[0].mxu0
        %4309 = vdwg.mxu0
        %v4310 = vadd.f32 %v4223, %v4307
        %s4311 = scalar_lea.vmem [#allocation4], 3
        %v4312 = vld [vmem:[%s4311] ss:$4 sm:$0xff]
        %s4313 = scalar_lea.vmem %s5, 192
        %v4314 = vld [vmem:[%s4313] sm:$0xff]
        %v4315 = vld [vmem:[%s4313 + $0x8] sm:$0xff]
        %v4316 = vld [vmem:[%s4313 + $0x10] sm:$0xff]
        %v4317 = vld [vmem:[%s4313 + $0x18] sm:$0xff]
        %v4318 = vld [vmem:[%s4313 + $0x20] sm:$0xff]
        %v4319 = vld [vmem:[%s4313 + $0x28] sm:$0xff]
        %v4320 = vld [vmem:[%s4313 + $0x30] sm:$0xff]
        %v4321 = vld [vmem:[%s4313 + $0x38] sm:$0xff]
        %v4323 = vsel %vm4028, %v4312, 0
        %4325 = vmatprep.subr.mxu0 0.0
        %4326 = vmatpush1.msra.mxu0 %v4314
        %4327 = vmatprep.subr.mxu0 0.0
        %4328 = vmatpush1.msra.mxu0 %v4315
        %4329 = vmatprep.subr.mxu0 0.0
        %4330 = vmatpush1.msra.mxu0 %v4316
        %4331 = vmatprep.subr.mxu0 0.0
        %4332 = vmatpush1.msra.mxu0 %v4317
        %4333 = vmatprep.subr.mxu0 0.0
        %4334 = vmatpush1.msra.mxu0 %v4318
        %4335 = vmatprep.subr.mxu0 0.0
        %4336 = vmatpush1.msra.mxu0 %v4319
        %4337 = vmatprep.subr.mxu0 0.0
        %4338 = vmatpush1.msra.mxu0 %v4320
        %4339 = vmatprep.subr.mxu0 0.0
        %4340 = vmatpush1.msra.mxu0 %v4321
        %4341 = vmatprep.subr.mxu0 0.0
        %4342 = vmatpush1.msra.mxu0 0.0
        %4343 = vmatprep.subr.mxu0 0.0
        %4344 = vmatpush1.msra.mxu0 0.0
        %4345 = vmatprep.subr.mxu0 0.0
        %4346 = vmatpush1.msra.mxu0 0.0
        %4347 = vmatprep.subr.mxu0 0.0
        %4348 = vmatpush1.msra.mxu0 0.0
        %4349 = vmatprep.subr.mxu0 0.0
        %4350 = vmatpush1.msra.mxu0 0.0
        %4351 = vmatprep.subr.mxu0 0.0
        %4352 = vmatpush1.msra.mxu0 0.0
        %4353 = vmatprep.subr.mxu0 0.0
        %4354 = vmatpush1.msra.mxu0 0.0
        %4355 = vmatprep.subr.mxu0 0.0
        %4356 = vmatpush1.msra.mxu0 0.0
        %4357 = vmatprep.subr.mxu0 0.0
        %4358 = vmatpush1.msra.mxu0 0.0
        %4359 = vmatprep.subr.mxu0 0.0
        %4360 = vmatpush1.msra.mxu0 0.0
        %4361 = vmatprep.subr.mxu0 0.0
        %4362 = vmatpush1.msra.mxu0 0.0
        %4363 = vmatprep.subr.mxu0 0.0
        %4364 = vmatpush1.msra.mxu0 0.0
        %4365 = vmatprep.subr.mxu0 0.0
        %4366 = vmatpush1.msra.mxu0 0.0
        %4367 = vmatprep.subr.mxu0 0.0
        %4368 = vmatpush1.msra.mxu0 0.0
        %4369 = vmatprep.subr.mxu0 0.0
        %4370 = vmatpush1.msra.mxu0 0.0
        %4371 = vmatprep.subr.mxu0 0.0
        %4372 = vmatpush1.msra.mxu0 0.0
        %4373 = vmatprep.subr.mxu0 0.0
        %4374 = vmatpush1.msra.mxu0 0.0
        %4375 = vmatprep.subr.mxu0 0.0
        %4376 = vmatpush1.msra.mxu0 0.0
        %4377 = vmatprep.subr.mxu0 0.0
        %4378 = vmatpush1.msra.mxu0 0.0
        %4379 = vmatprep.subr.mxu0 0.0
        %4380 = vmatpush1.msra.mxu0 0.0
        %4381 = vmatprep.subr.mxu0 0.0
        %4382 = vmatpush1.msra.mxu0 0.0
        %4383 = vmatprep.subr.mxu0 0.0
        %4384 = vmatpush1.msra.mxu0 0.0
        %4385 = vmatprep.subr.mxu0 0.0
        %4386 = vmatpush1.msra.mxu0 0.0
        %4387 = vmatprep.subr.mxu0 0.0
        %4388 = vmatpush1.msra.mxu0 0.0
        %4389 = vmatprep.mubr.f32.mxu0 0.0
        %4390 = vmatmul.mubr.f32.gmra.mrb[0].mxu0 %v4323
        %v4391 = vpop.f32.mrb[0].mxu0
        %v4392 = vadd.f32 0.0, %v4391
        %v4393 = vpop.f32.mrb[0].mxu0
        %4394 = vdwg.mxu0
        %v4395 = vadd.f32 %v4310, %v4392
        %v4396 = vld [vmem:[%s6] sm:$0x1]
        %v4398 = vlaneseq
        %v4399 = vshrl.u32 %v4398, 7
        %v4400 = vsub.s32 0, %v4399
        %v4401 = vrot.slane %v4396, %v4400
        %v4403 = vadd.f32 %v4395, %v4401
        %v4404 = vmax.f32 %v4403, 0.0
        %v4405 = vld [vmem:[%s7] sm:$0xff]
        %v4406 = vld [vmem:[%s7 + $0x8] sm:$0xff]
        %v4407 = vld [vmem:[%s7 + $0x10] sm:$0xff]
        %v4408 = vld [vmem:[%s7 + $0x18] sm:$0xff]
        %v4409 = vld [vmem:[%s7 + $0x20] sm:$0xff]
        %v4410 = vld [vmem:[%s7 + $0x28] sm:$0xff]
        %v4411 = vld [vmem:[%s7 + $0x30] sm:$0xff]
        %v4412 = vld [vmem:[%s7 + $0x38] sm:$0xff]
        %v4413 = vld [vmem:[%s7 + $0x40] sm:$0xff]
        %v4414 = vld [vmem:[%s7 + $0x48] sm:$0xff]
        %v4415 = vld [vmem:[%s7 + $0x50] sm:$0xff]
        %v4416 = vld [vmem:[%s7 + $0x58] sm:$0xff]
        %v4417 = vld [vmem:[%s7 + $0x60] sm:$0xff]
        %v4418 = vld [vmem:[%s7 + $0x68] sm:$0xff]
        %v4419 = vld [vmem:[%s7 + $0x70] sm:$0xff]
        %v4420 = vld [vmem:[%s7 + $0x78] sm:$0xff]
        %v4421 = vld [vmem:[%s8] sm:$0x1]
        %v4423 = vlaneseq
        %v4424 = vshrl.u32 %v4423, 7
        %v4425 = vsub.s32 0, %v4424
        %v4426 = vrot.slane %v4421, %v4425
        %4428 = vmatprep.subr.mxu0 0.0
        %4429 = vmatpush1.msra.mxu0 %v4405
        %4430 = vmatprep.subr.mxu0 0.0
        %4431 = vmatpush1.msra.mxu0 %v4406
        %4432 = vmatprep.subr.mxu0 0.0
        %4433 = vmatpush1.msra.mxu0 %v4407
        %4434 = vmatprep.subr.mxu0 0.0
        %4435 = vmatpush1.msra.mxu0 %v4408
        %4436 = vmatprep.subr.mxu0 0.0
        %4437 = vmatpush1.msra.mxu0 %v4409
        %4438 = vmatprep.subr.mxu0 0.0
        %4439 = vmatpush1.msra.mxu0 %v4410
        %4440 = vmatprep.subr.mxu0 0.0
        %4441 = vmatpush1.msra.mxu0 %v4411
        %4442 = vmatprep.subr.mxu0 0.0
        %4443 = vmatpush1.msra.mxu0 %v4412
        %4444 = vmatprep.subr.mxu0 0.0
        %4445 = vmatpush1.msra.mxu0 %v4413
        %4446 = vmatprep.subr.mxu0 0.0
        %4447 = vmatpush1.msra.mxu0 %v4414
        %4448 = vmatprep.subr.mxu0 0.0
        %4449 = vmatpush1.msra.mxu0 %v4415
        %4450 = vmatprep.subr.mxu0 0.0
        %4451 = vmatpush1.msra.mxu0 %v4416
        %4452 = vmatprep.subr.mxu0 0.0
        %4453 = vmatpush1.msra.mxu0 %v4417
        %4454 = vmatprep.subr.mxu0 0.0
        %4455 = vmatpush1.msra.mxu0 %v4418
        %4456 = vmatprep.subr.mxu0 0.0
        %4457 = vmatpush1.msra.mxu0 %v4419
        %4458 = vmatprep.subr.mxu0 0.0
        %4459 = vmatpush1.msra.mxu0 %v4420
        %4460 = vmatprep.subr.mxu0 0.0
        %4461 = vmatpush1.msra.mxu0 0.0
        %4462 = vmatprep.subr.mxu0 0.0
        %4463 = vmatpush1.msra.mxu0 0.0
        %4464 = vmatprep.subr.mxu0 0.0
        %4465 = vmatpush1.msra.mxu0 0.0
        %4466 = vmatprep.subr.mxu0 0.0
        %4467 = vmatpush1.msra.mxu0 0.0
        %4468 = vmatprep.subr.mxu0 0.0
        %4469 = vmatpush1.msra.mxu0 0.0
        %4470 = vmatprep.subr.mxu0 0.0
        %4471 = vmatpush1.msra.mxu0 0.0
        %4472 = vmatprep.subr.mxu0 0.0
        %4473 = vmatpush1.msra.mxu0 0.0
        %4474 = vmatprep.subr.mxu0 0.0
        %4475 = vmatpush1.msra.mxu0 0.0
        %4476 = vmatprep.subr.mxu0 0.0
        %4477 = vmatpush1.msra.mxu0 0.0
        %4478 = vmatprep.subr.mxu0 0.0
        %4479 = vmatpush1.msra.mxu0 0.0
        %4480 = vmatprep.subr.mxu0 0.0
        %4481 = vmatpush1.msra.mxu0 0.0
        %4482 = vmatprep.subr.mxu0 0.0
        %4483 = vmatpush1.msra.mxu0 0.0
        %4484 = vmatprep.subr.mxu0 0.0
        %4485 = vmatpush1.msra.mxu0 0.0
        %4486 = vmatprep.subr.mxu0 0.0
        %4487 = vmatpush1.msra.mxu0 0.0
        %4488 = vmatprep.subr.mxu0 0.0
        %4489 = vmatpush1.msra.mxu0 0.0
        %4490 = vmatprep.subr.mxu0 0.0
        %4491 = vmatpush1.msra.mxu0 0.0
        %4492 = vmatprep.mubr.f32.mxu0 0.0
        %4493 = vmatmul.mubr.f32.gmra.mrb[0].mxu0 %v4404
        %v4494 = vpop.f32.mrb[0].mxu0
        %v4495 = vadd.f32 %v4426, %v4494
        %v4496 = vpop.f32.mrb[0].mxu0
        %4497 = vdwg.mxu0
        %v4498 = vmax.f32 %v4495, 0.0
        %v4499 = vld [vmem:[%s9] sm:$0xff]
        %v4500 = vld [vmem:[%s9 + $0x8] sm:$0xff]
        %v4501 = vld [vmem:[%s9 + $0x10] sm:$0xff]
        %v4502 = vld [vmem:[%s9 + $0x18] sm:$0xff]
        %v4503 = vld [vmem:[%s9 + $0x20] sm:$0xff]
        %v4504 = vld [vmem:[%s9 + $0x28] sm:$0xff]
        %v4505 = vld [vmem:[%s9 + $0x30] sm:$0xff]
        %v4506 = vld [vmem:[%s9 + $0x38] sm:$0xff]
        %v4507 = vld [vmem:[%s9 + $0x40] sm:$0xff]
        %v4508 = vld [vmem:[%s9 + $0x48] sm:$0xff]
        %v4509 = vld [vmem:[%s9 + $0x50] sm:$0xff]
        %v4510 = vld [vmem:[%s9 + $0x58] sm:$0xff]
        %v4511 = vld [vmem:[%s9 + $0x60] sm:$0xff]
        %v4512 = vld [vmem:[%s9 + $0x68] sm:$0xff]
        %v4513 = vld [vmem:[%s9 + $0x70] sm:$0xff]
        %v4514 = vld [vmem:[%s9 + $0x78] sm:$0xff]
        %v4515 = vld [vmem:[%s10] sm:$0x1]
        %v4517 = vlaneseq
        %v4518 = vshrl.u32 %v4517, 7
        %v4519 = vsub.s32 0, %v4518
        %v4520 = vrot.slane %v4515, %v4519
        %4522 = vmatprep.subr.mxu0 0.0
        %4523 = vmatpush1.msra.mxu0 %v4499
        %4524 = vmatprep.subr.mxu0 0.0
        %4525 = vmatpush1.msra.mxu0 %v4500
        %4526 = vmatprep.subr.mxu0 0.0
        %4527 = vmatpush1.msra.mxu0 %v4501
        %4528 = vmatprep.subr.mxu0 0.0
        %4529 = vmatpush1.msra.mxu0 %v4502
        %4530 = vmatprep.subr.mxu0 0.0
        %4531 = vmatpush1.msra.mxu0 %v4503
        %4532 = vmatprep.subr.mxu0 0.0
        %4533 = vmatpush1.msra.mxu0 %v4504
        %4534 = vmatprep.subr.mxu0 0.0
        %4535 = vmatpush1.msra.mxu0 %v4505
        %4536 = vmatprep.subr.mxu0 0.0
        %4537 = vmatpush1.msra.mxu0 %v4506
        %4538 = vmatprep.subr.mxu0 0.0
        %4539 = vmatpush1.msra.mxu0 %v4507
        %4540 = vmatprep.subr.mxu0 0.0
        %4541 = vmatpush1.msra.mxu0 %v4508
        %4542 = vmatprep.subr.mxu0 0.0
        %4543 = vmatpush1.msra.mxu0 %v4509
        %4544 = vmatprep.subr.mxu0 0.0
        %4545 = vmatpush1.msra.mxu0 %v4510
        %4546 = vmatprep.subr.mxu0 0.0
        %4547 = vmatpush1.msra.mxu0 %v4511
        %4548 = vmatprep.subr.mxu0 0.0
        %4549 = vmatpush1.msra.mxu0 %v4512
        %4550 = vmatprep.subr.mxu0 0.0
        %4551 = vmatpush1.msra.mxu0 %v4513
        %4552 = vmatprep.subr.mxu0 0.0
        %4553 = vmatpush1.msra.mxu0 %v4514
        %4554 = vmatprep.subr.mxu0 0.0
        %4555 = vmatpush1.msra.mxu0 0.0
        %4556 = vmatprep.subr.mxu0 0.0
        %4557 = vmatpush1.msra.mxu0 0.0
        %4558 = vmatprep.subr.mxu0 0.0
        %4559 = vmatpush1.msra.mxu0 0.0
        %4560 = vmatprep.subr.mxu0 0.0
        %4561 = vmatpush1.msra.mxu0 0.0
        %4562 = vmatprep.subr.mxu0 0.0
        %4563 = vmatpush1.msra.mxu0 0.0
        %4564 = vmatprep.subr.mxu0 0.0
        %4565 = vmatpush1.msra.mxu0 0.0
        %4566 = vmatprep.subr.mxu0 0.0
        %4567 = vmatpush1.msra.mxu0 0.0
        %4568 = vmatprep.subr.mxu0 0.0
        %4569 = vmatpush1.msra.mxu0 0.0
        %4570 = vmatprep.subr.mxu0 0.0
        %4571 = vmatpush1.msra.mxu0 0.0
        %4572 = vmatprep.subr.mxu0 0.0
        %4573 = vmatpush1.msra.mxu0 0.0
        %4574 = vmatprep.subr.mxu0 0.0
        %4575 = vmatpush1.msra.mxu0 0.0
        %4576 = vmatprep.subr.mxu0 0.0
        %4577 = vmatpush1.msra.mxu0 0.0
        %4578 = vmatprep.subr.mxu0 0.0
        %4579 = vmatpush1.msra.mxu0 0.0
        %4580 = vmatprep.subr.mxu0 0.0
        %4581 = vmatpush1.msra.mxu0 0.0
        %4582 = vmatprep.subr.mxu0 0.0
        %4583 = vmatpush1.msra.mxu0 0.0
        %4584 = vmatprep.subr.mxu0 0.0
        %4585 = vmatpush1.msra.mxu0 0.0
        %4586 = vmatprep.mubr.f32.mxu0 0.0
        %4587 = vmatmul.mubr.f32.gmra.mrb[0].mxu0 %v4498
        %v4588 = vpop.f32.mrb[0].mxu0
        %v4589 = vadd.f32 %v4520, %v4588
        %v4590 = vpop.f32.mrb[0].mxu0
        %4591 = vdwg.mxu0
        %4592 = vst [vmem:[%s382] sm:$0xff] %v4589
        %s4593 = sand.u32 %s269, 1
        %s4594 = scalar_lea.sflag [#allocation6], %s4593
        %s4595 = sand.u32 %s269, 1
        %s4596 = smul.addr %s4595, 8
        %s4597 = scalar_lea.vmem [#allocation5], %s4596
        // Predicated region
        $region65: #{net_forward.1} parent=63 // pred_check
          %p4598 = pneg %p279
        $region66: #{net_forward.1} parent=63 // pred_check_branch
          %4600 = sbr.rel (%p4598) target = $region68
        $region67: #{net_forward.1} parent=63 // pred_region
          %s4602 = ssub.s32 128, 128
          %4603 = vsyncadd %s4594, %s4602
          %s4604 = smul.addr %s25, 128
          %s4605 = scalar_lea.hbm %s11, %s4604
          %s4607 = sshll.u32 %s4597, 4
          %s4608 = int_to_ptr.vmem [resolvable:$true] %s4607
          %4610 = dma.vmem_to_hbm [thread:$0]  %s4608, 128, %s4605, %s4594
        $region68: #{net_forward.1} parent=63 // pred_fallthru
          _
      $region64: #{net_forward.1} parent=5 // pred_fallthru
        _
      %p4611 = scmp.le.s32.totalorder 2, %s20
      // Predicated region
      $region69: #{net_forward.1} parent=5 // pred_check
        %p4612 = pneg %p4611
      $region70: #{net_forward.1} parent=5 // pred_check_branch
        %4614 = sbr.rel (%p4612) target = $region72
      $region71: #{net_forward.1} parent=5 // pred_region
        %s4615 = ssub.s32 %s20, 2
        // Predicated region
        $region73: #{net_forward.1} parent=71 // pred_check
          %p4616 = pneg %p285
        $region74: #{net_forward.1} parent=71 // pred_check_branch
          %4618 = sbr.rel (%p4616) target = $region76
        $region75: #{net_forward.1} parent=71 // pred_region
          %s4619 = sand.u32 %s270, 1
          %s4620 = scalar_lea.sflag [#allocation6], %s4619
          %s4621 = sand.u32 %s270, 1
          %s4622 = smul.addr %s4621, 8
          %s4623 = scalar_lea.vmem [#allocation5], %s4622
          %4624 = dma.done %s4620, 128
        $region76: #{net_forward.1} parent=71 // pred_fallthru
          _
      $region72: #{net_forward.1} parent=5 // pred_fallthru
        _
    $region6: #{net_forward.1} parent=1 // loop_footer
      %s24 = sadd.s32 1, %s20
    $region7: #{net_forward.1} parent=1 // loop_footer_branch
      %19 = sbr.rel target = $region3
    $region8: #{net_forward.1} parent=1 // loop_exit
      _
    %4625 = vsyncpa [#allocation6], 1
    %s4626 = scalar_lea.sflag [#allocation6], 1
    %4627 = vsyncpa %s4626, 1

</llo_original>
